<compile_context>
chip_gen: v7x
topology: tpu7x:2x2x1
jax: 0.10.0
libtpu: 0.0.40
codegen_flags: <defaults>
</compile_context>

<pallas_src>
import jax
import jax.numpy as jnp
from jax.experimental import pallas as pl
from jax.experimental.pallas import tpu as pltpu

EPS = 1e-5          # PyTorch BatchNorm2d default eps
RELU6_MAX = 6.0
CIN_PAD = 8         # sublane-friendly padding of the tiny input-channel dim


def _make_kernel(N, H, W, Cin, Cexp):
    NHW = N * H * W
    inv_n = 1.0 / float(NHW)
    # Flat-pixel offset of each of the 9 depthwise taps (torch row-major order).
    tap_off = [(dy - 1) * W + (dx - 1) for dy in range(3) for dx in range(3)]

    def kernel(x_ref, w_ed_ref, wp_ref, mask_ref, bn_ref, o_ref):

        def bn_fold(t, g, b, post_mul):
            # Training-mode BN over (N,H,W) == row-wise over the lane axis,
            # folded to a single scale/bias.  Single-pass E[x^2]-m^2 is fine
            # at this scale / tolerance (see review note); production version
            # should use a two-pass reduction.
            s = jnp.sum(t, axis=1, keepdims=True)
            ss = jnp.sum(t * t, axis=1, keepdims=True)
            mean = s * inv_n
            var = ss * inv_n - mean * mean
            scale = g * jax.lax.rsqrt(var + EPS)
            bias = b - mean * scale
            return scale * post_mul, bias * post_mul

        we = w_ed_ref[:, 0:CIN_PAD]              # (Cexp, 8)  expand weights
        wd = w_ed_ref[:, CIN_PAD:CIN_PAD + 9]    # (Cexp, 9)  depthwise weights

        # ---- 1x1 expand conv on the MXU (fp32 contract precision) ----
        h = jnp.dot(we, x_ref[...],
                    precision=jax.lax.Precision.HIGHEST,
                    preferred_element_type=jnp.float32)      # (Cexp, NHW)
        s1, b1 = bn_fold(h, bn_ref[:, 0:1], bn_ref[:, 1:2], 1.0)
        h = jnp.clip(h * s1 + b1, 0.0, RELU6_MAX)

        # ---- depthwise 3x3, stride 1, zero padding: XLU rolls + masks ----
        # pltpu.roll is a circular shift along the flat-pixel axis; the 0/1
        # tap masks zero every out-of-image (hence every wrapped) position,
        # so the wrap is harmless.  Three independent accumulators break the
        # serial add chain (ILP on the VALU).
        accs = [None, h * wd[:, 4:5], None]      # centre tap seeds slot 1
        for k, d in enumerate(tap_off):
            if k == 4:
                continue
            tap = pltpu.roll(h, shift=(-d) % NHW, axis=1)
            term = (tap * mask_ref[k:k + 1, :]) * wd[:, k:k + 1]
            slot = k % 3
            accs[slot] = term if accs[slot] is None else accs[slot] + term
        acc = (accs[0] + accs[1]) + accs[2]
        s2, b2 = bn_fold(acc, bn_ref[:, 2:3], bn_ref[:, 3:4], 1.0)
        h2 = jnp.clip(acc * s2 + b2, 0.0, RELU6_MAX)

        # ---- 1x1 projection conv on the MXU ----
        p_full = jnp.dot(wp_ref[...], h2,
                         precision=jax.lax.Precision.HIGHEST,
                         preferred_element_type=jnp.float32)  # (8, NHW)
        p = p_full[0:Cin, :]

        # ---- BN3 with the stride==1 `x + Identity(x)` doubling folded in ----
        s3, b3 = bn_fold(p, bn_ref[0:Cin, 4:5], bn_ref[0:Cin, 5:6], 2.0)
        o_ref[...] = p * s3 + b3                 # lane-dense store

    return kernel


@jax.jit
def bottleneck_residual_block(x_nchw, params):
    """Forward pass. x_nchw: (N, Cin, H, W) float32 -> (N, Cin, H, W)."""
    we, wd, wp, g1, b1, g2, b2, g3, b3 = params
    N, Cin, H, W = x_nchw.shape
    Cexp = we.shape[1]
    NHW = N * H * W

    # Channel-major, flattened-pixel layout: lane axis = N*H*W (dense).
    x2d = jnp.transpose(x_nchw, (1, 0, 2, 3)).reshape(Cin, NHW)
    x2d = jnp.pad(x2d.astype(jnp.float32), ((0, CIN_PAD - Cin), (0, 0)))

    # Packed weight slabs.
    we_t = jnp.pad(we.T.astype(jnp.float32), ((0, 0), (0, CIN_PAD - Cin)))
    wd_t = wd.T.astype(jnp.float32)                        # (Cexp, 9)
    w_ed = jnp.concatenate([we_t, wd_t], axis=1)           # (Cexp, 8 + 9)
    wp_p = jnp.pad(wp.T.astype(jnp.float32), ((0, CIN_PAD - Cin), (0, 0)))

    # One (Cexp, 6) BN slab: columns [g1 b1 g2 b2 g3 b3] (g3/b3 zero-padded).
    def _col(v, rows):
        v = v.reshape(-1, 1).astype(jnp.float32)
        return jnp.pad(v, ((0, rows - v.shape[0]), (0, 0)))
    bn_all = jnp.concatenate([_col(g1, Cexp), _col(b1, Cexp),
                              _col(g2, Cexp), _col(b2, Cexp),
                              _col(g3, Cexp), _col(b3, Cexp)], axis=1)

    # 0/1 validity masks for the 9 depthwise taps (zero padding at H/W edges).
    pix = jnp.arange(NHW, dtype=jnp.int32)
    xi = pix % W
    yi = (pix // W) % H
    rows = []
    for dy in (-1, 0, 1):
        for dx in (-1, 0, 1):
            rows.append(((xi + dx >= 0) & (xi + dx < W) &
                         (yi + dy >= 0) & (yi + dy < H)).astype(jnp.float32))
    tap_mask = jnp.stack(rows, axis=0)                     # (9, NHW)

    kernel = _make_kernel(N, H, W, Cin, Cexp)
    vmem = pl.BlockSpec(memory_space=pltpu.MemorySpace.VMEM)
    out2d = pl.pallas_call(
        kernel,
        out_shape=jax.ShapeDtypeStruct((Cin, NHW), jnp.float32),
        in_specs=[vmem] * 5,
        out_specs=vmem,
    )(x2d, w_ed, wp_p, tap_mask, bn_all)

    return jnp.transpose(out2d.reshape(Cin, N, H, W), (1, 0, 2, 3))


def init_params(key, in_filters=4, expand_ratio=6):
    """Deterministic synthetic parameters (shapes per the module __init__)."""
    cexp = in_filters * expand_ratio
    ks = jax.random.split(key, 9)
    # torch weights: expand (cexp, cin, 1, 1)    -> stored as (cin, cexp)
    #                depthwise (cexp, 1, 3, 3)   -> stored as (9, cexp)
    #                projection (cin, cexp, 1, 1)-> stored as (cexp, cin)
    we = jax.random.normal(ks[0], (in_filters, cexp), jnp.float32) * 0.2
    wd = jax.random.normal(ks[1], (9, cexp), jnp.float32) * 0.2
    wp = jax.random.normal(ks[2], (cexp, in_filters), jnp.float32) * 0.2
    g1 = 1.0 + 0.1 * jax.random.normal(ks[3], (1, cexp), jnp.float32)
    b1 = 0.1 * jax.random.normal(ks[4], (1, cexp), jnp.float32)
    g2 = 1.0 + 0.1 * jax.random.normal(ks[5], (1, cexp), jnp.float32)
    b2 = 0.1 * jax.random.normal(ks[6], (1, cexp), jnp.float32)
    g3 = 1.0 + 0.1 * jax.random.normal(ks[7], (1, in_filters), jnp.float32)
    b3 = 0.1 * jax.random.normal(ks[8], (1, in_filters), jnp.float32)
    return (we, wd, wp, g1, b1, g2, b2, g3, b3)


def reference(x_nchw, params):
    """Pure-JAX reference with identical math (for correctness check)."""
    we, wd, wp, g1, b1, g2, b2, g3, b3 = params
    x = jnp.transpose(x_nchw, (0, 2, 3, 1)).astype(jnp.float32)
    N, H, W, Cin = x.shape

    def bn(t, g, b):
        m = t.mean(axis=(0, 1, 2), keepdims=True)
        v = ((t - m) ** 2).mean(axis=(0, 1, 2), keepdims=True)
        return ((t - m) * jax.lax.rsqrt(v + EPS) * g.reshape(1, 1, 1, -1)
                + b.reshape(1, 1, 1, -1))

    h = jnp.einsum('nhwc,ce->nhwe', x, we, precision=jax.lax.Precision.HIGHEST)
    h = jnp.clip(bn(h, g1, b1), 0.0, RELU6_MAX)
    hp = jnp.pad(h, ((0, 0), (1, 1), (1, 1), (0, 0)))
    acc = jnp.zeros_like(h)
    for dy in range(3):
        for dx in range(3):
            acc = acc + hp[:, dy:dy + H, dx:dx + W, :] * \
                wd[dy * 3 + dx].reshape(1, 1, 1, -1)
    h = jnp.clip(bn(acc, g2, b2), 0.0, RELU6_MAX)
    p = jnp.einsum('nhwe,ec->nhwc', h, wp, precision=jax.lax.Precision.HIGHEST)
    p = bn(p, g3, b3)
    p = p + p        # stride==1 branch: shortcut = Identity(projected output)
    return jnp.transpose(p, (0, 3, 1, 2))


if __name__ == "__main__":
    key = jax.random.PRNGKey(0)
    kx, kp = jax.random.split(key)

    N, Cin, H, W = 2, 4, 16, 16          # small shapes; Cexp = 24
    x = jax.random.normal(kx, (N, Cin, H, W), jnp.float32)
    params = init_params(kp, in_filters=Cin, expand_ratio=6)

    out = bottleneck_residual_block(x, params)
    out = jax.block_until_ready(out)

    ref = reference(x, params)
    assert out.shape == (N, Cin, H, W), out.shape
    err = jnp.max(jnp.abs(out - ref))
    assert jnp.allclose(out, ref, rtol=1e-3, atol=1e-3), f"max abs err {err}"

    print("KERNEL_OK")
</pallas_src>

<mosaic_0001>
module attributes {stable_mosaic.version = 11 : i64} {
  func.func @kernel(%arg0: memref<8x512xf32, #tpu.memory_space<vmem>>, %arg1: memref<24x17xf32, #tpu.memory_space<vmem>>, %arg2: memref<8x24xf32, #tpu.memory_space<vmem>>, %arg3: memref<9x512xf32, #tpu.memory_space<vmem>>, %arg4: memref<24x6xf32, #tpu.memory_space<vmem>>, %arg5: memref<4x512xf32, #tpu.memory_space<vmem>>) attributes {dimension_semantics = [], scalar_prefetch = 0 : i64, scratch_operands = 0 : i64, tpu.core_type = #tpu.core_type<tc>} {
    %c0 = arith.constant 0 : index
    %c0_0 = arith.constant 0 : index
    %0 = vector.load %arg1[%c0, %c0_0] : memref<24x17xf32, #tpu.memory_space<vmem>>, vector<24x8xf32>
    %c0_1 = arith.constant 0 : index
    %c8 = arith.constant 8 : index
    %1 = vector.load %arg1[%c0_1, %c8] : memref<24x17xf32, #tpu.memory_space<vmem>>, vector<24x9xf32>
    %c0_2 = arith.constant 0 : index
    %c0_3 = arith.constant 0 : index
    %2 = vector.load %arg0[%c0_2, %c0_3] : memref<8x512xf32, #tpu.memory_space<vmem>>, vector<8x512xf32>
    %cst = arith.constant dense<0.000000e+00> : vector<24x512xf32>
    %3 = tpu.matmul %0, %2, %cst {dimension_numbers = #tpu.dot_dimension_numbers<[1], [0], [0], [1], [0, 0, 1, 1], [], []>, precision = #tpu.contract_precision<fp32>} : vector<24x8xf32>, vector<8x512xf32>, vector<24x512xf32> -> vector<24x512xf32>
    %c0_4 = arith.constant 0 : index
    %c0_5 = arith.constant 0 : index
    %4 = vector.load %arg4[%c0_4, %c0_5] : memref<24x6xf32, #tpu.memory_space<vmem>>, vector<24x1xf32>
    %c0_6 = arith.constant 0 : index
    %c1 = arith.constant 1 : index
    %5 = vector.load %arg4[%c0_6, %c1] : memref<24x6xf32, #tpu.memory_space<vmem>>, vector<24x1xf32>
    %cst_7 = arith.constant dense<0.000000e+00> : vector<24xf32>
    %6 = vector.multi_reduction <add>, %3, %cst_7 [1] : vector<24x512xf32> to vector<24xf32>
    %7 = vector.shape_cast %6 : vector<24xf32> to vector<24x1xf32>
    %8 = arith.mulf %3, %3 : vector<24x512xf32>
    %cst_8 = arith.constant dense<0.000000e+00> : vector<24xf32>
    %9 = vector.multi_reduction <add>, %8, %cst_8 [1] : vector<24x512xf32> to vector<24xf32>
    %10 = vector.shape_cast %9 : vector<24xf32> to vector<24x1xf32>
    %cst_9 = arith.constant 0.001953125 : f32
    %11 = vector.broadcast %cst_9 : f32 to vector<24x1xf32>
    %12 = arith.mulf %7, %11 : vector<24x1xf32>
    %cst_10 = arith.constant 0.001953125 : f32
    %13 = vector.broadcast %cst_10 : f32 to vector<24x1xf32>
    %14 = arith.mulf %10, %13 : vector<24x1xf32>
    %15 = arith.mulf %12, %12 : vector<24x1xf32>
    %16 = arith.subf %14, %15 : vector<24x1xf32>
    %cst_11 = arith.constant 9.99999974E-6 : f32
    %17 = vector.broadcast %cst_11 : f32 to vector<24x1xf32>
    %18 = arith.addf %16, %17 : vector<24x1xf32>
    %19 = math.rsqrt %18 : vector<24x1xf32>
    %20 = arith.mulf %4, %19 : vector<24x1xf32>
    %21 = arith.mulf %12, %20 : vector<24x1xf32>
    %22 = arith.subf %5, %21 : vector<24x1xf32>
    %cst_12 = arith.constant 1.000000e+00 : f32
    %23 = vector.broadcast %cst_12 : f32 to vector<24x1xf32>
    %24 = arith.mulf %20, %23 : vector<24x1xf32>
    %cst_13 = arith.constant 1.000000e+00 : f32
    %25 = vector.broadcast %cst_13 : f32 to vector<24x1xf32>
    %26 = arith.mulf %22, %25 : vector<24x1xf32>
    %27 = vector.broadcast %24 : vector<24x1xf32> to vector<24x512xf32>
    %28 = arith.mulf %3, %27 : vector<24x512xf32>
    %29 = vector.broadcast %26 : vector<24x1xf32> to vector<24x512xf32>
    %30 = arith.addf %28, %29 : vector<24x512xf32>
    %cst_14 = arith.constant 0.000000e+00 : f32
    %cst_15 = arith.constant 6.000000e+00 : f32
    %31 = vector.broadcast %cst_14 : f32 to vector<24x512xf32>
    %32 = arith.maximumf %31, %30 : vector<24x512xf32>
    %33 = vector.broadcast %cst_15 : f32 to vector<24x512xf32>
    %34 = arith.minimumf %33, %32 : vector<24x512xf32>
    %35 = vector.extract_strided_slice %1 {offsets = [0, 4], sizes = [24, 1], strides = [1, 1]} : vector<24x9xf32> to vector<24x1xf32>
    %36 = vector.broadcast %35 : vector<24x1xf32> to vector<24x512xf32>
    %37 = arith.mulf %34, %36 : vector<24x512xf32>
    %c17_i32 = arith.constant 17 : i32
    %38 = tpu.dynamic_rotate %34 by %c17_i32 dim 1 : vector<24x512xf32>, i32 -> vector<24x512xf32>
    %c0_16 = arith.constant 0 : index
    %c0_17 = arith.constant 0 : index
    %39 = vector.load %arg3[%c0_16, %c0_17] : memref<9x512xf32, #tpu.memory_space<vmem>>, vector<1x512xf32>
    %40 = vector.broadcast %39 : vector<1x512xf32> to vector<24x512xf32>
    %41 = arith.mulf %38, %40 : vector<24x512xf32>
    %42 = vector.extract_strided_slice %1 {offsets = [0, 0], sizes = [24, 1], strides = [1, 1]} : vector<24x9xf32> to vector<24x1xf32>
    %43 = vector.broadcast %42 : vector<24x1xf32> to vector<24x512xf32>
    %44 = arith.mulf %41, %43 : vector<24x512xf32>
    %c16_i32 = arith.constant 16 : i32
    %45 = tpu.dynamic_rotate %34 by %c16_i32 dim 1 : vector<24x512xf32>, i32 -> vector<24x512xf32>
    %c1_18 = arith.constant 1 : index
    %c0_19 = arith.constant 0 : index
    %46 = vector.load %arg3[%c1_18, %c0_19] : memref<9x512xf32, #tpu.memory_space<vmem>>, vector<1x512xf32>
    %47 = vector.broadcast %46 : vector<1x512xf32> to vector<24x512xf32>
    %48 = arith.mulf %45, %47 : vector<24x512xf32>
    %49 = vector.extract_strided_slice %1 {offsets = [0, 1], sizes = [24, 1], strides = [1, 1]} : vector<24x9xf32> to vector<24x1xf32>
    %50 = vector.broadcast %49 : vector<24x1xf32> to vector<24x512xf32>
    %51 = arith.mulf %48, %50 : vector<24x512xf32>
    %52 = arith.addf %37, %51 : vector<24x512xf32>
    %c15_i32 = arith.constant 15 : i32
    %53 = tpu.dynamic_rotate %34 by %c15_i32 dim 1 : vector<24x512xf32>, i32 -> vector<24x512xf32>
    %c2 = arith.constant 2 : index
    %c0_20 = arith.constant 0 : index
    %54 = vector.load %arg3[%c2, %c0_20] : memref<9x512xf32, #tpu.memory_space<vmem>>, vector<1x512xf32>
    %55 = vector.broadcast %54 : vector<1x512xf32> to vector<24x512xf32>
    %56 = arith.mulf %53, %55 : vector<24x512xf32>
    %57 = vector.extract_strided_slice %1 {offsets = [0, 2], sizes = [24, 1], strides = [1, 1]} : vector<24x9xf32> to vector<24x1xf32>
    %58 = vector.broadcast %57 : vector<24x1xf32> to vector<24x512xf32>
    %59 = arith.mulf %56, %58 : vector<24x512xf32>
    %c1_i32 = arith.constant 1 : i32
    %60 = tpu.dynamic_rotate %34 by %c1_i32 dim 1 : vector<24x512xf32>, i32 -> vector<24x512xf32>
    %c3 = arith.constant 3 : index
    %c0_21 = arith.constant 0 : index
    %61 = vector.load %arg3[%c3, %c0_21] : memref<9x512xf32, #tpu.memory_space<vmem>>, vector<1x512xf32>
    %62 = vector.broadcast %61 : vector<1x512xf32> to vector<24x512xf32>
    %63 = arith.mulf %60, %62 : vector<24x512xf32>
    %64 = vector.extract_strided_slice %1 {offsets = [0, 3], sizes = [24, 1], strides = [1, 1]} : vector<24x9xf32> to vector<24x1xf32>
    %65 = vector.broadcast %64 : vector<24x1xf32> to vector<24x512xf32>
    %66 = arith.mulf %63, %65 : vector<24x512xf32>
    %67 = arith.addf %44, %66 : vector<24x512xf32>
    %c511_i32 = arith.constant 511 : i32
    %68 = tpu.dynamic_rotate %34 by %c511_i32 dim 1 : vector<24x512xf32>, i32 -> vector<24x512xf32>
    %c5 = arith.constant 5 : index
    %c0_22 = arith.constant 0 : index
    %69 = vector.load %arg3[%c5, %c0_22] : memref<9x512xf32, #tpu.memory_space<vmem>>, vector<1x512xf32>
    %70 = vector.broadcast %69 : vector<1x512xf32> to vector<24x512xf32>
    %71 = arith.mulf %68, %70 : vector<24x512xf32>
    %72 = vector.extract_strided_slice %1 {offsets = [0, 5], sizes = [24, 1], strides = [1, 1]} : vector<24x9xf32> to vector<24x1xf32>
    %73 = vector.broadcast %72 : vector<24x1xf32> to vector<24x512xf32>
    %74 = arith.mulf %71, %73 : vector<24x512xf32>
    %75 = arith.addf %59, %74 : vector<24x512xf32>
    %c497_i32 = arith.constant 497 : i32
    %76 = tpu.dynamic_rotate %34 by %c497_i32 dim 1 : vector<24x512xf32>, i32 -> vector<24x512xf32>
    %c6 = arith.constant 6 : index
    %c0_23 = arith.constant 0 : index
    %77 = vector.load %arg3[%c6, %c0_23] : memref<9x512xf32, #tpu.memory_space<vmem>>, vector<1x512xf32>
    %78 = vector.broadcast %77 : vector<1x512xf32> to vector<24x512xf32>
    %79 = arith.mulf %76, %78 : vector<24x512xf32>
    %80 = vector.extract_strided_slice %1 {offsets = [0, 6], sizes = [24, 1], strides = [1, 1]} : vector<24x9xf32> to vector<24x1xf32>
    %81 = vector.broadcast %80 : vector<24x1xf32> to vector<24x512xf32>
    %82 = arith.mulf %79, %81 : vector<24x512xf32>
    %83 = arith.addf %67, %82 : vector<24x512xf32>
    %c496_i32 = arith.constant 496 : i32
    %84 = tpu.dynamic_rotate %34 by %c496_i32 dim 1 : vector<24x512xf32>, i32 -> vector<24x512xf32>
    %c7 = arith.constant 7 : index
    %c0_24 = arith.constant 0 : index
    %85 = vector.load %arg3[%c7, %c0_24] : memref<9x512xf32, #tpu.memory_space<vmem>>, vector<1x512xf32>
    %86 = vector.broadcast %85 : vector<1x512xf32> to vector<24x512xf32>
    %87 = arith.mulf %84, %86 : vector<24x512xf32>
    %88 = vector.extract_strided_slice %1 {offsets = [0, 7], sizes = [24, 1], strides = [1, 1]} : vector<24x9xf32> to vector<24x1xf32>
    %89 = vector.broadcast %88 : vector<24x1xf32> to vector<24x512xf32>
    %90 = arith.mulf %87, %89 : vector<24x512xf32>
    %91 = arith.addf %52, %90 : vector<24x512xf32>
    %c495_i32 = arith.constant 495 : i32
    %92 = tpu.dynamic_rotate %34 by %c495_i32 dim 1 : vector<24x512xf32>, i32 -> vector<24x512xf32>
    %c8_25 = arith.constant 8 : index
    %c0_26 = arith.constant 0 : index
    %93 = vector.load %arg3[%c8_25, %c0_26] : memref<9x512xf32, #tpu.memory_space<vmem>>, vector<1x512xf32>
    %94 = vector.broadcast %93 : vector<1x512xf32> to vector<24x512xf32>
    %95 = arith.mulf %92, %94 : vector<24x512xf32>
    %96 = vector.extract_strided_slice %1 {offsets = [0, 8], sizes = [24, 1], strides = [1, 1]} : vector<24x9xf32> to vector<24x1xf32>
    %97 = vector.broadcast %96 : vector<24x1xf32> to vector<24x512xf32>
    %98 = arith.mulf %95, %97 : vector<24x512xf32>
    %99 = arith.addf %75, %98 : vector<24x512xf32>
    %100 = arith.addf %83, %91 : vector<24x512xf32>
    %101 = arith.addf %100, %99 : vector<24x512xf32>
    %c0_27 = arith.constant 0 : index
    %c2_28 = arith.constant 2 : index
    %102 = vector.load %arg4[%c0_27, %c2_28] : memref<24x6xf32, #tpu.memory_space<vmem>>, vector<24x1xf32>
    %c0_29 = arith.constant 0 : index
    %c3_30 = arith.constant 3 : index
    %103 = vector.load %arg4[%c0_29, %c3_30] : memref<24x6xf32, #tpu.memory_space<vmem>>, vector<24x1xf32>
    %cst_31 = arith.constant dense<0.000000e+00> : vector<24xf32>
    %104 = vector.multi_reduction <add>, %101, %cst_31 [1] : vector<24x512xf32> to vector<24xf32>
    %105 = vector.shape_cast %104 : vector<24xf32> to vector<24x1xf32>
    %106 = arith.mulf %101, %101 : vector<24x512xf32>
    %cst_32 = arith.constant dense<0.000000e+00> : vector<24xf32>
    %107 = vector.multi_reduction <add>, %106, %cst_32 [1] : vector<24x512xf32> to vector<24xf32>
    %108 = vector.shape_cast %107 : vector<24xf32> to vector<24x1xf32>
    %cst_33 = arith.constant 0.001953125 : f32
    %109 = vector.broadcast %cst_33 : f32 to vector<24x1xf32>
    %110 = arith.mulf %105, %109 : vector<24x1xf32>
    %cst_34 = arith.constant 0.001953125 : f32
    %111 = vector.broadcast %cst_34 : f32 to vector<24x1xf32>
    %112 = arith.mulf %108, %111 : vector<24x1xf32>
    %113 = arith.mulf %110, %110 : vector<24x1xf32>
    %114 = arith.subf %112, %113 : vector<24x1xf32>
    %cst_35 = arith.constant 9.99999974E-6 : f32
    %115 = vector.broadcast %cst_35 : f32 to vector<24x1xf32>
    %116 = arith.addf %114, %115 : vector<24x1xf32>
    %117 = math.rsqrt %116 : vector<24x1xf32>
    %118 = arith.mulf %102, %117 : vector<24x1xf32>
    %119 = arith.mulf %110, %118 : vector<24x1xf32>
    %120 = arith.subf %103, %119 : vector<24x1xf32>
    %cst_36 = arith.constant 1.000000e+00 : f32
    %121 = vector.broadcast %cst_36 : f32 to vector<24x1xf32>
    %122 = arith.mulf %118, %121 : vector<24x1xf32>
    %cst_37 = arith.constant 1.000000e+00 : f32
    %123 = vector.broadcast %cst_37 : f32 to vector<24x1xf32>
    %124 = arith.mulf %120, %123 : vector<24x1xf32>
    %125 = vector.broadcast %122 : vector<24x1xf32> to vector<24x512xf32>
    %126 = arith.mulf %101, %125 : vector<24x512xf32>
    %127 = vector.broadcast %124 : vector<24x1xf32> to vector<24x512xf32>
    %128 = arith.addf %126, %127 : vector<24x512xf32>
    %cst_38 = arith.constant 0.000000e+00 : f32
    %cst_39 = arith.constant 6.000000e+00 : f32
    %129 = vector.broadcast %cst_38 : f32 to vector<24x512xf32>
    %130 = arith.maximumf %129, %128 : vector<24x512xf32>
    %131 = vector.broadcast %cst_39 : f32 to vector<24x512xf32>
    %132 = arith.minimumf %131, %130 : vector<24x512xf32>
    %c0_40 = arith.constant 0 : index
    %c0_41 = arith.constant 0 : index
    %133 = vector.load %arg2[%c0_40, %c0_41] : memref<8x24xf32, #tpu.memory_space<vmem>>, vector<8x24xf32>
    %cst_42 = arith.constant dense<0.000000e+00> : vector<8x512xf32>
    %134 = tpu.matmul %133, %132, %cst_42 {dimension_numbers = #tpu.dot_dimension_numbers<[1], [0], [0], [1], [0, 0, 1, 1], [], []>, precision = #tpu.contract_precision<fp32>} : vector<8x24xf32>, vector<24x512xf32>, vector<8x512xf32> -> vector<8x512xf32>
    %135 = vector.extract_strided_slice %134 {offsets = [0, 0], sizes = [4, 512], strides = [1, 1]} : vector<8x512xf32> to vector<4x512xf32>
    %c0_43 = arith.constant 0 : index
    %c4 = arith.constant 4 : index
    %136 = vector.load %arg4[%c0_43, %c4] : memref<24x6xf32, #tpu.memory_space<vmem>>, vector<4x1xf32>
    %c0_44 = arith.constant 0 : index
    %c5_45 = arith.constant 5 : index
    %137 = vector.load %arg4[%c0_44, %c5_45] : memref<24x6xf32, #tpu.memory_space<vmem>>, vector<4x1xf32>
    %cst_46 = arith.constant dense<0.000000e+00> : vector<4xf32>
    %138 = vector.multi_reduction <add>, %135, %cst_46 [1] : vector<4x512xf32> to vector<4xf32>
    %139 = vector.shape_cast %138 : vector<4xf32> to vector<4x1xf32>
    %140 = arith.mulf %135, %135 : vector<4x512xf32>
    %cst_47 = arith.constant dense<0.000000e+00> : vector<4xf32>
    %141 = vector.multi_reduction <add>, %140, %cst_47 [1] : vector<4x512xf32> to vector<4xf32>
    %142 = vector.shape_cast %141 : vector<4xf32> to vector<4x1xf32>
    %cst_48 = arith.constant 0.001953125 : f32
    %143 = vector.broadcast %cst_48 : f32 to vector<4x1xf32>
    %144 = arith.mulf %139, %143 : vector<4x1xf32>
    %cst_49 = arith.constant 0.001953125 : f32
    %145 = vector.broadcast %cst_49 : f32 to vector<4x1xf32>
    %146 = arith.mulf %142, %145 : vector<4x1xf32>
    %147 = arith.mulf %144, %144 : vector<4x1xf32>
    %148 = arith.subf %146, %147 : vector<4x1xf32>
    %cst_50 = arith.constant 9.99999974E-6 : f32
    %149 = vector.broadcast %cst_50 : f32 to vector<4x1xf32>
    %150 = arith.addf %148, %149 : vector<4x1xf32>
    %151 = math.rsqrt %150 : vector<4x1xf32>
    %152 = arith.mulf %136, %151 : vector<4x1xf32>
    %153 = arith.mulf %144, %152 : vector<4x1xf32>
    %154 = arith.subf %137, %153 : vector<4x1xf32>
    %cst_51 = arith.constant 2.000000e+00 : f32
    %155 = vector.broadcast %cst_51 : f32 to vector<4x1xf32>
    %156 = arith.mulf %152, %155 : vector<4x1xf32>
    %cst_52 = arith.constant 2.000000e+00 : f32
    %157 = vector.broadcast %cst_52 : f32 to vector<4x1xf32>
    %158 = arith.mulf %154, %157 : vector<4x1xf32>
    %159 = vector.broadcast %156 : vector<4x1xf32> to vector<4x512xf32>
    %160 = arith.mulf %135, %159 : vector<4x512xf32>
    %161 = vector.broadcast %158 : vector<4x1xf32> to vector<4x512xf32>
    %162 = arith.addf %160, %161 : vector<4x512xf32>
    %c0_53 = arith.constant 0 : index
    %c0_54 = arith.constant 0 : index
    %163 = vector.load %arg5[%c0_53, %c0_54] : memref<4x512xf32, #tpu.memory_space<vmem>>, vector<4x512xf32>
    tpu.vector_store %arg5[%c0_53, %c0_54], %162 {strides = array<i32>} : memref<4x512xf32, #tpu.memory_space<vmem>>, vector<4x512xf32>,
    return
  }
}

</mosaic_0001>

<llo_original>
// kernel: bottleneck_residual_block.1
$region0: #{bottleneck_residual_block.1}
  #allocation0 [shape = 'u32[]', space=smem, size = 0x4, offset = 0x4, fixed_abs, tag = 'smem constant byte address 0x4 - core index']
  #allocation1 [shape = 'u32[144,128]{1,0:T(1,128)}', space=vmem, size = 0x12000, scoped, tag = 'internal scratch']
  %s0 = inlined_call_operand.vmem [shape: f32[8,512], index: 0, kind: input, shape index: {}]
  %s1 = inlined_call_operand.vmem [shape: f32[24,17], index: 1, kind: input, shape index: {}]
  %s2 = inlined_call_operand.vmem [shape: f32[8,24], index: 2, kind: input, shape index: {}]
  %s3 = inlined_call_operand.vmem [shape: f32[9,512], index: 3, kind: input, shape index: {}]
  %s4 = inlined_call_operand.vmem [shape: f32[24,6], index: 4, kind: input, shape index: {}]
  %s5 = inlined_call_operand.vmem [shape: f32[4,512], index: 5, kind: output, shape index: {}]
  %s6 = sld [smem:[#allocation0]]
  $region30: #{bottleneck_residual_block.1} parent=0
    _
  %s8 = ssub.s32 1, %s6
  %s9 = scalar_select 0, %s8, %s6
  // Predicated region
  $region2: #{bottleneck_residual_block.1} parent=0 // pred_check
    _
  $region3: #{bottleneck_residual_block.1} parent=0 // pred_check_branch
    %11 = sbr.rel (0) target = $region5
  $region4: #{bottleneck_residual_block.1} parent=0 // pred_region
    _
  $region5: #{bottleneck_residual_block.1} parent=0 // pred_fallthru
    _
  // Predicated region
  $region6: #{bottleneck_residual_block.1} parent=0 // pred_check
    _
  $region7: #{bottleneck_residual_block.1} parent=0 // pred_check_branch
    %13 = sbr.rel (0) target = $region9
  $region8: #{bottleneck_residual_block.1} parent=0 // pred_region
    _
  $region9: #{bottleneck_residual_block.1} parent=0 // pred_fallthru
    _
  // Predicated region
  $region10: #{bottleneck_residual_block.1} parent=0 // pred_check
    _
  $region11: #{bottleneck_residual_block.1} parent=0 // pred_check_branch
    %15 = sbr.rel (0) target = $region13
  $region12: #{bottleneck_residual_block.1} parent=0 // pred_region
    _
  $region13: #{bottleneck_residual_block.1} parent=0 // pred_fallthru
    _
  // Predicated region
  $region14: #{bottleneck_residual_block.1} parent=0 // pred_check
    _
  $region15: #{bottleneck_residual_block.1} parent=0 // pred_check_branch
    %17 = sbr.rel (0) target = $region17
  $region16: #{bottleneck_residual_block.1} parent=0 // pred_region
    _
  $region17: #{bottleneck_residual_block.1} parent=0 // pred_fallthru
    _
  // Predicated region
  $region18: #{bottleneck_residual_block.1} parent=0 // pred_check
    _
  $region19: #{bottleneck_residual_block.1} parent=0 // pred_check_branch
    %19 = sbr.rel (0) target = $region21
  $region20: #{bottleneck_residual_block.1} parent=0 // pred_region
    _
  $region21: #{bottleneck_residual_block.1} parent=0 // pred_fallthru
    _
  %v20 = vld [vmem:[%s1] sm:$0xff]
  %v21 = vld [vmem:[%s1 + $0x8] sm:$0xff]
  %v22 = vld [vmem:[%s1 + $0x10] sm:$0xff]
  %v23 = vld [vmem:[%s0] sm:$0xff]
  %v24 = vld [vmem:[%s0 + $0x8] sm:$0xff]
  %v25 = vld [vmem:[%s0 + $0x10] sm:$0xff]
  %v26 = vld [vmem:[%s0 + $0x18] sm:$0xff]
  %vm27 = vcmask 64512
  %v29 = vsel %vm27, %v20, 0
  %v32 = vsel %vm27, %v21, 0
  %v35 = vsel %vm27, %v22, 0
  %v37 = vand.u32 %v24, 4294901760
  %38 = vmatprep.subr.mxu0 %v37
  %v39 = vand.u32 %v23, 4294901760
  %40 = vmatpush1.msra.mxu0 %v39
  %41 = vmatprep.subr.mxu0 0.0
  %42 = vmatpush1.msra.mxu0 0.0
  %43 = vmatprep.subr.mxu0 0.0
  %44 = vmatpush1.msra.mxu0 0.0
  %45 = vmatprep.subr.mxu0 0.0
  %46 = vmatpush1.msra.mxu0 0.0
  %47 = vmatprep.subr.mxu0 0.0
  %48 = vmatpush1.msra.mxu0 0.0
  %49 = vmatprep.subr.mxu0 0.0
  %50 = vmatpush1.msra.mxu0 0.0
  %51 = vmatprep.subr.mxu0 0.0
  %52 = vmatpush1.msra.mxu0 0.0
  %53 = vmatprep.subr.mxu0 0.0
  %54 = vmatpush1.msra.mxu0 0.0
  %55 = vmatprep.subr.mxu0 0.0
  %56 = vmatpush1.msra.mxu0 0.0
  %57 = vmatprep.subr.mxu0 0.0
  %58 = vmatpush1.msra.mxu0 0.0
  %59 = vmatprep.subr.mxu0 0.0
  %60 = vmatpush1.msra.mxu0 0.0
  %61 = vmatprep.subr.mxu0 0.0
  %62 = vmatpush1.msra.mxu0 0.0
  %63 = vmatprep.subr.mxu0 0.0
  %64 = vmatpush1.msra.mxu0 0.0
  %65 = vmatprep.subr.mxu0 0.0
  %66 = vmatpush1.msra.mxu0 0.0
  %67 = vmatprep.subr.mxu0 0.0
  %68 = vmatpush1.msra.mxu0 0.0
  %69 = vmatprep.subr.mxu0 0.0
  %70 = vmatpush1.msra.mxu0 0.0
  %71 = vmatprep.subr.mxu0 0.0
  %72 = vmatpush1.msra.mxu0 0.0
  %73 = vmatprep.subr.mxu0 0.0
  %74 = vmatpush1.msra.mxu0 0.0
  %75 = vmatprep.subr.mxu0 0.0
  %76 = vmatpush1.msra.mxu0 0.0
  %77 = vmatprep.subr.mxu0 0.0
  %78 = vmatpush1.msra.mxu0 0.0
  %79 = vmatprep.subr.mxu0 0.0
  %80 = vmatpush1.msra.mxu0 0.0
  %81 = vmatprep.subr.mxu0 0.0
  %82 = vmatpush1.msra.mxu0 0.0
  %83 = vmatprep.subr.mxu0 0.0
  %84 = vmatpush1.msra.mxu0 0.0
  %85 = vmatprep.subr.mxu0 0.0
  %86 = vmatpush1.msra.mxu0 0.0
  %87 = vmatprep.subr.mxu0 0.0
  %88 = vmatpush1.msra.mxu0 0.0
  %89 = vmatprep.subr.mxu0 0.0
  %90 = vmatpush1.msra.mxu0 0.0
  %91 = vmatprep.subr.mxu0 0.0
  %92 = vmatpush1.msra.mxu0 0.0
  %93 = vmatprep.subr.mxu0 0.0
  %94 = vmatpush1.msra.mxu0 0.0
  %95 = vmatprep.subr.mxu0 0.0
  %96 = vmatpush1.msra.mxu0 0.0
  %97 = vmatprep.subr.mxu0 0.0
  %98 = vmatpush1.msra.mxu0 0.0
  %99 = vmatprep.subr.mxu0 0.0
  %100 = vmatpush1.msra.mxu0 0.0
  %101 = vmatprep.subr.mxu0 0.0
  %102 = vmatpush1.msra.mxu0 0.0
  %103 = vmatprep.mubr.f32.mxu0 0.0
  %v104 = vand.u32 %v29, 4294901760
  %v105 = vsub.f32 %v29, %v104
  %v106 = vand.u32 %v105, 4294901760
  %v107 = vsub.f32 %v105, %v106
  %v108 = vand.u32 %v107, 4294901760
  %109 = vmatmul.mubr.f32.gmra.mrb[0].mxu0 %v108
  %v110 = vpop.f32.mrb[0].mxu0
  %v111 = vadd.f32 0.0, %v110
  %v112 = vpop.f32.mrb[0].mxu0
  %v113 = vadd.f32 0.0, %v112
  %114 = vmatprep.mubr.f32.mxu0 0.0
  %v115 = vand.u32 %v32, 4294901760
  %v116 = vsub.f32 %v32, %v115
  %v117 = vand.u32 %v116, 4294901760
  %v118 = vsub.f32 %v116, %v117
  %v119 = vand.u32 %v118, 4294901760
  %120 = vmatmul.mubr.f32.gmra.mrb[0].mxu0 %v119
  %v121 = vpop.f32.mrb[0].mxu0
  %v122 = vadd.f32 0.0, %v121
  %v123 = vpop.f32.mrb[0].mxu0
  %v124 = vadd.f32 0.0, %v123
  %125 = vmatprep.mubr.f32.mxu0 0.0
  %v126 = vand.u32 %v35, 4294901760
  %v127 = vsub.f32 %v35, %v126
  %v128 = vand.u32 %v127, 4294901760
  %v129 = vsub.f32 %v127, %v128
  %v130 = vand.u32 %v129, 4294901760
  %131 = vmatmul.mubr.f32.gmra.mrb[0].mxu0 %v130
  %v132 = vpop.f32.mrb[0].mxu0
  %v133 = vadd.f32 0.0, %v132
  %v134 = vpop.f32.mrb[0].mxu0
  %v135 = vadd.f32 0.0, %v134
  %136 = vdwg.mxu0
  %v137 = vand.u32 %v24, 4294901760
  %v138 = vsub.f32 %v24, %v137
  %v139 = vand.u32 %v138, 4294901760
  %v140 = vsub.f32 %v138, %v139
  %v141 = vand.u32 %v140, 4294901760
  %142 = vmatprep.subr.mxu0 %v141
  %v143 = vand.u32 %v23, 4294901760
  %v144 = vsub.f32 %v23, %v143
  %v145 = vand.u32 %v144, 4294901760
  %v146 = vsub.f32 %v144, %v145
  %v147 = vand.u32 %v146, 4294901760
  %148 = vmatpush1.msra.mxu0 %v147
  %149 = vmatprep.subr.mxu0 0.0
  %150 = vmatpush1.msra.mxu0 0.0
  %151 = vmatprep.subr.mxu0 0.0
  %152 = vmatpush1.msra.mxu0 0.0
  %153 = vmatprep.subr.mxu0 0.0
  %154 = vmatpush1.msra.mxu0 0.0
  %155 = vmatprep.subr.mxu0 0.0
  %156 = vmatpush1.msra.mxu0 0.0
  %157 = vmatprep.subr.mxu0 0.0
  %158 = vmatpush1.msra.mxu0 0.0
  %159 = vmatprep.subr.mxu0 0.0
  %160 = vmatpush1.msra.mxu0 0.0
  %161 = vmatprep.subr.mxu0 0.0
  %162 = vmatpush1.msra.mxu0 0.0
  %163 = vmatprep.subr.mxu0 0.0
  %164 = vmatpush1.msra.mxu0 0.0
  %165 = vmatprep.subr.mxu0 0.0
  %166 = vmatpush1.msra.mxu0 0.0
  %167 = vmatprep.subr.mxu0 0.0
  %168 = vmatpush1.msra.mxu0 0.0
  %169 = vmatprep.subr.mxu0 0.0
  %170 = vmatpush1.msra.mxu0 0.0
  %171 = vmatprep.subr.mxu0 0.0
  %172 = vmatpush1.msra.mxu0 0.0
  %173 = vmatprep.subr.mxu0 0.0
  %174 = vmatpush1.msra.mxu0 0.0
  %175 = vmatprep.subr.mxu0 0.0
  %176 = vmatpush1.msra.mxu0 0.0
  %177 = vmatprep.subr.mxu0 0.0
  %178 = vmatpush1.msra.mxu0 0.0
  %179 = vmatprep.subr.mxu0 0.0
  %180 = vmatpush1.msra.mxu0 0.0
  %181 = vmatprep.subr.mxu0 0.0
  %182 = vmatpush1.msra.mxu0 0.0
  %183 = vmatprep.subr.mxu0 0.0
  %184 = vmatpush1.msra.mxu0 0.0
  %185 = vmatprep.subr.mxu0 0.0
  %186 = vmatpush1.msra.mxu0 0.0
  %187 = vmatprep.subr.mxu0 0.0
  %188 = vmatpush1.msra.mxu0 0.0
  %189 = vmatprep.subr.mxu0 0.0
  %190 = vmatpush1.msra.mxu0 0.0
  %191 = vmatprep.subr.mxu0 0.0
  %192 = vmatpush1.msra.mxu0 0.0
  %193 = vmatprep.subr.mxu0 0.0
  %194 = vmatpush1.msra.mxu0 0.0
  %195 = vmatprep.subr.mxu0 0.0
  %196 = vmatpush1.msra.mxu0 0.0
  %197 = vmatprep.subr.mxu0 0.0
  %198 = vmatpush1.msra.mxu0 0.0
  %199 = vmatprep.subr.mxu0 0.0
  %200 = vmatpush1.msra.mxu0 0.0
  %201 = vmatprep.subr.mxu0 0.0
  %202 = vmatpush1.msra.mxu0 0.0
  %203 = vmatprep.subr.mxu0 0.0
  %204 = vmatpush1.msra.mxu0 0.0
  %205 = vmatprep.subr.mxu0 0.0
  %206 = vmatpush1.msra.mxu0 0.0
  %207 = vmatprep.subr.mxu0 0.0
  %208 = vmatpush1.msra.mxu0 0.0
  %209 = vmatprep.subr.mxu0 0.0
  %210 = vmatpush1.msra.mxu0 0.0
  %211 = vmatprep.mubr.f32.mxu0 0.0
  %v212 = vand.u32 %v29, 4294901760
  %213 = vmatmul.mubr.f32.gmra.mrb[0].mxu0 %v212
  %v214 = vpop.f32.mrb[0].mxu0
  %v215 = vadd.f32 %v111, %v214
  %v216 = vpop.f32.mrb[0].mxu0
  %v217 = vadd.f32 %v113, %v216
  %218 = vmatprep.mubr.f32.mxu0 0.0
  %v219 = vand.u32 %v32, 4294901760
  %220 = vmatmul.mubr.f32.gmra.mrb[0].mxu0 %v219
  %v221 = vpop.f32.mrb[0].mxu0
  %v222 = vadd.f32 %v122, %v221
  %v223 = vpop.f32.mrb[0].mxu0
  %v224 = vadd.f32 %v124, %v223
  %225 = vmatprep.mubr.f32.mxu0 0.0
  %v226 = vand.u32 %v35, 4294901760
  %227 = vmatmul.mubr.f32.gmra.mrb[0].mxu0 %v226
  %v228 = vpop.f32.mrb[0].mxu0
  %v229 = vadd.f32 %v133, %v228
  %v230 = vpop.f32.mrb[0].mxu0
  %v231 = vadd.f32 %v135, %v230
  %232 = vdwg.mxu0
  %v233 = vand.u32 %v24, 4294901760
  %v234 = vsub.f32 %v24, %v233
  %235 = vmatprep.subr.mxu0 %v234
  %v236 = vand.u32 %v23, 4294901760
  %v237 = vsub.f32 %v23, %v236
  %238 = vmatpush1.msra.mxu0 %v237
  %239 = vmatprep.subr.mxu0 0.0
  %240 = vmatpush1.msra.mxu0 0.0
  %241 = vmatprep.subr.mxu0 0.0
  %242 = vmatpush1.msra.mxu0 0.0
  %243 = vmatprep.subr.mxu0 0.0
  %244 = vmatpush1.msra.mxu0 0.0
  %245 = vmatprep.subr.mxu0 0.0
  %246 = vmatpush1.msra.mxu0 0.0
  %247 = vmatprep.subr.mxu0 0.0
  %248 = vmatpush1.msra.mxu0 0.0
  %249 = vmatprep.subr.mxu0 0.0
  %250 = vmatpush1.msra.mxu0 0.0
  %251 = vmatprep.subr.mxu0 0.0
  %252 = vmatpush1.msra.mxu0 0.0
  %253 = vmatprep.subr.mxu0 0.0
  %254 = vmatpush1.msra.mxu0 0.0
  %255 = vmatprep.subr.mxu0 0.0
  %256 = vmatpush1.msra.mxu0 0.0
  %257 = vmatprep.subr.mxu0 0.0
  %258 = vmatpush1.msra.mxu0 0.0
  %259 = vmatprep.subr.mxu0 0.0
  %260 = vmatpush1.msra.mxu0 0.0
  %261 = vmatprep.subr.mxu0 0.0
  %262 = vmatpush1.msra.mxu0 0.0
  %263 = vmatprep.subr.mxu0 0.0
  %264 = vmatpush1.msra.mxu0 0.0
  %265 = vmatprep.subr.mxu0 0.0
  %266 = vmatpush1.msra.mxu0 0.0
  %267 = vmatprep.subr.mxu0 0.0
  %268 = vmatpush1.msra.mxu0 0.0
  %269 = vmatprep.subr.mxu0 0.0
  %270 = vmatpush1.msra.mxu0 0.0
  %271 = vmatprep.subr.mxu0 0.0
  %272 = vmatpush1.msra.mxu0 0.0
  %273 = vmatprep.subr.mxu0 0.0
  %274 = vmatpush1.msra.mxu0 0.0
  %275 = vmatprep.subr.mxu0 0.0
  %276 = vmatpush1.msra.mxu0 0.0
  %277 = vmatprep.subr.mxu0 0.0
  %278 = vmatpush1.msra.mxu0 0.0
  %279 = vmatprep.subr.mxu0 0.0
  %280 = vmatpush1.msra.mxu0 0.0
  %281 = vmatprep.subr.mxu0 0.0
  %282 = vmatpush1.msra.mxu0 0.0
  %283 = vmatprep.subr.mxu0 0.0
  %284 = vmatpush1.msra.mxu0 0.0
  %285 = vmatprep.subr.mxu0 0.0
  %286 = vmatpush1.msra.mxu0 0.0
  %287 = vmatprep.subr.mxu0 0.0
  %288 = vmatpush1.msra.mxu0 0.0
  %289 = vmatprep.subr.mxu0 0.0
  %290 = vmatpush1.msra.mxu0 0.0
  %291 = vmatprep.subr.mxu0 0.0
  %292 = vmatpush1.msra.mxu0 0.0
  %293 = vmatprep.subr.mxu0 0.0
  %294 = vmatpush1.msra.mxu0 0.0
  %295 = vmatprep.subr.mxu0 0.0
  %296 = vmatpush1.msra.mxu0 0.0
  %297 = vmatprep.subr.mxu0 0.0
  %298 = vmatpush1.msra.mxu0 0.0
  %299 = vmatprep.subr.mxu0 0.0
  %300 = vmatpush1.msra.mxu0 0.0
  %301 = vmatprep.mubr.f32.mxu0 0.0
  %v302 = vand.u32 %v29, 4294901760
  %v303 = vsub.f32 %v29, %v302
  %304 = vmatmul.mubr.f32.gmra.mrb[0].mxu0 %v303
  %v305 = vpop.f32.mrb[0].mxu0
  %v306 = vadd.f32 %v215, %v305
  %v307 = vpop.f32.mrb[0].mxu0
  %v308 = vadd.f32 %v217, %v307
  %309 = vmatprep.mubr.f32.mxu0 0.0
  %v310 = vand.u32 %v32, 4294901760
  %v311 = vsub.f32 %v32, %v310
  %312 = vmatmul.mubr.f32.gmra.mrb[0].mxu0 %v311
  %v313 = vpop.f32.mrb[0].mxu0
  %v314 = vadd.f32 %v222, %v313
  %v315 = vpop.f32.mrb[0].mxu0
  %v316 = vadd.f32 %v224, %v315
  %317 = vmatprep.mubr.f32.mxu0 0.0
  %v318 = vand.u32 %v35, 4294901760
  %v319 = vsub.f32 %v35, %v318
  %320 = vmatmul.mubr.f32.gmra.mrb[0].mxu0 %v319
  %v321 = vpop.f32.mrb[0].mxu0
  %v322 = vadd.f32 %v229, %v321
  %v323 = vpop.f32.mrb[0].mxu0
  %v324 = vadd.f32 %v231, %v323
  %325 = vdwg.mxu0
  %v326 = vand.u32 %v24, 4294901760
  %327 = vmatprep.subr.mxu0 %v326
  %v328 = vand.u32 %v23, 4294901760
  %329 = vmatpush1.msra.mxu0 %v328
  %330 = vmatprep.subr.mxu0 0.0
  %331 = vmatpush1.msra.mxu0 0.0
  %332 = vmatprep.subr.mxu0 0.0
  %333 = vmatpush1.msra.mxu0 0.0
  %334 = vmatprep.subr.mxu0 0.0
  %335 = vmatpush1.msra.mxu0 0.0
  %336 = vmatprep.subr.mxu0 0.0
  %337 = vmatpush1.msra.mxu0 0.0
  %338 = vmatprep.subr.mxu0 0.0
  %339 = vmatpush1.msra.mxu0 0.0
  %340 = vmatprep.subr.mxu0 0.0
  %341 = vmatpush1.msra.mxu0 0.0
  %342 = vmatprep.subr.mxu0 0.0
  %343 = vmatpush1.msra.mxu0 0.0
  %344 = vmatprep.subr.mxu0 0.0
  %345 = vmatpush1.msra.mxu0 0.0
  %346 = vmatprep.subr.mxu0 0.0
  %347 = vmatpush1.msra.mxu0 0.0
  %348 = vmatprep.subr.mxu0 0.0
  %349 = vmatpush1.msra.mxu0 0.0
  %350 = vmatprep.subr.mxu0 0.0
  %351 = vmatpush1.msra.mxu0 0.0
  %352 = vmatprep.subr.mxu0 0.0
  %353 = vmatpush1.msra.mxu0 0.0
  %354 = vmatprep.subr.mxu0 0.0
  %355 = vmatpush1.msra.mxu0 0.0
  %356 = vmatprep.subr.mxu0 0.0
  %357 = vmatpush1.msra.mxu0 0.0
  %358 = vmatprep.subr.mxu0 0.0
  %359 = vmatpush1.msra.mxu0 0.0
  %360 = vmatprep.subr.mxu0 0.0
  %361 = vmatpush1.msra.mxu0 0.0
  %362 = vmatprep.subr.mxu0 0.0
  %363 = vmatpush1.msra.mxu0 0.0
  %364 = vmatprep.subr.mxu0 0.0
  %365 = vmatpush1.msra.mxu0 0.0
  %366 = vmatprep.subr.mxu0 0.0
  %367 = vmatpush1.msra.mxu0 0.0
  %368 = vmatprep.subr.mxu0 0.0
  %369 = vmatpush1.msra.mxu0 0.0
  %370 = vmatprep.subr.mxu0 0.0
  %371 = vmatpush1.msra.mxu0 0.0
  %372 = vmatprep.subr.mxu0 0.0
  %373 = vmatpush1.msra.mxu0 0.0
  %374 = vmatprep.subr.mxu0 0.0
  %375 = vmatpush1.msra.mxu0 0.0
  %376 = vmatprep.subr.mxu0 0.0
  %377 = vmatpush1.msra.mxu0 0.0
  %378 = vmatprep.subr.mxu0 0.0
  %379 = vmatpush1.msra.mxu0 0.0
  %380 = vmatprep.subr.mxu0 0.0
  %381 = vmatpush1.msra.mxu0 0.0
  %382 = vmatprep.subr.mxu0 0.0
  %383 = vmatpush1.msra.mxu0 0.0
  %384 = vmatprep.subr.mxu0 0.0
  %385 = vmatpush1.msra.mxu0 0.0
  %386 = vmatprep.subr.mxu0 0.0
  %387 = vmatpush1.msra.mxu0 0.0
  %388 = vmatprep.subr.mxu0 0.0
  %389 = vmatpush1.msra.mxu0 0.0
  %390 = vmatprep.subr.mxu0 0.0
  %391 = vmatpush1.msra.mxu0 0.0
  %392 = vmatprep.mubr.f32.mxu0 0.0
  %v393 = vand.u32 %v29, 4294901760
  %v394 = vsub.f32 %v29, %v393
  %v395 = vand.u32 %v394, 4294901760
  %396 = vmatmul.mubr.f32.gmra.mrb[0].mxu0 %v395
  %v397 = vpop.f32.mrb[0].mxu0
  %v398 = vadd.f32 %v306, %v397
  %v399 = vpop.f32.mrb[0].mxu0
  %v400 = vadd.f32 %v308, %v399
  %401 = vmatprep.mubr.f32.mxu0 0.0
  %v402 = vand.u32 %v32, 4294901760
  %v403 = vsub.f32 %v32, %v402
  %v404 = vand.u32 %v403, 4294901760
  %405 = vmatmul.mubr.f32.gmra.mrb[0].mxu0 %v404
  %v406 = vpop.f32.mrb[0].mxu0
  %v407 = vadd.f32 %v314, %v406
  %v408 = vpop.f32.mrb[0].mxu0
  %v409 = vadd.f32 %v316, %v408
  %410 = vmatprep.mubr.f32.mxu0 0.0
  %v411 = vand.u32 %v35, 4294901760
  %v412 = vsub.f32 %v35, %v411
  %v413 = vand.u32 %v412, 4294901760
  %414 = vmatmul.mubr.f32.gmra.mrb[0].mxu0 %v413
  %v415 = vpop.f32.mrb[0].mxu0
  %v416 = vadd.f32 %v322, %v415
  %v417 = vpop.f32.mrb[0].mxu0
  %v418 = vadd.f32 %v324, %v417
  %419 = vdwg.mxu0
  %v420 = vand.u32 %v24, 4294901760
  %v421 = vsub.f32 %v24, %v420
  %v422 = vand.u32 %v421, 4294901760
  %423 = vmatprep.subr.mxu0 %v422
  %v424 = vand.u32 %v23, 4294901760
  %v425 = vsub.f32 %v23, %v424
  %v426 = vand.u32 %v425, 4294901760
  %427 = vmatpush1.msra.mxu0 %v426
  %428 = vmatprep.subr.mxu0 0.0
  %429 = vmatpush1.msra.mxu0 0.0
  %430 = vmatprep.subr.mxu0 0.0
  %431 = vmatpush1.msra.mxu0 0.0
  %432 = vmatprep.subr.mxu0 0.0
  %433 = vmatpush1.msra.mxu0 0.0
  %434 = vmatprep.subr.mxu0 0.0
  %435 = vmatpush1.msra.mxu0 0.0
  %436 = vmatprep.subr.mxu0 0.0
  %437 = vmatpush1.msra.mxu0 0.0
  %438 = vmatprep.subr.mxu0 0.0
  %439 = vmatpush1.msra.mxu0 0.0
  %440 = vmatprep.subr.mxu0 0.0
  %441 = vmatpush1.msra.mxu0 0.0
  %442 = vmatprep.subr.mxu0 0.0
  %443 = vmatpush1.msra.mxu0 0.0
  %444 = vmatprep.subr.mxu0 0.0
  %445 = vmatpush1.msra.mxu0 0.0
  %446 = vmatprep.subr.mxu0 0.0
  %447 = vmatpush1.msra.mxu0 0.0
  %448 = vmatprep.subr.mxu0 0.0
  %449 = vmatpush1.msra.mxu0 0.0
  %450 = vmatprep.subr.mxu0 0.0
  %451 = vmatpush1.msra.mxu0 0.0
  %452 = vmatprep.subr.mxu0 0.0
  %453 = vmatpush1.msra.mxu0 0.0
  %454 = vmatprep.subr.mxu0 0.0
  %455 = vmatpush1.msra.mxu0 0.0
  %456 = vmatprep.subr.mxu0 0.0
  %457 = vmatpush1.msra.mxu0 0.0
  %458 = vmatprep.subr.mxu0 0.0
  %459 = vmatpush1.msra.mxu0 0.0
  %460 = vmatprep.subr.mxu0 0.0
  %461 = vmatpush1.msra.mxu0 0.0
  %462 = vmatprep.subr.mxu0 0.0
  %463 = vmatpush1.msra.mxu0 0.0
  %464 = vmatprep.subr.mxu0 0.0
  %465 = vmatpush1.msra.mxu0 0.0
  %466 = vmatprep.subr.mxu0 0.0
  %467 = vmatpush1.msra.mxu0 0.0
  %468 = vmatprep.subr.mxu0 0.0
  %469 = vmatpush1.msra.mxu0 0.0
  %470 = vmatprep.subr.mxu0 0.0
  %471 = vmatpush1.msra.mxu0 0.0
  %472 = vmatprep.subr.mxu0 0.0
  %473 = vmatpush1.msra.mxu0 0.0
  %474 = vmatprep.subr.mxu0 0.0
  %475 = vmatpush1.msra.mxu0 0.0
  %476 = vmatprep.subr.mxu0 0.0
  %477 = vmatpush1.msra.mxu0 0.0
  %478 = vmatprep.subr.mxu0 0.0
  %479 = vmatpush1.msra.mxu0 0.0
  %480 = vmatprep.subr.mxu0 0.0
  %481 = vmatpush1.msra.mxu0 0.0
  %482 = vmatprep.subr.mxu0 0.0
  %483 = vmatpush1.msra.mxu0 0.0
  %484 = vmatprep.subr.mxu0 0.0
  %485 = vmatpush1.msra.mxu0 0.0
  %486 = vmatprep.subr.mxu0 0.0
  %487 = vmatpush1.msra.mxu0 0.0
  %488 = vmatprep.subr.mxu0 0.0
  %489 = vmatpush1.msra.mxu0 0.0
  %490 = vmatprep.mubr.f32.mxu0 0.0
  %v491 = vand.u32 %v29, 4294901760
  %492 = vmatmul.mubr.f32.gmra.mrb[0].mxu0 %v491
  %v493 = vpop.f32.mrb[0].mxu0
  %v494 = vadd.f32 %v398, %v493
  %v495 = vpop.f32.mrb[0].mxu0
  %v496 = vadd.f32 %v400, %v495
  %497 = vmatprep.mubr.f32.mxu0 0.0
  %v498 = vand.u32 %v32, 4294901760
  %499 = vmatmul.mubr.f32.gmra.mrb[0].mxu0 %v498
  %v500 = vpop.f32.mrb[0].mxu0
  %v501 = vadd.f32 %v407, %v500
  %v502 = vpop.f32.mrb[0].mxu0
  %v503 = vadd.f32 %v409, %v502
  %504 = vmatprep.mubr.f32.mxu0 0.0
  %v505 = vand.u32 %v35, 4294901760
  %506 = vmatmul.mubr.f32.gmra.mrb[0].mxu0 %v505
  %v507 = vpop.f32.mrb[0].mxu0
  %v508 = vadd.f32 %v416, %v507
  %v509 = vpop.f32.mrb[0].mxu0
  %v510 = vadd.f32 %v418, %v509
  %511 = vdwg.mxu0
  %v512 = vand.u32 %v24, 4294901760
  %513 = vmatprep.subr.mxu0 %v512
  %v514 = vand.u32 %v23, 4294901760
  %515 = vmatpush1.msra.mxu0 %v514
  %516 = vmatprep.subr.mxu0 0.0
  %517 = vmatpush1.msra.mxu0 0.0
  %518 = vmatprep.subr.mxu0 0.0
  %519 = vmatpush1.msra.mxu0 0.0
  %520 = vmatprep.subr.mxu0 0.0
  %521 = vmatpush1.msra.mxu0 0.0
  %522 = vmatprep.subr.mxu0 0.0
  %523 = vmatpush1.msra.mxu0 0.0
  %524 = vmatprep.subr.mxu0 0.0
  %525 = vmatpush1.msra.mxu0 0.0
  %526 = vmatprep.subr.mxu0 0.0
  %527 = vmatpush1.msra.mxu0 0.0
  %528 = vmatprep.subr.mxu0 0.0
  %529 = vmatpush1.msra.mxu0 0.0
  %530 = vmatprep.subr.mxu0 0.0
  %531 = vmatpush1.msra.mxu0 0.0
  %532 = vmatprep.subr.mxu0 0.0
  %533 = vmatpush1.msra.mxu0 0.0
  %534 = vmatprep.subr.mxu0 0.0
  %535 = vmatpush1.msra.mxu0 0.0
  %536 = vmatprep.subr.mxu0 0.0
  %537 = vmatpush1.msra.mxu0 0.0
  %538 = vmatprep.subr.mxu0 0.0
  %539 = vmatpush1.msra.mxu0 0.0
  %540 = vmatprep.subr.mxu0 0.0
  %541 = vmatpush1.msra.mxu0 0.0
  %542 = vmatprep.subr.mxu0 0.0
  %543 = vmatpush1.msra.mxu0 0.0
  %544 = vmatprep.subr.mxu0 0.0
  %545 = vmatpush1.msra.mxu0 0.0
  %546 = vmatprep.subr.mxu0 0.0
  %547 = vmatpush1.msra.mxu0 0.0
  %548 = vmatprep.subr.mxu0 0.0
  %549 = vmatpush1.msra.mxu0 0.0
  %550 = vmatprep.subr.mxu0 0.0
  %551 = vmatpush1.msra.mxu0 0.0
  %552 = vmatprep.subr.mxu0 0.0
  %553 = vmatpush1.msra.mxu0 0.0
  %554 = vmatprep.subr.mxu0 0.0
  %555 = vmatpush1.msra.mxu0 0.0
  %556 = vmatprep.subr.mxu0 0.0
  %557 = vmatpush1.msra.mxu0 0.0
  %558 = vmatprep.subr.mxu0 0.0
  %559 = vmatpush1.msra.mxu0 0.0
  %560 = vmatprep.subr.mxu0 0.0
  %561 = vmatpush1.msra.mxu0 0.0
  %562 = vmatprep.subr.mxu0 0.0
  %563 = vmatpush1.msra.mxu0 0.0
  %564 = vmatprep.subr.mxu0 0.0
  %565 = vmatpush1.msra.mxu0 0.0
  %566 = vmatprep.subr.mxu0 0.0
  %567 = vmatpush1.msra.mxu0 0.0
  %568 = vmatprep.subr.mxu0 0.0
  %569 = vmatpush1.msra.mxu0 0.0
  %570 = vmatprep.subr.mxu0 0.0
  %571 = vmatpush1.msra.mxu0 0.0
  %572 = vmatprep.subr.mxu0 0.0
  %573 = vmatpush1.msra.mxu0 0.0
  %574 = vmatprep.subr.mxu0 0.0
  %575 = vmatpush1.msra.mxu0 0.0
  %576 = vmatprep.subr.mxu0 0.0
  %577 = vmatpush1.msra.mxu0 0.0
  %578 = vmatprep.mubr.f32.mxu0 0.0
  %v579 = vand.u32 %v29, 4294901760
  %580 = vmatmul.mubr.f32.gmra.mrb[0].mxu0 %v579
  %v581 = vpop.f32.mrb[0].mxu0
  %v582 = vadd.f32 %v494, %v581
  %v583 = vpop.f32.mrb[0].mxu0
  %v584 = vadd.f32 %v496, %v583
  %585 = vmatprep.mubr.f32.mxu0 0.0
  %v586 = vand.u32 %v32, 4294901760
  %587 = vmatmul.mubr.f32.gmra.mrb[0].mxu0 %v586
  %v588 = vpop.f32.mrb[0].mxu0
  %v589 = vadd.f32 %v501, %v588
  %v590 = vpop.f32.mrb[0].mxu0
  %v591 = vadd.f32 %v503, %v590
  %592 = vmatprep.mubr.f32.mxu0 0.0
  %v593 = vand.u32 %v35, 4294901760
  %594 = vmatmul.mubr.f32.gmra.mrb[0].mxu0 %v593
  %v595 = vpop.f32.mrb[0].mxu0
  %v596 = vadd.f32 %v508, %v595
  %v597 = vpop.f32.mrb[0].mxu0
  %v598 = vadd.f32 %v510, %v597
  %599 = vdwg.mxu0
  %v600 = vand.u32 %v26, 4294901760
  %601 = vmatprep.subr.mxu0 %v600
  %v602 = vand.u32 %v25, 4294901760
  %603 = vmatpush1.msra.mxu0 %v602
  %604 = vmatprep.subr.mxu0 0.0
  %605 = vmatpush1.msra.mxu0 0.0
  %606 = vmatprep.subr.mxu0 0.0
  %607 = vmatpush1.msra.mxu0 0.0
  %608 = vmatprep.subr.mxu0 0.0
  %609 = vmatpush1.msra.mxu0 0.0
  %610 = vmatprep.subr.mxu0 0.0
  %611 = vmatpush1.msra.mxu0 0.0
  %612 = vmatprep.subr.mxu0 0.0
  %613 = vmatpush1.msra.mxu0 0.0
  %614 = vmatprep.subr.mxu0 0.0
  %615 = vmatpush1.msra.mxu0 0.0
  %616 = vmatprep.subr.mxu0 0.0
  %617 = vmatpush1.msra.mxu0 0.0
  %618 = vmatprep.subr.mxu0 0.0
  %619 = vmatpush1.msra.mxu0 0.0
  %620 = vmatprep.subr.mxu0 0.0
  %621 = vmatpush1.msra.mxu0 0.0
  %622 = vmatprep.subr.mxu0 0.0
  %623 = vmatpush1.msra.mxu0 0.0
  %624 = vmatprep.subr.mxu0 0.0
  %625 = vmatpush1.msra.mxu0 0.0
  %626 = vmatprep.subr.mxu0 0.0
  %627 = vmatpush1.msra.mxu0 0.0
  %628 = vmatprep.subr.mxu0 0.0
  %629 = vmatpush1.msra.mxu0 0.0
  %630 = vmatprep.subr.mxu0 0.0
  %631 = vmatpush1.msra.mxu0 0.0
  %632 = vmatprep.subr.mxu0 0.0
  %633 = vmatpush1.msra.mxu0 0.0
  %634 = vmatprep.subr.mxu0 0.0
  %635 = vmatpush1.msra.mxu0 0.0
  %636 = vmatprep.subr.mxu0 0.0
  %637 = vmatpush1.msra.mxu0 0.0
  %638 = vmatprep.subr.mxu0 0.0
  %639 = vmatpush1.msra.mxu0 0.0
  %640 = vmatprep.subr.mxu0 0.0
  %641 = vmatpush1.msra.mxu0 0.0
  %642 = vmatprep.subr.mxu0 0.0
  %643 = vmatpush1.msra.mxu0 0.0
  %644 = vmatprep.subr.mxu0 0.0
  %645 = vmatpush1.msra.mxu0 0.0
  %646 = vmatprep.subr.mxu0 0.0
  %647 = vmatpush1.msra.mxu0 0.0
  %648 = vmatprep.subr.mxu0 0.0
  %649 = vmatpush1.msra.mxu0 0.0
  %650 = vmatprep.subr.mxu0 0.0
  %651 = vmatpush1.msra.mxu0 0.0
  %652 = vmatprep.subr.mxu0 0.0
  %653 = vmatpush1.msra.mxu0 0.0
  %654 = vmatprep.subr.mxu0 0.0
  %655 = vmatpush1.msra.mxu0 0.0
  %656 = vmatprep.subr.mxu0 0.0
  %657 = vmatpush1.msra.mxu0 0.0
  %658 = vmatprep.subr.mxu0 0.0
  %659 = vmatpush1.msra.mxu0 0.0
  %660 = vmatprep.subr.mxu0 0.0
  %661 = vmatpush1.msra.mxu0 0.0
  %662 = vmatprep.subr.mxu0 0.0
  %663 = vmatpush1.msra.mxu0 0.0
  %664 = vmatprep.subr.mxu0 0.0
  %665 = vmatpush1.msra.mxu0 0.0
  %666 = vmatprep.mubr.f32.mxu0 0.0
  %v667 = vand.u32 %v29, 4294901760
  %v668 = vsub.f32 %v29, %v667
  %v669 = vand.u32 %v668, 4294901760
  %v670 = vsub.f32 %v668, %v669
  %v671 = vand.u32 %v670, 4294901760
  %672 = vmatmul.mubr.f32.gmra.mrb[0].mxu0 %v671
  %v673 = vpop.f32.mrb[0].mxu0
  %v674 = vadd.f32 0.0, %v673
  %v675 = vpop.f32.mrb[0].mxu0
  %v676 = vadd.f32 0.0, %v675
  %677 = vmatprep.mubr.f32.mxu0 0.0
  %v678 = vand.u32 %v32, 4294901760
  %v679 = vsub.f32 %v32, %v678
  %v680 = vand.u32 %v679, 4294901760
  %v681 = vsub.f32 %v679, %v680
  %v682 = vand.u32 %v681, 4294901760
  %683 = vmatmul.mubr.f32.gmra.mrb[0].mxu0 %v682
  %v684 = vpop.f32.mrb[0].mxu0
  %v685 = vadd.f32 0.0, %v684
  %v686 = vpop.f32.mrb[0].mxu0
  %v687 = vadd.f32 0.0, %v686
  %688 = vmatprep.mubr.f32.mxu0 0.0
  %v689 = vand.u32 %v35, 4294901760
  %v690 = vsub.f32 %v35, %v689
  %v691 = vand.u32 %v690, 4294901760
  %v692 = vsub.f32 %v690, %v691
  %v693 = vand.u32 %v692, 4294901760
  %694 = vmatmul.mubr.f32.gmra.mrb[0].mxu0 %v693
  %v695 = vpop.f32.mrb[0].mxu0
  %v696 = vadd.f32 0.0, %v695
  %v697 = vpop.f32.mrb[0].mxu0
  %v698 = vadd.f32 0.0, %v697
  %699 = vdwg.mxu0
  %v700 = vand.u32 %v26, 4294901760
  %v701 = vsub.f32 %v26, %v700
  %v702 = vand.u32 %v701, 4294901760
  %v703 = vsub.f32 %v701, %v702
  %v704 = vand.u32 %v703, 4294901760
  %705 = vmatprep.subr.mxu0 %v704
  %v706 = vand.u32 %v25, 4294901760
  %v707 = vsub.f32 %v25, %v706
  %v708 = vand.u32 %v707, 4294901760
  %v709 = vsub.f32 %v707, %v708
  %v710 = vand.u32 %v709, 4294901760
  %711 = vmatpush1.msra.mxu0 %v710
  %712 = vmatprep.subr.mxu0 0.0
  %713 = vmatpush1.msra.mxu0 0.0
  %714 = vmatprep.subr.mxu0 0.0
  %715 = vmatpush1.msra.mxu0 0.0
  %716 = vmatprep.subr.mxu0 0.0
  %717 = vmatpush1.msra.mxu0 0.0
  %718 = vmatprep.subr.mxu0 0.0
  %719 = vmatpush1.msra.mxu0 0.0
  %720 = vmatprep.subr.mxu0 0.0
  %721 = vmatpush1.msra.mxu0 0.0
  %722 = vmatprep.subr.mxu0 0.0
  %723 = vmatpush1.msra.mxu0 0.0
  %724 = vmatprep.subr.mxu0 0.0
  %725 = vmatpush1.msra.mxu0 0.0
  %726 = vmatprep.subr.mxu0 0.0
  %727 = vmatpush1.msra.mxu0 0.0
  %728 = vmatprep.subr.mxu0 0.0
  %729 = vmatpush1.msra.mxu0 0.0
  %730 = vmatprep.subr.mxu0 0.0
  %731 = vmatpush1.msra.mxu0 0.0
  %732 = vmatprep.subr.mxu0 0.0
  %733 = vmatpush1.msra.mxu0 0.0
  %734 = vmatprep.subr.mxu0 0.0
  %735 = vmatpush1.msra.mxu0 0.0
  %736 = vmatprep.subr.mxu0 0.0
  %737 = vmatpush1.msra.mxu0 0.0
  %738 = vmatprep.subr.mxu0 0.0
  %739 = vmatpush1.msra.mxu0 0.0
  %740 = vmatprep.subr.mxu0 0.0
  %741 = vmatpush1.msra.mxu0 0.0
  %742 = vmatprep.subr.mxu0 0.0
  %743 = vmatpush1.msra.mxu0 0.0
  %744 = vmatprep.subr.mxu0 0.0
  %745 = vmatpush1.msra.mxu0 0.0
  %746 = vmatprep.subr.mxu0 0.0
  %747 = vmatpush1.msra.mxu0 0.0
  %748 = vmatprep.subr.mxu0 0.0
  %749 = vmatpush1.msra.mxu0 0.0
  %750 = vmatprep.subr.mxu0 0.0
  %751 = vmatpush1.msra.mxu0 0.0
  %752 = vmatprep.subr.mxu0 0.0
  %753 = vmatpush1.msra.mxu0 0.0
  %754 = vmatprep.subr.mxu0 0.0
  %755 = vmatpush1.msra.mxu0 0.0
  %756 = vmatprep.subr.mxu0 0.0
  %757 = vmatpush1.msra.mxu0 0.0
  %758 = vmatprep.subr.mxu0 0.0
  %759 = vmatpush1.msra.mxu0 0.0
  %760 = vmatprep.subr.mxu0 0.0
  %761 = vmatpush1.msra.mxu0 0.0
  %762 = vmatprep.subr.mxu0 0.0
  %763 = vmatpush1.msra.mxu0 0.0
  %764 = vmatprep.subr.mxu0 0.0
  %765 = vmatpush1.msra.mxu0 0.0
  %766 = vmatprep.subr.mxu0 0.0
  %767 = vmatpush1.msra.mxu0 0.0
  %768 = vmatprep.subr.mxu0 0.0
  %769 = vmatpush1.msra.mxu0 0.0
  %770 = vmatprep.subr.mxu0 0.0
  %771 = vmatpush1.msra.mxu0 0.0
  %772 = vmatprep.subr.mxu0 0.0
  %773 = vmatpush1.msra.mxu0 0.0
  %774 = vmatprep.mubr.f32.mxu0 0.0
  %v775 = vand.u32 %v29, 4294901760
  %776 = vmatmul.mubr.f32.gmra.mrb[0].mxu0 %v775
  %v777 = vpop.f32.mrb[0].mxu0
  %v778 = vadd.f32 %v674, %v777
  %v779 = vpop.f32.mrb[0].mxu0
  %v780 = vadd.f32 %v676, %v779
  %781 = vmatprep.mubr.f32.mxu0 0.0
  %v782 = vand.u32 %v32, 4294901760
  %783 = vmatmul.mubr.f32.gmra.mrb[0].mxu0 %v782
  %v784 = vpop.f32.mrb[0].mxu0
  %v785 = vadd.f32 %v685, %v784
  %v786 = vpop.f32.mrb[0].mxu0
  %v787 = vadd.f32 %v687, %v786
  %788 = vmatprep.mubr.f32.mxu0 0.0
  %v789 = vand.u32 %v35, 4294901760
  %790 = vmatmul.mubr.f32.gmra.mrb[0].mxu0 %v789
  %v791 = vpop.f32.mrb[0].mxu0
  %v792 = vadd.f32 %v696, %v791
  %v793 = vpop.f32.mrb[0].mxu0
  %v794 = vadd.f32 %v698, %v793
  %795 = vdwg.mxu0
  %v796 = vand.u32 %v26, 4294901760
  %v797 = vsub.f32 %v26, %v796
  %798 = vmatprep.subr.mxu0 %v797
  %v799 = vand.u32 %v25, 4294901760
  %v800 = vsub.f32 %v25, %v799
  %801 = vmatpush1.msra.mxu0 %v800
  %802 = vmatprep.subr.mxu0 0.0
  %803 = vmatpush1.msra.mxu0 0.0
  %804 = vmatprep.subr.mxu0 0.0
  %805 = vmatpush1.msra.mxu0 0.0
  %806 = vmatprep.subr.mxu0 0.0
  %807 = vmatpush1.msra.mxu0 0.0
  %808 = vmatprep.subr.mxu0 0.0
  %809 = vmatpush1.msra.mxu0 0.0
  %810 = vmatprep.subr.mxu0 0.0
  %811 = vmatpush1.msra.mxu0 0.0
  %812 = vmatprep.subr.mxu0 0.0
  %813 = vmatpush1.msra.mxu0 0.0
  %814 = vmatprep.subr.mxu0 0.0
  %815 = vmatpush1.msra.mxu0 0.0
  %816 = vmatprep.subr.mxu0 0.0
  %817 = vmatpush1.msra.mxu0 0.0
  %818 = vmatprep.subr.mxu0 0.0
  %819 = vmatpush1.msra.mxu0 0.0
  %820 = vmatprep.subr.mxu0 0.0
  %821 = vmatpush1.msra.mxu0 0.0
  %822 = vmatprep.subr.mxu0 0.0
  %823 = vmatpush1.msra.mxu0 0.0
  %824 = vmatprep.subr.mxu0 0.0
  %825 = vmatpush1.msra.mxu0 0.0
  %826 = vmatprep.subr.mxu0 0.0
  %827 = vmatpush1.msra.mxu0 0.0
  %828 = vmatprep.subr.mxu0 0.0
  %829 = vmatpush1.msra.mxu0 0.0
  %830 = vmatprep.subr.mxu0 0.0
  %831 = vmatpush1.msra.mxu0 0.0
  %832 = vmatprep.subr.mxu0 0.0
  %833 = vmatpush1.msra.mxu0 0.0
  %834 = vmatprep.subr.mxu0 0.0
  %835 = vmatpush1.msra.mxu0 0.0
  %836 = vmatprep.subr.mxu0 0.0
  %837 = vmatpush1.msra.mxu0 0.0
  %838 = vmatprep.subr.mxu0 0.0
  %839 = vmatpush1.msra.mxu0 0.0
  %840 = vmatprep.subr.mxu0 0.0
  %841 = vmatpush1.msra.mxu0 0.0
  %842 = vmatprep.subr.mxu0 0.0
  %843 = vmatpush1.msra.mxu0 0.0
  %844 = vmatprep.subr.mxu0 0.0
  %845 = vmatpush1.msra.mxu0 0.0
  %846 = vmatprep.subr.mxu0 0.0
  %847 = vmatpush1.msra.mxu0 0.0
  %848 = vmatprep.subr.mxu0 0.0
  %849 = vmatpush1.msra.mxu0 0.0
  %850 = vmatprep.subr.mxu0 0.0
  %851 = vmatpush1.msra.mxu0 0.0
  %852 = vmatprep.subr.mxu0 0.0
  %853 = vmatpush1.msra.mxu0 0.0
  %854 = vmatprep.subr.mxu0 0.0
  %855 = vmatpush1.msra.mxu0 0.0
  %856 = vmatprep.subr.mxu0 0.0
  %857 = vmatpush1.msra.mxu0 0.0
  %858 = vmatprep.subr.mxu0 0.0
  %859 = vmatpush1.msra.mxu0 0.0
  %860 = vmatprep.subr.mxu0 0.0
  %861 = vmatpush1.msra.mxu0 0.0
  %862 = vmatprep.subr.mxu0 0.0
  %863 = vmatpush1.msra.mxu0 0.0
  %864 = vmatprep.mubr.f32.mxu0 0.0
  %v865 = vand.u32 %v29, 4294901760
  %v866 = vsub.f32 %v29, %v865
  %867 = vmatmul.mubr.f32.gmra.mrb[0].mxu0 %v866
  %v868 = vpop.f32.mrb[0].mxu0
  %v869 = vadd.f32 %v778, %v868
  %v870 = vpop.f32.mrb[0].mxu0
  %v871 = vadd.f32 %v780, %v870
  %872 = vmatprep.mubr.f32.mxu0 0.0
  %v873 = vand.u32 %v32, 4294901760
  %v874 = vsub.f32 %v32, %v873
  %875 = vmatmul.mubr.f32.gmra.mrb[0].mxu0 %v874
  %v876 = vpop.f32.mrb[0].mxu0
  %v877 = vadd.f32 %v785, %v876
  %v878 = vpop.f32.mrb[0].mxu0
  %v879 = vadd.f32 %v787, %v878
  %880 = vmatprep.mubr.f32.mxu0 0.0
  %v881 = vand.u32 %v35, 4294901760
  %v882 = vsub.f32 %v35, %v881
  %883 = vmatmul.mubr.f32.gmra.mrb[0].mxu0 %v882
  %v884 = vpop.f32.mrb[0].mxu0
  %v885 = vadd.f32 %v792, %v884
  %v886 = vpop.f32.mrb[0].mxu0
  %v887 = vadd.f32 %v794, %v886
  %888 = vdwg.mxu0
  %v889 = vand.u32 %v26, 4294901760
  %890 = vmatprep.subr.mxu0 %v889
  %v891 = vand.u32 %v25, 4294901760
  %892 = vmatpush1.msra.mxu0 %v891
  %893 = vmatprep.subr.mxu0 0.0
  %894 = vmatpush1.msra.mxu0 0.0
  %895 = vmatprep.subr.mxu0 0.0
  %896 = vmatpush1.msra.mxu0 0.0
  %897 = vmatprep.subr.mxu0 0.0
  %898 = vmatpush1.msra.mxu0 0.0
  %899 = vmatprep.subr.mxu0 0.0
  %900 = vmatpush1.msra.mxu0 0.0
  %901 = vmatprep.subr.mxu0 0.0
  %902 = vmatpush1.msra.mxu0 0.0
  %903 = vmatprep.subr.mxu0 0.0
  %904 = vmatpush1.msra.mxu0 0.0
  %905 = vmatprep.subr.mxu0 0.0
  %906 = vmatpush1.msra.mxu0 0.0
  %907 = vmatprep.subr.mxu0 0.0
  %908 = vmatpush1.msra.mxu0 0.0
  %909 = vmatprep.subr.mxu0 0.0
  %910 = vmatpush1.msra.mxu0 0.0
  %911 = vmatprep.subr.mxu0 0.0
  %912 = vmatpush1.msra.mxu0 0.0
  %913 = vmatprep.subr.mxu0 0.0
  %914 = vmatpush1.msra.mxu0 0.0
  %915 = vmatprep.subr.mxu0 0.0
  %916 = vmatpush1.msra.mxu0 0.0
  %917 = vmatprep.subr.mxu0 0.0
  %918 = vmatpush1.msra.mxu0 0.0
  %919 = vmatprep.subr.mxu0 0.0
  %920 = vmatpush1.msra.mxu0 0.0
  %921 = vmatprep.subr.mxu0 0.0
  %922 = vmatpush1.msra.mxu0 0.0
  %923 = vmatprep.subr.mxu0 0.0
  %924 = vmatpush1.msra.mxu0 0.0
  %925 = vmatprep.subr.mxu0 0.0
  %926 = vmatpush1.msra.mxu0 0.0
  %927 = vmatprep.subr.mxu0 0.0
  %928 = vmatpush1.msra.mxu0 0.0
  %929 = vmatprep.subr.mxu0 0.0
  %930 = vmatpush1.msra.mxu0 0.0
  %931 = vmatprep.subr.mxu0 0.0
  %932 = vmatpush1.msra.mxu0 0.0
  %933 = vmatprep.subr.mxu0 0.0
  %934 = vmatpush1.msra.mxu0 0.0
  %935 = vmatprep.subr.mxu0 0.0
  %936 = vmatpush1.msra.mxu0 0.0
  %937 = vmatprep.subr.mxu0 0.0
  %938 = vmatpush1.msra.mxu0 0.0
  %939 = vmatprep.subr.mxu0 0.0
  %940 = vmatpush1.msra.mxu0 0.0
  %941 = vmatprep.subr.mxu0 0.0
  %942 = vmatpush1.msra.mxu0 0.0
  %943 = vmatprep.subr.mxu0 0.0
  %944 = vmatpush1.msra.mxu0 0.0
  %945 = vmatprep.subr.mxu0 0.0
  %946 = vmatpush1.msra.mxu0 0.0
  %947 = vmatprep.subr.mxu0 0.0
  %948 = vmatpush1.msra.mxu0 0.0
  %949 = vmatprep.subr.mxu0 0.0
  %950 = vmatpush1.msra.mxu0 0.0
  %951 = vmatprep.subr.mxu0 0.0
  %952 = vmatpush1.msra.mxu0 0.0
  %953 = vmatprep.subr.mxu0 0.0
  %954 = vmatpush1.msra.mxu0 0.0
  %955 = vmatprep.mubr.f32.mxu0 0.0
  %v956 = vand.u32 %v29, 4294901760
  %v957 = vsub.f32 %v29, %v956
  %v958 = vand.u32 %v957, 4294901760
  %959 = vmatmul.mubr.f32.gmra.mrb[0].mxu0 %v958
  %v960 = vpop.f32.mrb[0].mxu0
  %v961 = vadd.f32 %v869, %v960
  %v962 = vpop.f32.mrb[0].mxu0
  %v963 = vadd.f32 %v871, %v962
  %964 = vmatprep.mubr.f32.mxu0 0.0
  %v965 = vand.u32 %v32, 4294901760
  %v966 = vsub.f32 %v32, %v965
  %v967 = vand.u32 %v966, 4294901760
  %968 = vmatmul.mubr.f32.gmra.mrb[0].mxu0 %v967
  %v969 = vpop.f32.mrb[0].mxu0
  %v970 = vadd.f32 %v877, %v969
  %v971 = vpop.f32.mrb[0].mxu0
  %v972 = vadd.f32 %v879, %v971
  %973 = vmatprep.mubr.f32.mxu0 0.0
  %v974 = vand.u32 %v35, 4294901760
  %v975 = vsub.f32 %v35, %v974
  %v976 = vand.u32 %v975, 4294901760
  %977 = vmatmul.mubr.f32.gmra.mrb[0].mxu0 %v976
  %v978 = vpop.f32.mrb[0].mxu0
  %v979 = vadd.f32 %v885, %v978
  %v980 = vpop.f32.mrb[0].mxu0
  %v981 = vadd.f32 %v887, %v980
  %982 = vdwg.mxu0
  %v983 = vand.u32 %v26, 4294901760
  %v984 = vsub.f32 %v26, %v983
  %v985 = vand.u32 %v984, 4294901760
  %986 = vmatprep.subr.mxu0 %v985
  %v987 = vand.u32 %v25, 4294901760
  %v988 = vsub.f32 %v25, %v987
  %v989 = vand.u32 %v988, 4294901760
  %990 = vmatpush1.msra.mxu0 %v989
  %991 = vmatprep.subr.mxu0 0.0
  %992 = vmatpush1.msra.mxu0 0.0
  %993 = vmatprep.subr.mxu0 0.0
  %994 = vmatpush1.msra.mxu0 0.0
  %995 = vmatprep.subr.mxu0 0.0
  %996 = vmatpush1.msra.mxu0 0.0
  %997 = vmatprep.subr.mxu0 0.0
  %998 = vmatpush1.msra.mxu0 0.0
  %999 = vmatprep.subr.mxu0 0.0
  %1000 = vmatpush1.msra.mxu0 0.0
  %1001 = vmatprep.subr.mxu0 0.0
  %1002 = vmatpush1.msra.mxu0 0.0
  %1003 = vmatprep.subr.mxu0 0.0
  %1004 = vmatpush1.msra.mxu0 0.0
  %1005 = vmatprep.subr.mxu0 0.0
  %1006 = vmatpush1.msra.mxu0 0.0
  %1007 = vmatprep.subr.mxu0 0.0
  %1008 = vmatpush1.msra.mxu0 0.0
  %1009 = vmatprep.subr.mxu0 0.0
  %1010 = vmatpush1.msra.mxu0 0.0
  %1011 = vmatprep.subr.mxu0 0.0
  %1012 = vmatpush1.msra.mxu0 0.0
  %1013 = vmatprep.subr.mxu0 0.0
  %1014 = vmatpush1.msra.mxu0 0.0
  %1015 = vmatprep.subr.mxu0 0.0
  %1016 = vmatpush1.msra.mxu0 0.0
  %1017 = vmatprep.subr.mxu0 0.0
  %1018 = vmatpush1.msra.mxu0 0.0
  %1019 = vmatprep.subr.mxu0 0.0
  %1020 = vmatpush1.msra.mxu0 0.0
  %1021 = vmatprep.subr.mxu0 0.0
  %1022 = vmatpush1.msra.mxu0 0.0
  %1023 = vmatprep.subr.mxu0 0.0
  %1024 = vmatpush1.msra.mxu0 0.0
  %1025 = vmatprep.subr.mxu0 0.0
  %1026 = vmatpush1.msra.mxu0 0.0
  %1027 = vmatprep.subr.mxu0 0.0
  %1028 = vmatpush1.msra.mxu0 0.0
  %1029 = vmatprep.subr.mxu0 0.0
  %1030 = vmatpush1.msra.mxu0 0.0
  %1031 = vmatprep.subr.mxu0 0.0
  %1032 = vmatpush1.msra.mxu0 0.0
  %1033 = vmatprep.subr.mxu0 0.0
  %1034 = vmatpush1.msra.mxu0 0.0
  %1035 = vmatprep.subr.mxu0 0.0
  %1036 = vmatpush1.msra.mxu0 0.0
  %1037 = vmatprep.subr.mxu0 0.0
  %1038 = vmatpush1.msra.mxu0 0.0
  %1039 = vmatprep.subr.mxu0 0.0
  %1040 = vmatpush1.msra.mxu0 0.0
  %1041 = vmatprep.subr.mxu0 0.0
  %1042 = vmatpush1.msra.mxu0 0.0
  %1043 = vmatprep.subr.mxu0 0.0
  %1044 = vmatpush1.msra.mxu0 0.0
  %1045 = vmatprep.subr.mxu0 0.0
  %1046 = vmatpush1.msra.mxu0 0.0
  %1047 = vmatprep.subr.mxu0 0.0
  %1048 = vmatpush1.msra.mxu0 0.0
  %1049 = vmatprep.subr.mxu0 0.0
  %1050 = vmatpush1.msra.mxu0 0.0
  %1051 = vmatprep.subr.mxu0 0.0
  %1052 = vmatpush1.msra.mxu0 0.0
  %1053 = vmatprep.mubr.f32.mxu0 0.0
  %v1054 = vand.u32 %v29, 4294901760
  %1055 = vmatmul.mubr.f32.gmra.mrb[0].mxu0 %v1054
  %v1056 = vpop.f32.mrb[0].mxu0
  %v1057 = vadd.f32 %v961, %v1056
  %v1058 = vpop.f32.mrb[0].mxu0
  %v1059 = vadd.f32 %v963, %v1058
  %1060 = vmatprep.mubr.f32.mxu0 0.0
  %v1061 = vand.u32 %v32, 4294901760
  %1062 = vmatmul.mubr.f32.gmra.mrb[0].mxu0 %v1061
  %v1063 = vpop.f32.mrb[0].mxu0
  %v1064 = vadd.f32 %v970, %v1063
  %v1065 = vpop.f32.mrb[0].mxu0
  %v1066 = vadd.f32 %v972, %v1065
  %1067 = vmatprep.mubr.f32.mxu0 0.0
  %v1068 = vand.u32 %v35, 4294901760
  %1069 = vmatmul.mubr.f32.gmra.mrb[0].mxu0 %v1068
  %v1070 = vpop.f32.mrb[0].mxu0
  %v1071 = vadd.f32 %v979, %v1070
  %v1072 = vpop.f32.mrb[0].mxu0
  %v1073 = vadd.f32 %v981, %v1072
  %1074 = vdwg.mxu0
  %v1075 = vand.u32 %v26, 4294901760
  %1076 = vmatprep.subr.mxu0 %v1075
  %v1077 = vand.u32 %v25, 4294901760
  %1078 = vmatpush1.msra.mxu0 %v1077
  %1079 = vmatprep.subr.mxu0 0.0
  %1080 = vmatpush1.msra.mxu0 0.0
  %1081 = vmatprep.subr.mxu0 0.0
  %1082 = vmatpush1.msra.mxu0 0.0
  %1083 = vmatprep.subr.mxu0 0.0
  %1084 = vmatpush1.msra.mxu0 0.0
  %1085 = vmatprep.subr.mxu0 0.0
  %1086 = vmatpush1.msra.mxu0 0.0
  %1087 = vmatprep.subr.mxu0 0.0
  %1088 = vmatpush1.msra.mxu0 0.0
  %1089 = vmatprep.subr.mxu0 0.0
  %1090 = vmatpush1.msra.mxu0 0.0
  %1091 = vmatprep.subr.mxu0 0.0
  %1092 = vmatpush1.msra.mxu0 0.0
  %1093 = vmatprep.subr.mxu0 0.0
  %1094 = vmatpush1.msra.mxu0 0.0
  %1095 = vmatprep.subr.mxu0 0.0
  %1096 = vmatpush1.msra.mxu0 0.0
  %1097 = vmatprep.subr.mxu0 0.0
  %1098 = vmatpush1.msra.mxu0 0.0
  %1099 = vmatprep.subr.mxu0 0.0
  %1100 = vmatpush1.msra.mxu0 0.0
  %1101 = vmatprep.subr.mxu0 0.0
  %1102 = vmatpush1.msra.mxu0 0.0
  %1103 = vmatprep.subr.mxu0 0.0
  %1104 = vmatpush1.msra.mxu0 0.0
  %1105 = vmatprep.subr.mxu0 0.0
  %1106 = vmatpush1.msra.mxu0 0.0
  %1107 = vmatprep.subr.mxu0 0.0
  %1108 = vmatpush1.msra.mxu0 0.0
  %1109 = vmatprep.subr.mxu0 0.0
  %1110 = vmatpush1.msra.mxu0 0.0
  %1111 = vmatprep.subr.mxu0 0.0
  %1112 = vmatpush1.msra.mxu0 0.0
  %1113 = vmatprep.subr.mxu0 0.0
  %1114 = vmatpush1.msra.mxu0 0.0
  %1115 = vmatprep.subr.mxu0 0.0
  %1116 = vmatpush1.msra.mxu0 0.0
  %1117 = vmatprep.subr.mxu0 0.0
  %1118 = vmatpush1.msra.mxu0 0.0
  %1119 = vmatprep.subr.mxu0 0.0
  %1120 = vmatpush1.msra.mxu0 0.0
  %1121 = vmatprep.subr.mxu0 0.0
  %1122 = vmatpush1.msra.mxu0 0.0
  %1123 = vmatprep.subr.mxu0 0.0
  %1124 = vmatpush1.msra.mxu0 0.0
  %1125 = vmatprep.subr.mxu0 0.0
  %1126 = vmatpush1.msra.mxu0 0.0
  %1127 = vmatprep.subr.mxu0 0.0
  %1128 = vmatpush1.msra.mxu0 0.0
  %1129 = vmatprep.subr.mxu0 0.0
  %1130 = vmatpush1.msra.mxu0 0.0
  %1131 = vmatprep.subr.mxu0 0.0
  %1132 = vmatpush1.msra.mxu0 0.0
  %1133 = vmatprep.subr.mxu0 0.0
  %1134 = vmatpush1.msra.mxu0 0.0
  %1135 = vmatprep.subr.mxu0 0.0
  %1136 = vmatpush1.msra.mxu0 0.0
  %1137 = vmatprep.subr.mxu0 0.0
  %1138 = vmatpush1.msra.mxu0 0.0
  %1139 = vmatprep.subr.mxu0 0.0
  %1140 = vmatpush1.msra.mxu0 0.0
  %1141 = vmatprep.mubr.f32.mxu0 0.0
  %v1142 = vand.u32 %v29, 4294901760
  %1143 = vmatmul.mubr.f32.gmra.mrb[0].mxu0 %v1142
  %v1144 = vpop.f32.mrb[0].mxu0
  %v1145 = vadd.f32 %v1057, %v1144
  %v1146 = vpop.f32.mrb[0].mxu0
  %v1147 = vadd.f32 %v1059, %v1146
  %1148 = vmatprep.mubr.f32.mxu0 0.0
  %v1149 = vand.u32 %v32, 4294901760
  %1150 = vmatmul.mubr.f32.gmra.mrb[0].mxu0 %v1149
  %v1151 = vpop.f32.mrb[0].mxu0
  %v1152 = vadd.f32 %v1064, %v1151
  %v1153 = vpop.f32.mrb[0].mxu0
  %v1154 = vadd.f32 %v1066, %v1153
  %1155 = vmatprep.mubr.f32.mxu0 0.0
  %v1156 = vand.u32 %v35, 4294901760
  %1157 = vmatmul.mubr.f32.gmra.mrb[0].mxu0 %v1156
  %v1158 = vpop.f32.mrb[0].mxu0
  %v1159 = vadd.f32 %v1071, %v1158
  %v1160 = vpop.f32.mrb[0].mxu0
  %v1161 = vadd.f32 %v1073, %v1160
  %1162 = vdwg.mxu0
  %v1163 = vld [vmem:[%s4] sm:$0xff]
  %v1164 = vld [vmem:[%s4 + $0x8] sm:$0xff]
  %v1165 = vld [vmem:[%s4 + $0x10] sm:$0xff]
  %v1166 = vadd.f32 %v582, %v584
  %v1167 = vadd.f32 %v1166, %v1145
  %v1168 = vadd.f32 %v1167, %v1147
  %1169 = vadd.xlane.f32.xlu0 %v1168
  %v1170 = vpop.xlane.xlu0 %1169
  %v1171 = vadd.f32 %v589, %v591
  %v1172 = vadd.f32 %v1171, %v1152
  %v1173 = vadd.f32 %v1172, %v1154
  %1174 = vadd.xlane.f32.xlu0 %v1173
  %v1175 = vpop.xlane.xlu0 %1174
  %v1176 = vadd.f32 %v596, %v598
  %v1177 = vadd.f32 %v1176, %v1159
  %v1178 = vadd.f32 %v1177, %v1161
  %1179 = vadd.xlane.f32.xlu0 %v1178
  %v1180 = vpop.xlane.xlu0 %1179
  %v1181 = vmul.f32 %v582, %v582
  %v1182 = vmul.f32 %v584, %v584
  %v1183 = vmul.f32 %v1145, %v1145
  %v1184 = vmul.f32 %v1147, %v1147
  %v1185 = vmul.f32 %v589, %v589
  %v1186 = vmul.f32 %v591, %v591
  %v1187 = vmul.f32 %v1152, %v1152
  %v1188 = vmul.f32 %v1154, %v1154
  %v1189 = vmul.f32 %v596, %v596
  %v1190 = vmul.f32 %v598, %v598
  %v1191 = vmul.f32 %v1159, %v1159
  %v1192 = vmul.f32 %v1161, %v1161
  %v1193 = vadd.f32 %v1181, %v1182
  %v1194 = vadd.f32 %v1193, %v1183
  %v1195 = vadd.f32 %v1194, %v1184
  %1196 = vadd.xlane.f32.xlu0 %v1195
  %v1197 = vpop.xlane.xlu0 %1196
  %v1198 = vadd.f32 %v1185, %v1186
  %v1199 = vadd.f32 %v1198, %v1187
  %v1200 = vadd.f32 %v1199, %v1188
  %1201 = vadd.xlane.f32.xlu0 %v1200
  %v1202 = vpop.xlane.xlu0 %1201
  %v1203 = vadd.f32 %v1189, %v1190
  %v1204 = vadd.f32 %v1203, %v1191
  %v1205 = vadd.f32 %v1204, %v1192
  %1206 = vadd.xlane.f32.xlu0 %v1205
  %v1207 = vpop.xlane.xlu0 %1206
  %v1208 = vmul.f32 %v1170, 0.001953125
  %v1209 = vmul.f32 %v1175, 0.001953125
  %v1210 = vmul.f32 %v1180, 0.001953125
  %v1211 = vmul.f32 %v1197, 0.001953125
  %v1212 = vmul.f32 %v1202, 0.001953125
  %v1213 = vmul.f32 %v1207, 0.001953125
  %v1214 = vmul.f32 %v1208, %v1208
  %v1215 = vmul.f32 %v1209, %v1209
  %v1216 = vmul.f32 %v1210, %v1210
  %v1217 = vsub.f32 %v1211, %v1214
  %v1218 = vsub.f32 %v1212, %v1215
  %v1219 = vsub.f32 %v1213, %v1216
  %v1220 = vadd.f32 %v1217, 1e-05
  %v1221 = vadd.f32 %v1218, 1e-05
  %v1222 = vadd.f32 %v1219, 1e-05
  %v1223 = vrsqrt.pop %v1220
  %v1224 = vrsqrt.pop %v1221
  %v1225 = vrsqrt.pop %v1222
  %v1226 = vmul.f32 %v1163, %v1223
  %v1227 = vmul.f32 %v1164, %v1224
  %v1228 = vmul.f32 %v1165, %v1225
  %v1229 = vmul.f32 %v1208, %v1226
  %v1230 = vmul.f32 %v1209, %v1227
  %v1231 = vmul.f32 %v1210, %v1228
  %1235 = vrot.lane.b32.xlu0 %v1229, 1
  %v1236 = vpop.permute.xlu0 %1235
  %1237 = vrot.lane.b32.xlu0 %v1230, 1
  %v1238 = vpop.permute.xlu0 %1237
  %1239 = vrot.lane.b32.xlu0 %v1231, 1
  %v1240 = vpop.permute.xlu0 %1239
  %v1244 = vsub.f32 %v1163, %v1236
  %v1245 = vsub.f32 %v1164, %v1238
  %v1246 = vsub.f32 %v1165, %v1240
  %1248 = vset.pattern.permute.xlu0 0
  %1249 = vperm.xlu0 %1248, %v1226
  %v1250 = vpop.permute.xlu0 %1249
  %1253 = vset.pattern.permute.xlu0 0
  %1254 = vperm.xlu0 %1253, %v1227
  %v1255 = vpop.permute.xlu0 %1254
  %1258 = vset.pattern.permute.xlu0 0
  %1259 = vperm.xlu0 %1258, %v1228
  %v1260 = vpop.permute.xlu0 %1259
  %v1262 = vmul.f32 %v582, %v1250
  %v1263 = vmul.f32 %v584, %v1250
  %v1264 = vmul.f32 %v1145, %v1250
  %v1265 = vmul.f32 %v1147, %v1250
  %v1266 = vmul.f32 %v589, %v1255
  %v1267 = vmul.f32 %v591, %v1255
  %v1268 = vmul.f32 %v1152, %v1255
  %v1269 = vmul.f32 %v1154, %v1255
  %v1270 = vmul.f32 %v596, %v1260
  %v1271 = vmul.f32 %v598, %v1260
  %v1272 = vmul.f32 %v1159, %v1260
  %v1273 = vmul.f32 %v1161, %v1260
  %1275 = vset.pattern.permute.xlu0 1
  %1276 = vperm.xlu0 %1275, %v1244
  %v1277 = vpop.permute.xlu0 %1276
  %1280 = vset.pattern.permute.xlu0 1
  %1281 = vperm.xlu0 %1280, %v1245
  %v1282 = vpop.permute.xlu0 %1281
  %1285 = vset.pattern.permute.xlu0 1
  %1286 = vperm.xlu0 %1285, %v1246
  %v1287 = vpop.permute.xlu0 %1286
  %v1289 = vadd.f32 %v1262, %v1277
  %v1290 = vadd.f32 %v1263, %v1277
  %v1291 = vadd.f32 %v1264, %v1277
  %v1292 = vadd.f32 %v1265, %v1277
  %v1293 = vadd.f32 %v1266, %v1282
  %v1294 = vadd.f32 %v1267, %v1282
  %v1295 = vadd.f32 %v1268, %v1282
  %v1296 = vadd.f32 %v1269, %v1282
  %v1297 = vadd.f32 %v1270, %v1287
  %v1298 = vadd.f32 %v1271, %v1287
  %v1299 = vadd.f32 %v1272, %v1287
  %v1300 = vadd.f32 %v1273, %v1287
  %v1301 = vmax.f32 %v1289, 0.0
  %v1302 = vmax.f32 %v1290, 0.0
  %v1303 = vmax.f32 %v1291, 0.0
  %v1304 = vmax.f32 %v1292, 0.0
  %v1305 = vmax.f32 %v1293, 0.0
  %v1306 = vmax.f32 %v1294, 0.0
  %v1307 = vmax.f32 %v1295, 0.0
  %v1308 = vmax.f32 %v1296, 0.0
  %v1309 = vmax.f32 %v1297, 0.0
  %v1310 = vmax.f32 %v1298, 0.0
  %v1311 = vmax.f32 %v1299, 0.0
  %v1312 = vmax.f32 %v1300, 0.0
  %v1313 = vmin.f32 %v1301, 6.0
  %v1314 = vmin.f32 %v1302, 6.0
  %v1315 = vmin.f32 %v1303, 6.0
  %v1316 = vmin.f32 %v1304, 6.0
  %v1317 = vmin.f32 %v1305, 6.0
  %v1318 = vmin.f32 %v1306, 6.0
  %v1319 = vmin.f32 %v1307, 6.0
  %v1320 = vmin.f32 %v1308, 6.0
  %v1321 = vmin.f32 %v1309, 6.0
  %v1322 = vmin.f32 %v1310, 6.0
  %v1323 = vmin.f32 %v1311, 6.0
  %v1324 = vmin.f32 %v1312, 6.0
  %1325 = vset.pattern.permute.xlu0 12
  %1326 = vperm.xlu0 %1325, %v20
  %v1327 = vpop.permute.xlu0 %1326
  %1329 = vset.pattern.permute.xlu0 12
  %1330 = vperm.xlu0 %1329, %v21
  %v1331 = vpop.permute.xlu0 %1330
  %1333 = vset.pattern.permute.xlu0 12
  %1334 = vperm.xlu0 %1333, %v22
  %v1335 = vpop.permute.xlu0 %1334
  %v1337 = vmul.f32 %v1313, %v1327
  %v1338 = vmul.f32 %v1314, %v1327
  %v1339 = vmul.f32 %v1315, %v1327
  %v1340 = vmul.f32 %v1316, %v1327
  %v1341 = vmul.f32 %v1317, %v1331
  %v1342 = vmul.f32 %v1318, %v1331
  %v1343 = vmul.f32 %v1319, %v1331
  %v1344 = vmul.f32 %v1320, %v1331
  %v1345 = vmul.f32 %v1321, %v1335
  %v1346 = vmul.f32 %v1322, %v1335
  %v1347 = vmul.f32 %v1323, %v1335
  %v1348 = vmul.f32 %v1324, %v1335
  %1349 = vrot.lane.b32.xlu0 %v1313, 17
  %v1350 = vpop.permute.xlu0 %1349
  %1351 = vrot.lane.b32.xlu0 %v1317, 17
  %v1352 = vpop.permute.xlu0 %1351
  %1353 = vrot.lane.b32.xlu0 %v1321, 17
  %v1354 = vpop.permute.xlu0 %1353
  %1355 = vrot.lane.b32.xlu0 %v1314, 17
  %v1356 = vpop.permute.xlu0 %1355
  %1357 = vrot.lane.b32.xlu0 %v1318, 17
  %v1358 = vpop.permute.xlu0 %1357
  %1359 = vrot.lane.b32.xlu0 %v1322, 17
  %v1360 = vpop.permute.xlu0 %1359
  %1361 = vrot.lane.b32.xlu0 %v1315, 17
  %v1362 = vpop.permute.xlu0 %1361
  %1363 = vrot.lane.b32.xlu0 %v1319, 17
  %v1364 = vpop.permute.xlu0 %1363
  %1365 = vrot.lane.b32.xlu0 %v1323, 17
  %v1366 = vpop.permute.xlu0 %1365
  %1367 = vrot.lane.b32.xlu0 %v1316, 17
  %v1368 = vpop.permute.xlu0 %1367
  %1369 = vrot.lane.b32.xlu0 %v1320, 17
  %v1370 = vpop.permute.xlu0 %1369
  %1371 = vrot.lane.b32.xlu0 %v1324, 17
  %v1372 = vpop.permute.xlu0 %1371
  %v1373 = vlaneseq
  %v1374 = vand.u32 %v1373, 127
  %vm1375 = vcmp.lt.s32.totalorder %v1374, 17
  %v1376 = vsel %vm1375, %v1362, %v1368
  %v1377 = vsel %vm1375, %v1364, %v1370
  %v1378 = vsel %vm1375, %v1366, %v1372
  %v1379 = vsel %vm1375, %v1356, %v1362
  %v1380 = vsel %vm1375, %v1358, %v1364
  %v1381 = vsel %vm1375, %v1360, %v1366
  %v1382 = vsel %vm1375, %v1350, %v1356
  %v1383 = vsel %vm1375, %v1352, %v1358
  %v1384 = vsel %vm1375, %v1354, %v1360
  %v1385 = vsel %vm1375, %v1368, %v1350
  %v1386 = vsel %vm1375, %v1370, %v1352
  %v1387 = vsel %vm1375, %v1372, %v1354
  %v1388 = vld [vmem:[%s3] ss:$8 sm:$0xf]
  %v1390 = vlaneseq
  %v1391 = vshrl.u32 %v1390, 7
  %v1392 = vsub.s32 0, %v1391
  %v1393 = vrot.slane %v1388, %v1392
  %v1394 = vlaneseq
  %v1395 = vshrl.u32 %v1394, 7
  %v1396 = vsub.s32 1, %v1395
  %v1397 = vrot.slane %v1388, %v1396
  %v1398 = vlaneseq
  %v1399 = vshrl.u32 %v1398, 7
  %v1400 = vsub.s32 2, %v1399
  %v1401 = vrot.slane %v1388, %v1400
  %v1402 = vlaneseq
  %v1403 = vshrl.u32 %v1402, 7
  %v1404 = vsub.s32 3, %v1403
  %v1405 = vrot.slane %v1388, %v1404
  %v1410 = vmul.f32 %v1385, %v1393
  %v1411 = vmul.f32 %v1382, %v1397
  %v1412 = vmul.f32 %v1379, %v1401
  %v1413 = vmul.f32 %v1376, %v1405
  %v1414 = vmul.f32 %v1386, %v1393
  %v1415 = vmul.f32 %v1383, %v1397
  %v1416 = vmul.f32 %v1380, %v1401
  %v1417 = vmul.f32 %v1377, %v1405
  %v1418 = vmul.f32 %v1387, %v1393
  %v1419 = vmul.f32 %v1384, %v1397
  %v1420 = vmul.f32 %v1381, %v1401
  %v1421 = vmul.f32 %v1378, %v1405
  %1422 = vset.pattern.permute.xlu0 8
  %1423 = vperm.xlu0 %1422, %v20
  %v1424 = vpop.permute.xlu0 %1423
  %1426 = vset.pattern.permute.xlu0 8
  %1427 = vperm.xlu0 %1426, %v21
  %v1428 = vpop.permute.xlu0 %1427
  %1430 = vset.pattern.permute.xlu0 8
  %1431 = vperm.xlu0 %1430, %v22
  %v1432 = vpop.permute.xlu0 %1431
  %v1434 = vmul.f32 %v1410, %v1424
  %v1435 = vmul.f32 %v1411, %v1424
  %v1436 = vmul.f32 %v1412, %v1424
  %v1437 = vmul.f32 %v1413, %v1424
  %v1438 = vmul.f32 %v1414, %v1428
  %v1439 = vmul.f32 %v1415, %v1428
  %v1440 = vmul.f32 %v1416, %v1428
  %v1441 = vmul.f32 %v1417, %v1428
  %v1442 = vmul.f32 %v1418, %v1432
  %v1443 = vmul.f32 %v1419, %v1432
  %v1444 = vmul.f32 %v1420, %v1432
  %v1445 = vmul.f32 %v1421, %v1432
  %1446 = vrot.lane.b32.xlu0 %v1313, 16
  %v1447 = vpop.permute.xlu0 %1446
  %1448 = vrot.lane.b32.xlu0 %v1317, 16
  %v1449 = vpop.permute.xlu0 %1448
  %1450 = vrot.lane.b32.xlu0 %v1321, 16
  %v1451 = vpop.permute.xlu0 %1450
  %1452 = vrot.lane.b32.xlu0 %v1314, 16
  %v1453 = vpop.permute.xlu0 %1452
  %1454 = vrot.lane.b32.xlu0 %v1318, 16
  %v1455 = vpop.permute.xlu0 %1454
  %1456 = vrot.lane.b32.xlu0 %v1322, 16
  %v1457 = vpop.permute.xlu0 %1456
  %1458 = vrot.lane.b32.xlu0 %v1315, 16
  %v1459 = vpop.permute.xlu0 %1458
  %1460 = vrot.lane.b32.xlu0 %v1319, 16
  %v1461 = vpop.permute.xlu0 %1460
  %1462 = vrot.lane.b32.xlu0 %v1323, 16
  %v1463 = vpop.permute.xlu0 %1462
  %1464 = vrot.lane.b32.xlu0 %v1316, 16
  %v1465 = vpop.permute.xlu0 %1464
  %1466 = vrot.lane.b32.xlu0 %v1320, 16
  %v1467 = vpop.permute.xlu0 %1466
  %1468 = vrot.lane.b32.xlu0 %v1324, 16
  %v1469 = vpop.permute.xlu0 %1468
  %vm1470 = vcmp.lt.s32.totalorder %v1374, 16
  %v1471 = vsel %vm1470, %v1459, %v1465
  %v1472 = vsel %vm1470, %v1461, %v1467
  %v1473 = vsel %vm1470, %v1463, %v1469
  %v1474 = vsel %vm1470, %v1453, %v1459
  %v1475 = vsel %vm1470, %v1455, %v1461
  %v1476 = vsel %vm1470, %v1457, %v1463
  %v1477 = vsel %vm1470, %v1447, %v1453
  %v1478 = vsel %vm1470, %v1449, %v1455
  %v1479 = vsel %vm1470, %v1451, %v1457
  %v1480 = vsel %vm1470, %v1465, %v1447
  %v1481 = vsel %vm1470, %v1467, %v1449
  %v1482 = vsel %vm1470, %v1469, %v1451
  %s1483 = scalar_lea.vmem %s3, 1
  %v1484 = vld [vmem:[%s1483] ss:$8 sm:$0xf]
  %v1486 = vlaneseq
  %v1487 = vshrl.u32 %v1486, 7
  %v1488 = vsub.s32 0, %v1487
  %v1489 = vrot.slane %v1484, %v1488
  %v1490 = vlaneseq
  %v1491 = vshrl.u32 %v1490, 7
  %v1492 = vsub.s32 1, %v1491
  %v1493 = vrot.slane %v1484, %v1492
  %v1494 = vlaneseq
  %v1495 = vshrl.u32 %v1494, 7
  %v1496 = vsub.s32 2, %v1495
  %v1497 = vrot.slane %v1484, %v1496
  %v1498 = vlaneseq
  %v1499 = vshrl.u32 %v1498, 7
  %v1500 = vsub.s32 3, %v1499
  %v1501 = vrot.slane %v1484, %v1500
  %v1506 = vmul.f32 %v1480, %v1489
  %v1507 = vmul.f32 %v1477, %v1493
  %v1508 = vmul.f32 %v1474, %v1497
  %v1509 = vmul.f32 %v1471, %v1501
  %v1510 = vmul.f32 %v1481, %v1489
  %v1511 = vmul.f32 %v1478, %v1493
  %v1512 = vmul.f32 %v1475, %v1497
  %v1513 = vmul.f32 %v1472, %v1501
  %v1514 = vmul.f32 %v1482, %v1489
  %v1515 = vmul.f32 %v1479, %v1493
  %v1516 = vmul.f32 %v1476, %v1497
  %v1517 = vmul.f32 %v1473, %v1501
  %1518 = vset.pattern.permute.xlu0 9
  %1519 = vperm.xlu0 %1518, %v20
  %v1520 = vpop.permute.xlu0 %1519
  %1522 = vset.pattern.permute.xlu0 9
  %1523 = vperm.xlu0 %1522, %v21
  %v1524 = vpop.permute.xlu0 %1523
  %1526 = vset.pattern.permute.xlu0 9
  %1527 = vperm.xlu0 %1526, %v22
  %v1528 = vpop.permute.xlu0 %1527
  %v1530 = vmul.f32 %v1506, %v1520
  %v1531 = vmul.f32 %v1507, %v1520
  %v1532 = vmul.f32 %v1508, %v1520
  %v1533 = vmul.f32 %v1509, %v1520
  %v1534 = vmul.f32 %v1510, %v1524
  %v1535 = vmul.f32 %v1511, %v1524
  %v1536 = vmul.f32 %v1512, %v1524
  %v1537 = vmul.f32 %v1513, %v1524
  %v1538 = vmul.f32 %v1514, %v1528
  %v1539 = vmul.f32 %v1515, %v1528
  %v1540 = vmul.f32 %v1516, %v1528
  %v1541 = vmul.f32 %v1517, %v1528
  %v1542 = vadd.f32 %v1337, %v1530
  %v1543 = vadd.f32 %v1338, %v1531
  %v1544 = vadd.f32 %v1339, %v1532
  %v1545 = vadd.f32 %v1340, %v1533
  %v1546 = vadd.f32 %v1341, %v1534
  %v1547 = vadd.f32 %v1342, %v1535
  %v1548 = vadd.f32 %v1343, %v1536
  %v1549 = vadd.f32 %v1344, %v1537
  %v1550 = vadd.f32 %v1345, %v1538
  %v1551 = vadd.f32 %v1346, %v1539
  %v1552 = vadd.f32 %v1347, %v1540
  %v1553 = vadd.f32 %v1348, %v1541
  %1554 = vrot.lane.b32.xlu0 %v1313, 15
  %v1555 = vpop.permute.xlu0 %1554
  %1556 = vrot.lane.b32.xlu0 %v1317, 15
  %v1557 = vpop.permute.xlu0 %1556
  %1558 = vrot.lane.b32.xlu0 %v1321, 15
  %v1559 = vpop.permute.xlu0 %1558
  %1560 = vrot.lane.b32.xlu0 %v1314, 15
  %v1561 = vpop.permute.xlu0 %1560
  %1562 = vrot.lane.b32.xlu0 %v1318, 15
  %v1563 = vpop.permute.xlu0 %1562
  %1564 = vrot.lane.b32.xlu0 %v1322, 15
  %v1565 = vpop.permute.xlu0 %1564
  %1566 = vrot.lane.b32.xlu0 %v1315, 15
  %v1567 = vpop.permute.xlu0 %1566
  %1568 = vrot.lane.b32.xlu0 %v1319, 15
  %v1569 = vpop.permute.xlu0 %1568
  %1570 = vrot.lane.b32.xlu0 %v1323, 15
  %v1571 = vpop.permute.xlu0 %1570
  %1572 = vrot.lane.b32.xlu0 %v1316, 15
  %v1573 = vpop.permute.xlu0 %1572
  %1574 = vrot.lane.b32.xlu0 %v1320, 15
  %v1575 = vpop.permute.xlu0 %1574
  %1576 = vrot.lane.b32.xlu0 %v1324, 15
  %v1577 = vpop.permute.xlu0 %1576
  %vm1578 = vcmp.lt.s32.totalorder %v1374, 15
  %v1579 = vsel %vm1578, %v1567, %v1573
  %v1580 = vsel %vm1578, %v1569, %v1575
  %v1581 = vsel %vm1578, %v1571, %v1577
  %v1582 = vsel %vm1578, %v1561, %v1567
  %v1583 = vsel %vm1578, %v1563, %v1569
  %v1584 = vsel %vm1578, %v1565, %v1571
  %v1585 = vsel %vm1578, %v1555, %v1561
  %v1586 = vsel %vm1578, %v1557, %v1563
  %v1587 = vsel %vm1578, %v1559, %v1565
  %v1588 = vsel %vm1578, %v1573, %v1555
  %v1589 = vsel %vm1578, %v1575, %v1557
  %v1590 = vsel %vm1578, %v1577, %v1559
  %s1591 = scalar_lea.vmem %s3, 2
  %v1592 = vld [vmem:[%s1591] ss:$8 sm:$0xf]
  %v1594 = vlaneseq
  %v1595 = vshrl.u32 %v1594, 7
  %v1596 = vsub.s32 0, %v1595
  %v1597 = vrot.slane %v1592, %v1596
  %v1598 = vlaneseq
  %v1599 = vshrl.u32 %v1598, 7
  %v1600 = vsub.s32 1, %v1599
  %v1601 = vrot.slane %v1592, %v1600
  %v1602 = vlaneseq
  %v1603 = vshrl.u32 %v1602, 7
  %v1604 = vsub.s32 2, %v1603
  %v1605 = vrot.slane %v1592, %v1604
  %v1606 = vlaneseq
  %v1607 = vshrl.u32 %v1606, 7
  %v1608 = vsub.s32 3, %v1607
  %v1609 = vrot.slane %v1592, %v1608
  %v1614 = vmul.f32 %v1588, %v1597
  %v1615 = vmul.f32 %v1585, %v1601
  %v1616 = vmul.f32 %v1582, %v1605
  %v1617 = vmul.f32 %v1579, %v1609
  %v1618 = vmul.f32 %v1589, %v1597
  %v1619 = vmul.f32 %v1586, %v1601
  %v1620 = vmul.f32 %v1583, %v1605
  %v1621 = vmul.f32 %v1580, %v1609
  %v1622 = vmul.f32 %v1590, %v1597
  %v1623 = vmul.f32 %v1587, %v1601
  %v1624 = vmul.f32 %v1584, %v1605
  %v1625 = vmul.f32 %v1581, %v1609
  %1626 = vset.pattern.permute.xlu0 10
  %1627 = vperm.xlu0 %1626, %v20
  %v1628 = vpop.permute.xlu0 %1627
  %1630 = vset.pattern.permute.xlu0 10
  %1631 = vperm.xlu0 %1630, %v21
  %v1632 = vpop.permute.xlu0 %1631
  %1634 = vset.pattern.permute.xlu0 10
  %1635 = vperm.xlu0 %1634, %v22
  %v1636 = vpop.permute.xlu0 %1635
  %v1638 = vmul.f32 %v1614, %v1628
  %v1639 = vmul.f32 %v1615, %v1628
  %v1640 = vmul.f32 %v1616, %v1628
  %v1641 = vmul.f32 %v1617, %v1628
  %v1642 = vmul.f32 %v1618, %v1632
  %v1643 = vmul.f32 %v1619, %v1632
  %v1644 = vmul.f32 %v1620, %v1632
  %v1645 = vmul.f32 %v1621, %v1632
  %v1646 = vmul.f32 %v1622, %v1636
  %v1647 = vmul.f32 %v1623, %v1636
  %v1648 = vmul.f32 %v1624, %v1636
  %v1649 = vmul.f32 %v1625, %v1636
  %1650 = vrot.lane.b32.xlu0 %v1313, 1
  %v1651 = vpop.permute.xlu0 %1650
  %1652 = vrot.lane.b32.xlu0 %v1317, 1
  %v1653 = vpop.permute.xlu0 %1652
  %1654 = vrot.lane.b32.xlu0 %v1321, 1
  %v1655 = vpop.permute.xlu0 %1654
  %1656 = vrot.lane.b32.xlu0 %v1314, 1
  %v1657 = vpop.permute.xlu0 %1656
  %1658 = vrot.lane.b32.xlu0 %v1318, 1
  %v1659 = vpop.permute.xlu0 %1658
  %1660 = vrot.lane.b32.xlu0 %v1322, 1
  %v1661 = vpop.permute.xlu0 %1660
  %1662 = vrot.lane.b32.xlu0 %v1315, 1
  %v1663 = vpop.permute.xlu0 %1662
  %1664 = vrot.lane.b32.xlu0 %v1319, 1
  %v1665 = vpop.permute.xlu0 %1664
  %1666 = vrot.lane.b32.xlu0 %v1323, 1
  %v1667 = vpop.permute.xlu0 %1666
  %1668 = vrot.lane.b32.xlu0 %v1316, 1
  %v1669 = vpop.permute.xlu0 %1668
  %1670 = vrot.lane.b32.xlu0 %v1320, 1
  %v1671 = vpop.permute.xlu0 %1670
  %1672 = vrot.lane.b32.xlu0 %v1324, 1
  %v1673 = vpop.permute.xlu0 %1672
  %vm1674 = vcmp.lt.s32.totalorder %v1374, 1
  %v1675 = vsel %vm1674, %v1663, %v1669
  %v1676 = vsel %vm1674, %v1665, %v1671
  %v1677 = vsel %vm1674, %v1667, %v1673
  %v1678 = vsel %vm1674, %v1657, %v1663
  %v1679 = vsel %vm1674, %v1659, %v1665
  %v1680 = vsel %vm1674, %v1661, %v1667
  %v1681 = vsel %vm1674, %v1651, %v1657
  %v1682 = vsel %vm1674, %v1653, %v1659
  %v1683 = vsel %vm1674, %v1655, %v1661
  %v1684 = vsel %vm1674, %v1669, %v1651
  %v1685 = vsel %vm1674, %v1671, %v1653
  %v1686 = vsel %vm1674, %v1673, %v1655
  %s1687 = scalar_lea.vmem %s3, 3
  %v1688 = vld [vmem:[%s1687] ss:$8 sm:$0xf]
  %v1690 = vlaneseq
  %v1691 = vshrl.u32 %v1690, 7
  %v1692 = vsub.s32 0, %v1691
  %v1693 = vrot.slane %v1688, %v1692
  %v1694 = vlaneseq
  %v1695 = vshrl.u32 %v1694, 7
  %v1696 = vsub.s32 1, %v1695
  %v1697 = vrot.slane %v1688, %v1696
  %v1698 = vlaneseq
  %v1699 = vshrl.u32 %v1698, 7
  %v1700 = vsub.s32 2, %v1699
  %v1701 = vrot.slane %v1688, %v1700
  %v1702 = vlaneseq
  %v1703 = vshrl.u32 %v1702, 7
  %v1704 = vsub.s32 3, %v1703
  %v1705 = vrot.slane %v1688, %v1704
  %v1710 = vmul.f32 %v1684, %v1693
  %v1711 = vmul.f32 %v1681, %v1697
  %v1712 = vmul.f32 %v1678, %v1701
  %v1713 = vmul.f32 %v1675, %v1705
  %v1714 = vmul.f32 %v1685, %v1693
  %v1715 = vmul.f32 %v1682, %v1697
  %v1716 = vmul.f32 %v1679, %v1701
  %v1717 = vmul.f32 %v1676, %v1705
  %v1718 = vmul.f32 %v1686, %v1693
  %v1719 = vmul.f32 %v1683, %v1697
  %v1720 = vmul.f32 %v1680, %v1701
  %v1721 = vmul.f32 %v1677, %v1705
  %1722 = vset.pattern.permute.xlu0 11
  %1723 = vperm.xlu0 %1722, %v20
  %v1724 = vpop.permute.xlu0 %1723
  %1726 = vset.pattern.permute.xlu0 11
  %1727 = vperm.xlu0 %1726, %v21
  %v1728 = vpop.permute.xlu0 %1727
  %1730 = vset.pattern.permute.xlu0 11
  %1731 = vperm.xlu0 %1730, %v22
  %v1732 = vpop.permute.xlu0 %1731
  %v1734 = vmul.f32 %v1710, %v1724
  %v1735 = vmul.f32 %v1711, %v1724
  %v1736 = vmul.f32 %v1712, %v1724
  %v1737 = vmul.f32 %v1713, %v1724
  %v1738 = vmul.f32 %v1714, %v1728
  %v1739 = vmul.f32 %v1715, %v1728
  %v1740 = vmul.f32 %v1716, %v1728
  %v1741 = vmul.f32 %v1717, %v1728
  %v1742 = vmul.f32 %v1718, %v1732
  %v1743 = vmul.f32 %v1719, %v1732
  %v1744 = vmul.f32 %v1720, %v1732
  %v1745 = vmul.f32 %v1721, %v1732
  %v1746 = vadd.f32 %v1434, %v1734
  %v1747 = vadd.f32 %v1435, %v1735
  %v1748 = vadd.f32 %v1436, %v1736
  %v1749 = vadd.f32 %v1437, %v1737
  %v1750 = vadd.f32 %v1438, %v1738
  %v1751 = vadd.f32 %v1439, %v1739
  %v1752 = vadd.f32 %v1440, %v1740
  %v1753 = vadd.f32 %v1441, %v1741
  %v1754 = vadd.f32 %v1442, %v1742
  %v1755 = vadd.f32 %v1443, %v1743
  %v1756 = vadd.f32 %v1444, %v1744
  %v1757 = vadd.f32 %v1445, %v1745
  %1758 = vrot.lane.b32.xlu0 %v1313, 127
  %v1759 = vpop.permute.xlu0 %1758
  %1760 = vrot.lane.b32.xlu0 %v1317, 127
  %v1761 = vpop.permute.xlu0 %1760
  %1762 = vrot.lane.b32.xlu0 %v1321, 127
  %v1763 = vpop.permute.xlu0 %1762
  %1764 = vrot.lane.b32.xlu0 %v1314, 127
  %v1765 = vpop.permute.xlu0 %1764
  %1766 = vrot.lane.b32.xlu0 %v1318, 127
  %v1767 = vpop.permute.xlu0 %1766
  %1768 = vrot.lane.b32.xlu0 %v1322, 127
  %v1769 = vpop.permute.xlu0 %1768
  %1770 = vrot.lane.b32.xlu0 %v1315, 127
  %v1771 = vpop.permute.xlu0 %1770
  %1772 = vrot.lane.b32.xlu0 %v1319, 127
  %v1773 = vpop.permute.xlu0 %1772
  %1774 = vrot.lane.b32.xlu0 %v1323, 127
  %v1775 = vpop.permute.xlu0 %1774
  %1776 = vrot.lane.b32.xlu0 %v1316, 127
  %v1777 = vpop.permute.xlu0 %1776
  %1778 = vrot.lane.b32.xlu0 %v1320, 127
  %v1779 = vpop.permute.xlu0 %1778
  %1780 = vrot.lane.b32.xlu0 %v1324, 127
  %v1781 = vpop.permute.xlu0 %1780
  %vm1782 = vcmp.lt.s32.totalorder %v1374, 127
  %v1783 = vsel %vm1782, %v1771, %v1777
  %v1784 = vsel %vm1782, %v1773, %v1779
  %v1785 = vsel %vm1782, %v1775, %v1781
  %v1786 = vsel %vm1782, %v1765, %v1771
  %v1787 = vsel %vm1782, %v1767, %v1773
  %v1788 = vsel %vm1782, %v1769, %v1775
  %v1789 = vsel %vm1782, %v1759, %v1765
  %v1790 = vsel %vm1782, %v1761, %v1767
  %v1791 = vsel %vm1782, %v1763, %v1769
  %v1792 = vsel %vm1782, %v1777, %v1759
  %v1793 = vsel %vm1782, %v1779, %v1761
  %v1794 = vsel %vm1782, %v1781, %v1763
  %s1795 = scalar_lea.vmem %s3, 5
  %v1796 = vld [vmem:[%s1795] ss:$8 sm:$0xf]
  %v1798 = vlaneseq
  %v1799 = vshrl.u32 %v1798, 7
  %v1800 = vsub.s32 0, %v1799
  %v1801 = vrot.slane %v1796, %v1800
  %v1802 = vlaneseq
  %v1803 = vshrl.u32 %v1802, 7
  %v1804 = vsub.s32 1, %v1803
  %v1805 = vrot.slane %v1796, %v1804
  %v1806 = vlaneseq
  %v1807 = vshrl.u32 %v1806, 7
  %v1808 = vsub.s32 2, %v1807
  %v1809 = vrot.slane %v1796, %v1808
  %v1810 = vlaneseq
  %v1811 = vshrl.u32 %v1810, 7
  %v1812 = vsub.s32 3, %v1811
  %v1813 = vrot.slane %v1796, %v1812
  %v1818 = vmul.f32 %v1789, %v1801
  %v1819 = vmul.f32 %v1786, %v1805
  %v1820 = vmul.f32 %v1783, %v1809
  %v1821 = vmul.f32 %v1792, %v1813
  %v1822 = vmul.f32 %v1790, %v1801
  %v1823 = vmul.f32 %v1787, %v1805
  %v1824 = vmul.f32 %v1784, %v1809
  %v1825 = vmul.f32 %v1793, %v1813
  %v1826 = vmul.f32 %v1791, %v1801
  %v1827 = vmul.f32 %v1788, %v1805
  %v1828 = vmul.f32 %v1785, %v1809
  %v1829 = vmul.f32 %v1794, %v1813
  %1830 = vset.pattern.permute.xlu0 13
  %1831 = vperm.xlu0 %1830, %v20
  %v1832 = vpop.permute.xlu0 %1831
  %1834 = vset.pattern.permute.xlu0 13
  %1835 = vperm.xlu0 %1834, %v21
  %v1836 = vpop.permute.xlu0 %1835
  %1838 = vset.pattern.permute.xlu0 13
  %1839 = vperm.xlu0 %1838, %v22
  %v1840 = vpop.permute.xlu0 %1839
  %v1842 = vmul.f32 %v1818, %v1832
  %v1843 = vmul.f32 %v1819, %v1832
  %v1844 = vmul.f32 %v1820, %v1832
  %v1845 = vmul.f32 %v1821, %v1832
  %v1846 = vmul.f32 %v1822, %v1836
  %v1847 = vmul.f32 %v1823, %v1836
  %v1848 = vmul.f32 %v1824, %v1836
  %v1849 = vmul.f32 %v1825, %v1836
  %v1850 = vmul.f32 %v1826, %v1840
  %v1851 = vmul.f32 %v1827, %v1840
  %v1852 = vmul.f32 %v1828, %v1840
  %v1853 = vmul.f32 %v1829, %v1840
  %v1854 = vadd.f32 %v1638, %v1842
  %v1855 = vadd.f32 %v1639, %v1843
  %v1856 = vadd.f32 %v1640, %v1844
  %v1857 = vadd.f32 %v1641, %v1845
  %v1858 = vadd.f32 %v1642, %v1846
  %v1859 = vadd.f32 %v1643, %v1847
  %v1860 = vadd.f32 %v1644, %v1848
  %v1861 = vadd.f32 %v1645, %v1849
  %v1862 = vadd.f32 %v1646, %v1850
  %v1863 = vadd.f32 %v1647, %v1851
  %v1864 = vadd.f32 %v1648, %v1852
  %v1865 = vadd.f32 %v1649, %v1853
  %1866 = vrot.lane.b32.xlu0 %v1313, 113
  %v1867 = vpop.permute.xlu0 %1866
  %1868 = vrot.lane.b32.xlu0 %v1317, 113
  %v1869 = vpop.permute.xlu0 %1868
  %1870 = vrot.lane.b32.xlu0 %v1321, 113
  %v1871 = vpop.permute.xlu0 %1870
  %1872 = vrot.lane.b32.xlu0 %v1314, 113
  %v1873 = vpop.permute.xlu0 %1872
  %1874 = vrot.lane.b32.xlu0 %v1318, 113
  %v1875 = vpop.permute.xlu0 %1874
  %1876 = vrot.lane.b32.xlu0 %v1322, 113
  %v1877 = vpop.permute.xlu0 %1876
  %1878 = vrot.lane.b32.xlu0 %v1315, 113
  %v1879 = vpop.permute.xlu0 %1878
  %1880 = vrot.lane.b32.xlu0 %v1319, 113
  %v1881 = vpop.permute.xlu0 %1880
  %1882 = vrot.lane.b32.xlu0 %v1323, 113
  %v1883 = vpop.permute.xlu0 %1882
  %1884 = vrot.lane.b32.xlu0 %v1316, 113
  %v1885 = vpop.permute.xlu0 %1884
  %1886 = vrot.lane.b32.xlu0 %v1320, 113
  %v1887 = vpop.permute.xlu0 %1886
  %1888 = vrot.lane.b32.xlu0 %v1324, 113
  %v1889 = vpop.permute.xlu0 %1888
  %vm1890 = vcmp.lt.s32.totalorder %v1374, 113
  %v1891 = vsel %vm1890, %v1879, %v1885
  %v1892 = vsel %vm1890, %v1881, %v1887
  %v1893 = vsel %vm1890, %v1883, %v1889
  %v1894 = vsel %vm1890, %v1873, %v1879
  %v1895 = vsel %vm1890, %v1875, %v1881
  %v1896 = vsel %vm1890, %v1877, %v1883
  %v1897 = vsel %vm1890, %v1867, %v1873
  %v1898 = vsel %vm1890, %v1869, %v1875
  %v1899 = vsel %vm1890, %v1871, %v1877
  %v1900 = vsel %vm1890, %v1885, %v1867
  %v1901 = vsel %vm1890, %v1887, %v1869
  %v1902 = vsel %vm1890, %v1889, %v1871
  %s1903 = scalar_lea.vmem %s3, 6
  %v1904 = vld [vmem:[%s1903] ss:$8 sm:$0xf]
  %v1906 = vlaneseq
  %v1907 = vshrl.u32 %v1906, 7
  %v1908 = vsub.s32 0, %v1907
  %v1909 = vrot.slane %v1904, %v1908
  %v1910 = vlaneseq
  %v1911 = vshrl.u32 %v1910, 7
  %v1912 = vsub.s32 1, %v1911
  %v1913 = vrot.slane %v1904, %v1912
  %v1914 = vlaneseq
  %v1915 = vshrl.u32 %v1914, 7
  %v1916 = vsub.s32 2, %v1915
  %v1917 = vrot.slane %v1904, %v1916
  %v1918 = vlaneseq
  %v1919 = vshrl.u32 %v1918, 7
  %v1920 = vsub.s32 3, %v1919
  %v1921 = vrot.slane %v1904, %v1920
  %v1926 = vmul.f32 %v1897, %v1909
  %v1927 = vmul.f32 %v1894, %v1913
  %v1928 = vmul.f32 %v1891, %v1917
  %v1929 = vmul.f32 %v1900, %v1921
  %v1930 = vmul.f32 %v1898, %v1909
  %v1931 = vmul.f32 %v1895, %v1913
  %v1932 = vmul.f32 %v1892, %v1917
  %v1933 = vmul.f32 %v1901, %v1921
  %v1934 = vmul.f32 %v1899, %v1909
  %v1935 = vmul.f32 %v1896, %v1913
  %v1936 = vmul.f32 %v1893, %v1917
  %v1937 = vmul.f32 %v1902, %v1921
  %1938 = vset.pattern.permute.xlu0 14
  %1939 = vperm.xlu0 %1938, %v20
  %v1940 = vpop.permute.xlu0 %1939
  %1942 = vset.pattern.permute.xlu0 14
  %1943 = vperm.xlu0 %1942, %v21
  %v1944 = vpop.permute.xlu0 %1943
  %1946 = vset.pattern.permute.xlu0 14
  %1947 = vperm.xlu0 %1946, %v22
  %v1948 = vpop.permute.xlu0 %1947
  %v1950 = vmul.f32 %v1926, %v1940
  %v1951 = vmul.f32 %v1927, %v1940
  %v1952 = vmul.f32 %v1928, %v1940
  %v1953 = vmul.f32 %v1929, %v1940
  %v1954 = vmul.f32 %v1930, %v1944
  %v1955 = vmul.f32 %v1931, %v1944
  %v1956 = vmul.f32 %v1932, %v1944
  %v1957 = vmul.f32 %v1933, %v1944
  %v1958 = vmul.f32 %v1934, %v1948
  %v1959 = vmul.f32 %v1935, %v1948
  %v1960 = vmul.f32 %v1936, %v1948
  %v1961 = vmul.f32 %v1937, %v1948
  %v1962 = vadd.f32 %v1746, %v1950
  %v1963 = vadd.f32 %v1747, %v1951
  %v1964 = vadd.f32 %v1748, %v1952
  %v1965 = vadd.f32 %v1749, %v1953
  %v1966 = vadd.f32 %v1750, %v1954
  %v1967 = vadd.f32 %v1751, %v1955
  %v1968 = vadd.f32 %v1752, %v1956
  %v1969 = vadd.f32 %v1753, %v1957
  %v1970 = vadd.f32 %v1754, %v1958
  %v1971 = vadd.f32 %v1755, %v1959
  %v1972 = vadd.f32 %v1756, %v1960
  %v1973 = vadd.f32 %v1757, %v1961
  %1974 = vrot.lane.b32.xlu0 %v1313, 112
  %v1975 = vpop.permute.xlu0 %1974
  %1976 = vrot.lane.b32.xlu0 %v1317, 112
  %v1977 = vpop.permute.xlu0 %1976
  %1978 = vrot.lane.b32.xlu0 %v1321, 112
  %v1979 = vpop.permute.xlu0 %1978
  %1980 = vrot.lane.b32.xlu0 %v1314, 112
  %v1981 = vpop.permute.xlu0 %1980
  %1982 = vrot.lane.b32.xlu0 %v1318, 112
  %v1983 = vpop.permute.xlu0 %1982
  %1984 = vrot.lane.b32.xlu0 %v1322, 112
  %v1985 = vpop.permute.xlu0 %1984
  %1986 = vrot.lane.b32.xlu0 %v1315, 112
  %v1987 = vpop.permute.xlu0 %1986
  %1988 = vrot.lane.b32.xlu0 %v1319, 112
  %v1989 = vpop.permute.xlu0 %1988
  %1990 = vrot.lane.b32.xlu0 %v1323, 112
  %v1991 = vpop.permute.xlu0 %1990
  %1992 = vrot.lane.b32.xlu0 %v1316, 112
  %v1993 = vpop.permute.xlu0 %1992
  %1994 = vrot.lane.b32.xlu0 %v1320, 112
  %v1995 = vpop.permute.xlu0 %1994
  %1996 = vrot.lane.b32.xlu0 %v1324, 112
  %v1997 = vpop.permute.xlu0 %1996
  %vm1998 = vcmp.lt.s32.totalorder %v1374, 112
  %v1999 = vsel %vm1998, %v1987, %v1993
  %v2000 = vsel %vm1998, %v1989, %v1995
  %v2001 = vsel %vm1998, %v1991, %v1997
  %v2002 = vsel %vm1998, %v1981, %v1987
  %v2003 = vsel %vm1998, %v1983, %v1989
  %v2004 = vsel %vm1998, %v1985, %v1991
  %v2005 = vsel %vm1998, %v1975, %v1981
  %v2006 = vsel %vm1998, %v1977, %v1983
  %v2007 = vsel %vm1998, %v1979, %v1985
  %v2008 = vsel %vm1998, %v1993, %v1975
  %v2009 = vsel %vm1998, %v1995, %v1977
  %v2010 = vsel %vm1998, %v1997, %v1979
  %s2011 = scalar_lea.vmem %s3, 7
  %v2012 = vld [vmem:[%s2011] ss:$8 sm:$0xf]
  %v2014 = vlaneseq
  %v2015 = vshrl.u32 %v2014, 7
  %v2016 = vsub.s32 0, %v2015
  %v2017 = vrot.slane %v2012, %v2016
  %v2018 = vlaneseq
  %v2019 = vshrl.u32 %v2018, 7
  %v2020 = vsub.s32 1, %v2019
  %v2021 = vrot.slane %v2012, %v2020
  %v2022 = vlaneseq
  %v2023 = vshrl.u32 %v2022, 7
  %v2024 = vsub.s32 2, %v2023
  %v2025 = vrot.slane %v2012, %v2024
  %v2026 = vlaneseq
  %v2027 = vshrl.u32 %v2026, 7
  %v2028 = vsub.s32 3, %v2027
  %v2029 = vrot.slane %v2012, %v2028
  %v2034 = vmul.f32 %v2005, %v2017
  %v2035 = vmul.f32 %v2002, %v2021
  %v2036 = vmul.f32 %v1999, %v2025
  %v2037 = vmul.f32 %v2008, %v2029
  %v2038 = vmul.f32 %v2006, %v2017
  %v2039 = vmul.f32 %v2003, %v2021
  %v2040 = vmul.f32 %v2000, %v2025
  %v2041 = vmul.f32 %v2009, %v2029
  %v2042 = vmul.f32 %v2007, %v2017
  %v2043 = vmul.f32 %v2004, %v2021
  %v2044 = vmul.f32 %v2001, %v2025
  %v2045 = vmul.f32 %v2010, %v2029
  %2046 = vset.pattern.permute.xlu0 15
  %2047 = vperm.xlu0 %2046, %v20
  %v2048 = vpop.permute.xlu0 %2047
  %2050 = vset.pattern.permute.xlu0 15
  %2051 = vperm.xlu0 %2050, %v21
  %v2052 = vpop.permute.xlu0 %2051
  %2054 = vset.pattern.permute.xlu0 15
  %2055 = vperm.xlu0 %2054, %v22
  %v2056 = vpop.permute.xlu0 %2055
  %v2058 = vmul.f32 %v2034, %v2048
  %v2059 = vmul.f32 %v2035, %v2048
  %v2060 = vmul.f32 %v2036, %v2048
  %v2061 = vmul.f32 %v2037, %v2048
  %v2062 = vmul.f32 %v2038, %v2052
  %v2063 = vmul.f32 %v2039, %v2052
  %v2064 = vmul.f32 %v2040, %v2052
  %v2065 = vmul.f32 %v2041, %v2052
  %v2066 = vmul.f32 %v2042, %v2056
  %v2067 = vmul.f32 %v2043, %v2056
  %v2068 = vmul.f32 %v2044, %v2056
  %v2069 = vmul.f32 %v2045, %v2056
  %v2070 = vadd.f32 %v1542, %v2058
  %v2071 = vadd.f32 %v1543, %v2059
  %v2072 = vadd.f32 %v1544, %v2060
  %v2073 = vadd.f32 %v1545, %v2061
  %v2074 = vadd.f32 %v1546, %v2062
  %v2075 = vadd.f32 %v1547, %v2063
  %v2076 = vadd.f32 %v1548, %v2064
  %v2077 = vadd.f32 %v1549, %v2065
  %v2078 = vadd.f32 %v1550, %v2066
  %v2079 = vadd.f32 %v1551, %v2067
  %v2080 = vadd.f32 %v1552, %v2068
  %v2081 = vadd.f32 %v1553, %v2069
  %2082 = vrot.lane.b32.xlu0 %v1313, 111
  %v2083 = vpop.permute.xlu0 %2082
  %2084 = vrot.lane.b32.xlu0 %v1317, 111
  %v2085 = vpop.permute.xlu0 %2084
  %2086 = vrot.lane.b32.xlu0 %v1321, 111
  %v2087 = vpop.permute.xlu0 %2086
  %2088 = vrot.lane.b32.xlu0 %v1314, 111
  %v2089 = vpop.permute.xlu0 %2088
  %2090 = vrot.lane.b32.xlu0 %v1318, 111
  %v2091 = vpop.permute.xlu0 %2090
  %2092 = vrot.lane.b32.xlu0 %v1322, 111
  %v2093 = vpop.permute.xlu0 %2092
  %2094 = vrot.lane.b32.xlu0 %v1315, 111
  %v2095 = vpop.permute.xlu0 %2094
  %2096 = vrot.lane.b32.xlu0 %v1319, 111
  %v2097 = vpop.permute.xlu0 %2096
  %2098 = vrot.lane.b32.xlu0 %v1323, 111
  %v2099 = vpop.permute.xlu0 %2098
  %2100 = vrot.lane.b32.xlu0 %v1316, 111
  %v2101 = vpop.permute.xlu0 %2100
  %2102 = vrot.lane.b32.xlu0 %v1320, 111
  %v2103 = vpop.permute.xlu0 %2102
  %2104 = vrot.lane.b32.xlu0 %v1324, 111
  %v2105 = vpop.permute.xlu0 %2104
  %vm2106 = vcmp.lt.s32.totalorder %v1374, 111
  %v2107 = vsel %vm2106, %v2095, %v2101
  %v2108 = vsel %vm2106, %v2097, %v2103
  %v2109 = vsel %vm2106, %v2099, %v2105
  %v2110 = vsel %vm2106, %v2089, %v2095
  %v2111 = vsel %vm2106, %v2091, %v2097
  %v2112 = vsel %vm2106, %v2093, %v2099
  %v2113 = vsel %vm2106, %v2083, %v2089
  %v2114 = vsel %vm2106, %v2085, %v2091
  %v2115 = vsel %vm2106, %v2087, %v2093
  %v2116 = vsel %vm2106, %v2101, %v2083
  %v2117 = vsel %vm2106, %v2103, %v2085
  %v2118 = vsel %vm2106, %v2105, %v2087
  %s2119 = scalar_lea.vmem %s3, 32
  %v2120 = vld [vmem:[%s2119] ss:$8 sm:$0xf]
  %v2122 = vlaneseq
  %v2123 = vshrl.u32 %v2122, 7
  %v2124 = vsub.s32 0, %v2123
  %v2125 = vrot.slane %v2120, %v2124
  %v2126 = vlaneseq
  %v2127 = vshrl.u32 %v2126, 7
  %v2128 = vsub.s32 1, %v2127
  %v2129 = vrot.slane %v2120, %v2128
  %v2130 = vlaneseq
  %v2131 = vshrl.u32 %v2130, 7
  %v2132 = vsub.s32 2, %v2131
  %v2133 = vrot.slane %v2120, %v2132
  %v2134 = vlaneseq
  %v2135 = vshrl.u32 %v2134, 7
  %v2136 = vsub.s32 3, %v2135
  %v2137 = vrot.slane %v2120, %v2136
  %v2142 = vmul.f32 %v2113, %v2125
  %v2143 = vmul.f32 %v2110, %v2129
  %v2144 = vmul.f32 %v2107, %v2133
  %v2145 = vmul.f32 %v2116, %v2137
  %v2146 = vmul.f32 %v2114, %v2125
  %v2147 = vmul.f32 %v2111, %v2129
  %v2148 = vmul.f32 %v2108, %v2133
  %v2149 = vmul.f32 %v2117, %v2137
  %v2150 = vmul.f32 %v2115, %v2125
  %v2151 = vmul.f32 %v2112, %v2129
  %v2152 = vmul.f32 %v2109, %v2133
  %v2153 = vmul.f32 %v2118, %v2137
  %2154 = vset.pattern.permute.xlu0 16
  %2155 = vperm.xlu0 %2154, %v20
  %v2156 = vpop.permute.xlu0 %2155
  %2158 = vset.pattern.permute.xlu0 16
  %2159 = vperm.xlu0 %2158, %v21
  %v2160 = vpop.permute.xlu0 %2159
  %2162 = vset.pattern.permute.xlu0 16
  %2163 = vperm.xlu0 %2162, %v22
  %v2164 = vpop.permute.xlu0 %2163
  %v2166 = vmul.f32 %v2142, %v2156
  %v2167 = vmul.f32 %v2143, %v2156
  %v2168 = vmul.f32 %v2144, %v2156
  %v2169 = vmul.f32 %v2145, %v2156
  %v2170 = vmul.f32 %v2146, %v2160
  %v2171 = vmul.f32 %v2147, %v2160
  %v2172 = vmul.f32 %v2148, %v2160
  %v2173 = vmul.f32 %v2149, %v2160
  %v2174 = vmul.f32 %v2150, %v2164
  %v2175 = vmul.f32 %v2151, %v2164
  %v2176 = vmul.f32 %v2152, %v2164
  %v2177 = vmul.f32 %v2153, %v2164
  %v2178 = vadd.f32 %v1854, %v2166
  %v2179 = vadd.f32 %v1855, %v2167
  %v2180 = vadd.f32 %v1856, %v2168
  %v2181 = vadd.f32 %v1857, %v2169
  %v2182 = vadd.f32 %v1858, %v2170
  %v2183 = vadd.f32 %v1859, %v2171
  %v2184 = vadd.f32 %v1860, %v2172
  %v2185 = vadd.f32 %v1861, %v2173
  %v2186 = vadd.f32 %v1862, %v2174
  %v2187 = vadd.f32 %v1863, %v2175
  %v2188 = vadd.f32 %v1864, %v2176
  %v2189 = vadd.f32 %v1865, %v2177
  %v2190 = vadd.f32 %v1962, %v2070
  %v2191 = vadd.f32 %v1963, %v2071
  %v2192 = vadd.f32 %v1964, %v2072
  %v2193 = vadd.f32 %v1965, %v2073
  %v2194 = vadd.f32 %v1966, %v2074
  %v2195 = vadd.f32 %v1967, %v2075
  %v2196 = vadd.f32 %v1968, %v2076
  %v2197 = vadd.f32 %v1969, %v2077
  %v2198 = vadd.f32 %v1970, %v2078
  %v2199 = vadd.f32 %v1971, %v2079
  %v2200 = vadd.f32 %v1972, %v2080
  %v2201 = vadd.f32 %v1973, %v2081
  %v2202 = vadd.f32 %v2190, %v2178
  %v2203 = vadd.f32 %v2191, %v2179
  %v2204 = vadd.f32 %v2192, %v2180
  %v2205 = vadd.f32 %v2193, %v2181
  %v2206 = vadd.f32 %v2194, %v2182
  %v2207 = vadd.f32 %v2195, %v2183
  %v2208 = vadd.f32 %v2196, %v2184
  %v2209 = vadd.f32 %v2197, %v2185
  %v2210 = vadd.f32 %v2198, %v2186
  %v2211 = vadd.f32 %v2199, %v2187
  %v2212 = vadd.f32 %v2200, %v2188
  %v2213 = vadd.f32 %v2201, %v2189
  %v2214 = vadd.f32 %v2202, %v2203
  %v2215 = vadd.f32 %v2214, %v2204
  %v2216 = vadd.f32 %v2215, %v2205
  %2217 = vadd.xlane.f32.xlu0 %v2216
  %v2218 = vpop.xlane.xlu0 %2217
  %v2219 = vadd.f32 %v2206, %v2207
  %v2220 = vadd.f32 %v2219, %v2208
  %v2221 = vadd.f32 %v2220, %v2209
  %2222 = vadd.xlane.f32.xlu0 %v2221
  %v2223 = vpop.xlane.xlu0 %2222
  %v2224 = vadd.f32 %v2210, %v2211
  %v2225 = vadd.f32 %v2224, %v2212
  %v2226 = vadd.f32 %v2225, %v2213
  %2227 = vadd.xlane.f32.xlu0 %v2226
  %v2228 = vpop.xlane.xlu0 %2227
  %v2229 = vmul.f32 %v2202, %v2202
  %v2230 = vmul.f32 %v2203, %v2203
  %v2231 = vmul.f32 %v2204, %v2204
  %v2232 = vmul.f32 %v2205, %v2205
  %v2233 = vmul.f32 %v2206, %v2206
  %v2234 = vmul.f32 %v2207, %v2207
  %v2235 = vmul.f32 %v2208, %v2208
  %v2236 = vmul.f32 %v2209, %v2209
  %v2237 = vmul.f32 %v2210, %v2210
  %v2238 = vmul.f32 %v2211, %v2211
  %v2239 = vmul.f32 %v2212, %v2212
  %v2240 = vmul.f32 %v2213, %v2213
  %v2241 = vadd.f32 %v2229, %v2230
  %v2242 = vadd.f32 %v2241, %v2231
  %v2243 = vadd.f32 %v2242, %v2232
  %2244 = vadd.xlane.f32.xlu0 %v2243
  %v2245 = vpop.xlane.xlu0 %2244
  %v2246 = vadd.f32 %v2233, %v2234
  %v2247 = vadd.f32 %v2246, %v2235
  %v2248 = vadd.f32 %v2247, %v2236
  %2249 = vadd.xlane.f32.xlu0 %v2248
  %v2250 = vpop.xlane.xlu0 %2249
  %v2251 = vadd.f32 %v2237, %v2238
  %v2252 = vadd.f32 %v2251, %v2239
  %v2253 = vadd.f32 %v2252, %v2240
  %2254 = vadd.xlane.f32.xlu0 %v2253
  %v2255 = vpop.xlane.xlu0 %2254
  %v2256 = vmul.f32 %v2218, 0.001953125
  %v2257 = vmul.f32 %v2223, 0.001953125
  %v2258 = vmul.f32 %v2228, 0.001953125
  %v2259 = vmul.f32 %v2245, 0.001953125
  %v2260 = vmul.f32 %v2250, 0.001953125
  %v2261 = vmul.f32 %v2255, 0.001953125
  %v2262 = vmul.f32 %v2256, %v2256
  %v2263 = vmul.f32 %v2257, %v2257
  %v2264 = vmul.f32 %v2258, %v2258
  %v2265 = vsub.f32 %v2259, %v2262
  %v2266 = vsub.f32 %v2260, %v2263
  %v2267 = vsub.f32 %v2261, %v2264
  %v2268 = vadd.f32 %v2265, 1e-05
  %v2269 = vadd.f32 %v2266, 1e-05
  %v2270 = vadd.f32 %v2267, 1e-05
  %v2271 = vrsqrt.pop %v2268
  %v2272 = vrsqrt.pop %v2269
  %v2273 = vrsqrt.pop %v2270
  %v2274 = vmul.f32 %v1163, %v2271
  %v2275 = vmul.f32 %v1164, %v2272
  %v2276 = vmul.f32 %v1165, %v2273
  %v2277 = vmul.f32 %v2256, %v2274
  %v2278 = vmul.f32 %v2257, %v2275
  %v2279 = vmul.f32 %v2258, %v2276
  %2283 = vrot.lane.b32.xlu0 %v2277, 1
  %v2284 = vpop.permute.xlu0 %2283
  %2285 = vrot.lane.b32.xlu0 %v2278, 1
  %v2286 = vpop.permute.xlu0 %2285
  %2287 = vrot.lane.b32.xlu0 %v2279, 1
  %v2288 = vpop.permute.xlu0 %2287
  %v2292 = vsub.f32 %v1163, %v2284
  %v2293 = vsub.f32 %v1164, %v2286
  %v2294 = vsub.f32 %v1165, %v2288
  %2296 = vset.pattern.permute.xlu0 2
  %2297 = vperm.xlu0 %2296, %v2274
  %v2298 = vpop.permute.xlu0 %2297
  %2301 = vset.pattern.permute.xlu0 2
  %2302 = vperm.xlu0 %2301, %v2275
  %v2303 = vpop.permute.xlu0 %2302
  %2306 = vset.pattern.permute.xlu0 2
  %2307 = vperm.xlu0 %2306, %v2276
  %v2308 = vpop.permute.xlu0 %2307
  %v2310 = vmul.f32 %v2202, %v2298
  %v2311 = vmul.f32 %v2203, %v2298
  %v2312 = vmul.f32 %v2204, %v2298
  %v2313 = vmul.f32 %v2205, %v2298
  %v2314 = vmul.f32 %v2206, %v2303
  %v2315 = vmul.f32 %v2207, %v2303
  %v2316 = vmul.f32 %v2208, %v2303
  %v2317 = vmul.f32 %v2209, %v2303
  %v2318 = vmul.f32 %v2210, %v2308
  %v2319 = vmul.f32 %v2211, %v2308
  %v2320 = vmul.f32 %v2212, %v2308
  %v2321 = vmul.f32 %v2213, %v2308
  %2323 = vset.pattern.permute.xlu0 3
  %2324 = vperm.xlu0 %2323, %v2292
  %v2325 = vpop.permute.xlu0 %2324
  %2328 = vset.pattern.permute.xlu0 3
  %2329 = vperm.xlu0 %2328, %v2293
  %v2330 = vpop.permute.xlu0 %2329
  %2333 = vset.pattern.permute.xlu0 3
  %2334 = vperm.xlu0 %2333, %v2294
  %v2335 = vpop.permute.xlu0 %2334
  %v2337 = vadd.f32 %v2310, %v2325
  %v2338 = vadd.f32 %v2311, %v2325
  %v2339 = vadd.f32 %v2312, %v2325
  %v2340 = vadd.f32 %v2313, %v2325
  %v2341 = vadd.f32 %v2314, %v2330
  %v2342 = vadd.f32 %v2315, %v2330
  %v2343 = vadd.f32 %v2316, %v2330
  %v2344 = vadd.f32 %v2317, %v2330
  %v2345 = vadd.f32 %v2318, %v2335
  %v2346 = vadd.f32 %v2319, %v2335
  %v2347 = vadd.f32 %v2320, %v2335
  %v2348 = vadd.f32 %v2321, %v2335
  %v2349 = vmax.f32 %v2337, 0.0
  %v2350 = vmax.f32 %v2338, 0.0
  %v2351 = vmax.f32 %v2339, 0.0
  %v2352 = vmax.f32 %v2340, 0.0
  %v2353 = vmax.f32 %v2341, 0.0
  %v2354 = vmax.f32 %v2342, 0.0
  %v2355 = vmax.f32 %v2343, 0.0
  %v2356 = vmax.f32 %v2344, 0.0
  %v2357 = vmax.f32 %v2345, 0.0
  %v2358 = vmax.f32 %v2346, 0.0
  %v2359 = vmax.f32 %v2347, 0.0
  %v2360 = vmax.f32 %v2348, 0.0
  %v2361 = vmin.f32 %v2349, 6.0
  %v2362 = vmin.f32 %v2350, 6.0
  %v2363 = vmin.f32 %v2351, 6.0
  %v2364 = vmin.f32 %v2352, 6.0
  %v2365 = vmin.f32 %v2353, 6.0
  %v2366 = vmin.f32 %v2354, 6.0
  %v2367 = vmin.f32 %v2355, 6.0
  %v2368 = vmin.f32 %v2356, 6.0
  %v2369 = vmin.f32 %v2357, 6.0
  %v2370 = vmin.f32 %v2358, 6.0
  %v2371 = vmin.f32 %v2359, 6.0
  %v2372 = vmin.f32 %v2360, 6.0
  %v2373 = vld [vmem:[%s2] sm:$0xff]
  %vm2374 = vcmask 195584
  %v2376 = vsel %vm2374, %v2373, 0
  %v2378 = vand.u32 %v2362, 4294901760
  %2379 = vmatprep.subr.mxu0 %v2378
  %v2380 = vand.u32 %v2361, 4294901760
  %2381 = vmatpush1.msra.mxu0 %v2380
  %v2382 = vand.u32 %v2366, 4294901760
  %2383 = vmatprep.subr.mxu0 %v2382
  %v2384 = vand.u32 %v2365, 4294901760
  %2385 = vmatpush1.msra.mxu0 %v2384
  %v2386 = vand.u32 %v2370, 4294901760
  %2387 = vmatprep.subr.mxu0 %v2386
  %v2388 = vand.u32 %v2369, 4294901760
  %2389 = vmatpush1.msra.mxu0 %v2388
  %2390 = vmatprep.subr.mxu0 0.0
  %2391 = vmatpush1.msra.mxu0 0.0
  %2392 = vmatprep.subr.mxu0 0.0
  %2393 = vmatpush1.msra.mxu0 0.0
  %2394 = vmatprep.subr.mxu0 0.0
  %2395 = vmatpush1.msra.mxu0 0.0
  %2396 = vmatprep.subr.mxu0 0.0
  %2397 = vmatpush1.msra.mxu0 0.0
  %2398 = vmatprep.subr.mxu0 0.0
  %2399 = vmatpush1.msra.mxu0 0.0
  %2400 = vmatprep.subr.mxu0 0.0
  %2401 = vmatpush1.msra.mxu0 0.0
  %2402 = vmatprep.subr.mxu0 0.0
  %2403 = vmatpush1.msra.mxu0 0.0
  %2404 = vmatprep.subr.mxu0 0.0
  %2405 = vmatpush1.msra.mxu0 0.0
  %2406 = vmatprep.subr.mxu0 0.0
  %2407 = vmatpush1.msra.mxu0 0.0
  %2408 = vmatprep.subr.mxu0 0.0
  %2409 = vmatpush1.msra.mxu0 0.0
  %2410 = vmatprep.subr.mxu0 0.0
  %2411 = vmatpush1.msra.mxu0 0.0
  %2412 = vmatprep.subr.mxu0 0.0
  %2413 = vmatpush1.msra.mxu0 0.0
  %2414 = vmatprep.subr.mxu0 0.0
  %2415 = vmatpush1.msra.mxu0 0.0
  %2416 = vmatprep.subr.mxu0 0.0
  %2417 = vmatpush1.msra.mxu0 0.0
  %2418 = vmatprep.subr.mxu0 0.0
  %2419 = vmatpush1.msra.mxu0 0.0
  %2420 = vmatprep.subr.mxu0 0.0
  %2421 = vmatpush1.msra.mxu0 0.0
  %2422 = vmatprep.subr.mxu0 0.0
  %2423 = vmatpush1.msra.mxu0 0.0
  %2424 = vmatprep.subr.mxu0 0.0
  %2425 = vmatpush1.msra.mxu0 0.0
  %2426 = vmatprep.subr.mxu0 0.0
  %2427 = vmatpush1.msra.mxu0 0.0
  %2428 = vmatprep.subr.mxu0 0.0
  %2429 = vmatpush1.msra.mxu0 0.0
  %2430 = vmatprep.subr.mxu0 0.0
  %2431 = vmatpush1.msra.mxu0 0.0
  %2432 = vmatprep.subr.mxu0 0.0
  %2433 = vmatpush1.msra.mxu0 0.0
  %2434 = vmatprep.subr.mxu0 0.0
  %2435 = vmatpush1.msra.mxu0 0.0
  %2436 = vmatprep.subr.mxu0 0.0
  %2437 = vmatpush1.msra.mxu0 0.0
  %2438 = vmatprep.subr.mxu0 0.0
  %2439 = vmatpush1.msra.mxu0 0.0
  %2440 = vmatprep.subr.mxu0 0.0
  %2441 = vmatpush1.msra.mxu0 0.0
  %2442 = vmatprep.subr.mxu0 0.0
  %2443 = vmatpush1.msra.mxu0 0.0
  %2444 = vmatprep.subr.mxu0 0.0
  %2445 = vmatpush1.msra.mxu0 0.0
  %2446 = vmatprep.subr.mxu0 0.0
  %2447 = vmatpush1.msra.mxu0 0.0
  %2448 = vmatprep.mubr.f32.mxu0 0.0
  %v2449 = vand.u32 %v2376, 4294901760
  %v2450 = vsub.f32 %v2376, %v2449
  %v2451 = vand.u32 %v2450, 4294901760
  %v2452 = vsub.f32 %v2450, %v2451
  %v2453 = vand.u32 %v2452, 4294901760
  %2454 = vmatmul.mubr.f32.gmra.mrb[0].mxu0 %v2453
  %v2455 = vpop.f32.mrb[0].mxu0
  %v2456 = vadd.f32 0.0, %v2455
  %v2457 = vpop.f32.mrb[0].mxu0
  %v2458 = vadd.f32 0.0, %v2457
  %2459 = vdwg.mxu0
  %v2460 = vand.u32 %v2362, 4294901760
  %v2461 = vsub.f32 %v2362, %v2460
  %v2462 = vand.u32 %v2461, 4294901760
  %v2463 = vsub.f32 %v2461, %v2462
  %v2464 = vand.u32 %v2463, 4294901760
  %2465 = vmatprep.subr.mxu0 %v2464
  %v2466 = vand.u32 %v2361, 4294901760
  %v2467 = vsub.f32 %v2361, %v2466
  %v2468 = vand.u32 %v2467, 4294901760
  %v2469 = vsub.f32 %v2467, %v2468
  %v2470 = vand.u32 %v2469, 4294901760
  %2471 = vmatpush1.msra.mxu0 %v2470
  %v2472 = vand.u32 %v2366, 4294901760
  %v2473 = vsub.f32 %v2366, %v2472
  %v2474 = vand.u32 %v2473, 4294901760
  %v2475 = vsub.f32 %v2473, %v2474
  %v2476 = vand.u32 %v2475, 4294901760
  %2477 = vmatprep.subr.mxu0 %v2476
  %v2478 = vand.u32 %v2365, 4294901760
  %v2479 = vsub.f32 %v2365, %v2478
  %v2480 = vand.u32 %v2479, 4294901760
  %v2481 = vsub.f32 %v2479, %v2480
  %v2482 = vand.u32 %v2481, 4294901760
  %2483 = vmatpush1.msra.mxu0 %v2482
  %v2484 = vand.u32 %v2370, 4294901760
  %v2485 = vsub.f32 %v2370, %v2484
  %v2486 = vand.u32 %v2485, 4294901760
  %v2487 = vsub.f32 %v2485, %v2486
  %v2488 = vand.u32 %v2487, 4294901760
  %2489 = vmatprep.subr.mxu0 %v2488
  %v2490 = vand.u32 %v2369, 4294901760
  %v2491 = vsub.f32 %v2369, %v2490
  %v2492 = vand.u32 %v2491, 4294901760
  %v2493 = vsub.f32 %v2491, %v2492
  %v2494 = vand.u32 %v2493, 4294901760
  %2495 = vmatpush1.msra.mxu0 %v2494
  %2496 = vmatprep.subr.mxu0 0.0
  %2497 = vmatpush1.msra.mxu0 0.0
  %2498 = vmatprep.subr.mxu0 0.0
  %2499 = vmatpush1.msra.mxu0 0.0
  %2500 = vmatprep.subr.mxu0 0.0
  %2501 = vmatpush1.msra.mxu0 0.0
  %2502 = vmatprep.subr.mxu0 0.0
  %2503 = vmatpush1.msra.mxu0 0.0
  %2504 = vmatprep.subr.mxu0 0.0
  %2505 = vmatpush1.msra.mxu0 0.0
  %2506 = vmatprep.subr.mxu0 0.0
  %2507 = vmatpush1.msra.mxu0 0.0
  %2508 = vmatprep.subr.mxu0 0.0
  %2509 = vmatpush1.msra.mxu0 0.0
  %2510 = vmatprep.subr.mxu0 0.0
  %2511 = vmatpush1.msra.mxu0 0.0
  %2512 = vmatprep.subr.mxu0 0.0
  %2513 = vmatpush1.msra.mxu0 0.0
  %2514 = vmatprep.subr.mxu0 0.0
  %2515 = vmatpush1.msra.mxu0 0.0
  %2516 = vmatprep.subr.mxu0 0.0
  %2517 = vmatpush1.msra.mxu0 0.0
  %2518 = vmatprep.subr.mxu0 0.0
  %2519 = vmatpush1.msra.mxu0 0.0
  %2520 = vmatprep.subr.mxu0 0.0
  %2521 = vmatpush1.msra.mxu0 0.0
  %2522 = vmatprep.subr.mxu0 0.0
  %2523 = vmatpush1.msra.mxu0 0.0
  %2524 = vmatprep.subr.mxu0 0.0
  %2525 = vmatpush1.msra.mxu0 0.0
  %2526 = vmatprep.subr.mxu0 0.0
  %2527 = vmatpush1.msra.mxu0 0.0
  %2528 = vmatprep.subr.mxu0 0.0
  %2529 = vmatpush1.msra.mxu0 0.0
  %2530 = vmatprep.subr.mxu0 0.0
  %2531 = vmatpush1.msra.mxu0 0.0
  %2532 = vmatprep.subr.mxu0 0.0
  %2533 = vmatpush1.msra.mxu0 0.0
  %2534 = vmatprep.subr.mxu0 0.0
  %2535 = vmatpush1.msra.mxu0 0.0
  %2536 = vmatprep.subr.mxu0 0.0
  %2537 = vmatpush1.msra.mxu0 0.0
  %2538 = vmatprep.subr.mxu0 0.0
  %2539 = vmatpush1.msra.mxu0 0.0
  %2540 = vmatprep.subr.mxu0 0.0
  %2541 = vmatpush1.msra.mxu0 0.0
  %2542 = vmatprep.subr.mxu0 0.0
  %2543 = vmatpush1.msra.mxu0 0.0
  %2544 = vmatprep.subr.mxu0 0.0
  %2545 = vmatpush1.msra.mxu0 0.0
  %2546 = vmatprep.subr.mxu0 0.0
  %2547 = vmatpush1.msra.mxu0 0.0
  %2548 = vmatprep.subr.mxu0 0.0
  %2549 = vmatpush1.msra.mxu0 0.0
  %2550 = vmatprep.subr.mxu0 0.0
  %2551 = vmatpush1.msra.mxu0 0.0
  %2552 = vmatprep.subr.mxu0 0.0
  %2553 = vmatpush1.msra.mxu0 0.0
  %2554 = vmatprep.mubr.f32.mxu0 0.0
  %v2555 = vand.u32 %v2376, 4294901760
  %2556 = vmatmul.mubr.f32.gmra.mrb[0].mxu0 %v2555
  %v2557 = vpop.f32.mrb[0].mxu0
  %v2558 = vadd.f32 %v2456, %v2557
  %v2559 = vpop.f32.mrb[0].mxu0
  %v2560 = vadd.f32 %v2458, %v2559
  %2561 = vdwg.mxu0
  %v2562 = vand.u32 %v2362, 4294901760
  %v2563 = vsub.f32 %v2362, %v2562
  %2564 = vmatprep.subr.mxu0 %v2563
  %v2565 = vand.u32 %v2361, 4294901760
  %v2566 = vsub.f32 %v2361, %v2565
  %2567 = vmatpush1.msra.mxu0 %v2566
  %v2568 = vand.u32 %v2366, 4294901760
  %v2569 = vsub.f32 %v2366, %v2568
  %2570 = vmatprep.subr.mxu0 %v2569
  %v2571 = vand.u32 %v2365, 4294901760
  %v2572 = vsub.f32 %v2365, %v2571
  %2573 = vmatpush1.msra.mxu0 %v2572
  %v2574 = vand.u32 %v2370, 4294901760
  %v2575 = vsub.f32 %v2370, %v2574
  %2576 = vmatprep.subr.mxu0 %v2575
  %v2577 = vand.u32 %v2369, 4294901760
  %v2578 = vsub.f32 %v2369, %v2577
  %2579 = vmatpush1.msra.mxu0 %v2578
  %2580 = vmatprep.subr.mxu0 0.0
  %2581 = vmatpush1.msra.mxu0 0.0
  %2582 = vmatprep.subr.mxu0 0.0
  %2583 = vmatpush1.msra.mxu0 0.0
  %2584 = vmatprep.subr.mxu0 0.0
  %2585 = vmatpush1.msra.mxu0 0.0
  %2586 = vmatprep.subr.mxu0 0.0
  %2587 = vmatpush1.msra.mxu0 0.0
  %2588 = vmatprep.subr.mxu0 0.0
  %2589 = vmatpush1.msra.mxu0 0.0
  %2590 = vmatprep.subr.mxu0 0.0
  %2591 = vmatpush1.msra.mxu0 0.0
  %2592 = vmatprep.subr.mxu0 0.0
  %2593 = vmatpush1.msra.mxu0 0.0
  %2594 = vmatprep.subr.mxu0 0.0
  %2595 = vmatpush1.msra.mxu0 0.0
  %2596 = vmatprep.subr.mxu0 0.0
  %2597 = vmatpush1.msra.mxu0 0.0
  %2598 = vmatprep.subr.mxu0 0.0
  %2599 = vmatpush1.msra.mxu0 0.0
  %2600 = vmatprep.subr.mxu0 0.0
  %2601 = vmatpush1.msra.mxu0 0.0
  %2602 = vmatprep.subr.mxu0 0.0
  %2603 = vmatpush1.msra.mxu0 0.0
  %2604 = vmatprep.subr.mxu0 0.0
  %2605 = vmatpush1.msra.mxu0 0.0
  %2606 = vmatprep.subr.mxu0 0.0
  %2607 = vmatpush1.msra.mxu0 0.0
  %2608 = vmatprep.subr.mxu0 0.0
  %2609 = vmatpush1.msra.mxu0 0.0
  %2610 = vmatprep.subr.mxu0 0.0
  %2611 = vmatpush1.msra.mxu0 0.0
  %2612 = vmatprep.subr.mxu0 0.0
  %2613 = vmatpush1.msra.mxu0 0.0
  %2614 = vmatprep.subr.mxu0 0.0
  %2615 = vmatpush1.msra.mxu0 0.0
  %2616 = vmatprep.subr.mxu0 0.0
  %2617 = vmatpush1.msra.mxu0 0.0
  %2618 = vmatprep.subr.mxu0 0.0
  %2619 = vmatpush1.msra.mxu0 0.0
  %2620 = vmatprep.subr.mxu0 0.0
  %2621 = vmatpush1.msra.mxu0 0.0
  %2622 = vmatprep.subr.mxu0 0.0
  %2623 = vmatpush1.msra.mxu0 0.0
  %2624 = vmatprep.subr.mxu0 0.0
  %2625 = vmatpush1.msra.mxu0 0.0
  %2626 = vmatprep.subr.mxu0 0.0
  %2627 = vmatpush1.msra.mxu0 0.0
  %2628 = vmatprep.subr.mxu0 0.0
  %2629 = vmatpush1.msra.mxu0 0.0
  %2630 = vmatprep.subr.mxu0 0.0
  %2631 = vmatpush1.msra.mxu0 0.0
  %2632 = vmatprep.subr.mxu0 0.0
  %2633 = vmatpush1.msra.mxu0 0.0
  %2634 = vmatprep.subr.mxu0 0.0
  %2635 = vmatpush1.msra.mxu0 0.0
  %2636 = vmatprep.subr.mxu0 0.0
  %2637 = vmatpush1.msra.mxu0 0.0
  %2638 = vmatprep.mubr.f32.mxu0 0.0
  %v2639 = vand.u32 %v2376, 4294901760
  %v2640 = vsub.f32 %v2376, %v2639
  %2641 = vmatmul.mubr.f32.gmra.mrb[0].mxu0 %v2640
  %v2642 = vpop.f32.mrb[0].mxu0
  %v2643 = vadd.f32 %v2558, %v2642
  %v2644 = vpop.f32.mrb[0].mxu0
  %v2645 = vadd.f32 %v2560, %v2644
  %2646 = vdwg.mxu0
  %v2647 = vand.u32 %v2362, 4294901760
  %2648 = vmatprep.subr.mxu0 %v2647
  %v2649 = vand.u32 %v2361, 4294901760
  %2650 = vmatpush1.msra.mxu0 %v2649
  %v2651 = vand.u32 %v2366, 4294901760
  %2652 = vmatprep.subr.mxu0 %v2651
  %v2653 = vand.u32 %v2365, 4294901760
  %2654 = vmatpush1.msra.mxu0 %v2653
  %v2655 = vand.u32 %v2370, 4294901760
  %2656 = vmatprep.subr.mxu0 %v2655
  %v2657 = vand.u32 %v2369, 4294901760
  %2658 = vmatpush1.msra.mxu0 %v2657
  %2659 = vmatprep.subr.mxu0 0.0
  %2660 = vmatpush1.msra.mxu0 0.0
  %2661 = vmatprep.subr.mxu0 0.0
  %2662 = vmatpush1.msra.mxu0 0.0
  %2663 = vmatprep.subr.mxu0 0.0
  %2664 = vmatpush1.msra.mxu0 0.0
  %2665 = vmatprep.subr.mxu0 0.0
  %2666 = vmatpush1.msra.mxu0 0.0
  %2667 = vmatprep.subr.mxu0 0.0
  %2668 = vmatpush1.msra.mxu0 0.0
  %2669 = vmatprep.subr.mxu0 0.0
  %2670 = vmatpush1.msra.mxu0 0.0
  %2671 = vmatprep.subr.mxu0 0.0
  %2672 = vmatpush1.msra.mxu0 0.0
  %2673 = vmatprep.subr.mxu0 0.0
  %2674 = vmatpush1.msra.mxu0 0.0
  %2675 = vmatprep.subr.mxu0 0.0
  %2676 = vmatpush1.msra.mxu0 0.0
  %2677 = vmatprep.subr.mxu0 0.0
  %2678 = vmatpush1.msra.mxu0 0.0
  %2679 = vmatprep.subr.mxu0 0.0
  %2680 = vmatpush1.msra.mxu0 0.0
  %2681 = vmatprep.subr.mxu0 0.0
  %2682 = vmatpush1.msra.mxu0 0.0
  %2683 = vmatprep.subr.mxu0 0.0
  %2684 = vmatpush1.msra.mxu0 0.0
  %2685 = vmatprep.subr.mxu0 0.0
  %2686 = vmatpush1.msra.mxu0 0.0
  %2687 = vmatprep.subr.mxu0 0.0
  %2688 = vmatpush1.msra.mxu0 0.0
  %2689 = vmatprep.subr.mxu0 0.0
  %2690 = vmatpush1.msra.mxu0 0.0
  %2691 = vmatprep.subr.mxu0 0.0
  %2692 = vmatpush1.msra.mxu0 0.0
  %2693 = vmatprep.subr.mxu0 0.0
  %2694 = vmatpush1.msra.mxu0 0.0
  %2695 = vmatprep.subr.mxu0 0.0
  %2696 = vmatpush1.msra.mxu0 0.0
  %2697 = vmatprep.subr.mxu0 0.0
  %2698 = vmatpush1.msra.mxu0 0.0
  %2699 = vmatprep.subr.mxu0 0.0
  %2700 = vmatpush1.msra.mxu0 0.0
  %2701 = vmatprep.subr.mxu0 0.0
  %2702 = vmatpush1.msra.mxu0 0.0
  %2703 = vmatprep.subr.mxu0 0.0
  %2704 = vmatpush1.msra.mxu0 0.0
  %2705 = vmatprep.subr.mxu0 0.0
  %2706 = vmatpush1.msra.mxu0 0.0
  %2707 = vmatprep.subr.mxu0 0.0
  %2708 = vmatpush1.msra.mxu0 0.0
  %2709 = vmatprep.subr.mxu0 0.0
  %2710 = vmatpush1.msra.mxu0 0.0
  %2711 = vmatprep.subr.mxu0 0.0
  %2712 = vmatpush1.msra.mxu0 0.0
  %2713 = vmatprep.subr.mxu0 0.0
  %2714 = vmatpush1.msra.mxu0 0.0
  %2715 = vmatprep.subr.mxu0 0.0
  %2716 = vmatpush1.msra.mxu0 0.0
  %2717 = vmatprep.mubr.f32.mxu0 0.0
  %v2718 = vand.u32 %v2376, 4294901760
  %v2719 = vsub.f32 %v2376, %v2718
  %v2720 = vand.u32 %v2719, 4294901760
  %2721 = vmatmul.mubr.f32.gmra.mrb[0].mxu0 %v2720
  %v2722 = vpop.f32.mrb[0].mxu0
  %v2723 = vadd.f32 %v2643, %v2722
  %v2724 = vpop.f32.mrb[0].mxu0
  %v2725 = vadd.f32 %v2645, %v2724
  %2726 = vdwg.mxu0
  %v2727 = vand.u32 %v2362, 4294901760
  %v2728 = vsub.f32 %v2362, %v2727
  %v2729 = vand.u32 %v2728, 4294901760
  %2730 = vmatprep.subr.mxu0 %v2729
  %v2731 = vand.u32 %v2361, 4294901760
  %v2732 = vsub.f32 %v2361, %v2731
  %v2733 = vand.u32 %v2732, 4294901760
  %2734 = vmatpush1.msra.mxu0 %v2733
  %v2735 = vand.u32 %v2366, 4294901760
  %v2736 = vsub.f32 %v2366, %v2735
  %v2737 = vand.u32 %v2736, 4294901760
  %2738 = vmatprep.subr.mxu0 %v2737
  %v2739 = vand.u32 %v2365, 4294901760
  %v2740 = vsub.f32 %v2365, %v2739
  %v2741 = vand.u32 %v2740, 4294901760
  %2742 = vmatpush1.msra.mxu0 %v2741
  %v2743 = vand.u32 %v2370, 4294901760
  %v2744 = vsub.f32 %v2370, %v2743
  %v2745 = vand.u32 %v2744, 4294901760
  %2746 = vmatprep.subr.mxu0 %v2745
  %v2747 = vand.u32 %v2369, 4294901760
  %v2748 = vsub.f32 %v2369, %v2747
  %v2749 = vand.u32 %v2748, 4294901760
  %2750 = vmatpush1.msra.mxu0 %v2749
  %2751 = vmatprep.subr.mxu0 0.0
  %2752 = vmatpush1.msra.mxu0 0.0
  %2753 = vmatprep.subr.mxu0 0.0
  %2754 = vmatpush1.msra.mxu0 0.0
  %2755 = vmatprep.subr.mxu0 0.0
  %2756 = vmatpush1.msra.mxu0 0.0
  %2757 = vmatprep.subr.mxu0 0.0
  %2758 = vmatpush1.msra.mxu0 0.0
  %2759 = vmatprep.subr.mxu0 0.0
  %2760 = vmatpush1.msra.mxu0 0.0
  %2761 = vmatprep.subr.mxu0 0.0
  %2762 = vmatpush1.msra.mxu0 0.0
  %2763 = vmatprep.subr.mxu0 0.0
  %2764 = vmatpush1.msra.mxu0 0.0
  %2765 = vmatprep.subr.mxu0 0.0
  %2766 = vmatpush1.msra.mxu0 0.0
  %2767 = vmatprep.subr.mxu0 0.0
  %2768 = vmatpush1.msra.mxu0 0.0
  %2769 = vmatprep.subr.mxu0 0.0
  %2770 = vmatpush1.msra.mxu0 0.0
  %2771 = vmatprep.subr.mxu0 0.0
  %2772 = vmatpush1.msra.mxu0 0.0
  %2773 = vmatprep.subr.mxu0 0.0
  %2774 = vmatpush1.msra.mxu0 0.0
  %2775 = vmatprep.subr.mxu0 0.0
  %2776 = vmatpush1.msra.mxu0 0.0
  %2777 = vmatprep.subr.mxu0 0.0
  %2778 = vmatpush1.msra.mxu0 0.0
  %2779 = vmatprep.subr.mxu0 0.0
  %2780 = vmatpush1.msra.mxu0 0.0
  %2781 = vmatprep.subr.mxu0 0.0
  %2782 = vmatpush1.msra.mxu0 0.0
  %2783 = vmatprep.subr.mxu0 0.0
  %2784 = vmatpush1.msra.mxu0 0.0
  %2785 = vmatprep.subr.mxu0 0.0
  %2786 = vmatpush1.msra.mxu0 0.0
  %2787 = vmatprep.subr.mxu0 0.0
  %2788 = vmatpush1.msra.mxu0 0.0
  %2789 = vmatprep.subr.mxu0 0.0
  %2790 = vmatpush1.msra.mxu0 0.0
  %2791 = vmatprep.subr.mxu0 0.0
  %2792 = vmatpush1.msra.mxu0 0.0
  %2793 = vmatprep.subr.mxu0 0.0
  %2794 = vmatpush1.msra.mxu0 0.0
  %2795 = vmatprep.subr.mxu0 0.0
  %2796 = vmatpush1.msra.mxu0 0.0
  %2797 = vmatprep.subr.mxu0 0.0
  %2798 = vmatpush1.msra.mxu0 0.0
  %2799 = vmatprep.subr.mxu0 0.0
  %2800 = vmatpush1.msra.mxu0 0.0
  %2801 = vmatprep.subr.mxu0 0.0
  %2802 = vmatpush1.msra.mxu0 0.0
  %2803 = vmatprep.subr.mxu0 0.0
  %2804 = vmatpush1.msra.mxu0 0.0
  %2805 = vmatprep.subr.mxu0 0.0
  %2806 = vmatpush1.msra.mxu0 0.0
  %2807 = vmatprep.subr.mxu0 0.0
  %2808 = vmatpush1.msra.mxu0 0.0
  %2809 = vmatprep.mubr.f32.mxu0 0.0
  %v2810 = vand.u32 %v2376, 4294901760
  %2811 = vmatmul.mubr.f32.gmra.mrb[0].mxu0 %v2810
  %v2812 = vpop.f32.mrb[0].mxu0
  %v2813 = vadd.f32 %v2723, %v2812
  %v2814 = vpop.f32.mrb[0].mxu0
  %v2815 = vadd.f32 %v2725, %v2814
  %2816 = vdwg.mxu0
  %v2817 = vand.u32 %v2362, 4294901760
  %2818 = vmatprep.subr.mxu0 %v2817
  %v2819 = vand.u32 %v2361, 4294901760
  %2820 = vmatpush1.msra.mxu0 %v2819
  %v2821 = vand.u32 %v2366, 4294901760
  %2822 = vmatprep.subr.mxu0 %v2821
  %v2823 = vand.u32 %v2365, 4294901760
  %2824 = vmatpush1.msra.mxu0 %v2823
  %v2825 = vand.u32 %v2370, 4294901760
  %2826 = vmatprep.subr.mxu0 %v2825
  %v2827 = vand.u32 %v2369, 4294901760
  %2828 = vmatpush1.msra.mxu0 %v2827
  %2829 = vmatprep.subr.mxu0 0.0
  %2830 = vmatpush1.msra.mxu0 0.0
  %2831 = vmatprep.subr.mxu0 0.0
  %2832 = vmatpush1.msra.mxu0 0.0
  %2833 = vmatprep.subr.mxu0 0.0
  %2834 = vmatpush1.msra.mxu0 0.0
  %2835 = vmatprep.subr.mxu0 0.0
  %2836 = vmatpush1.msra.mxu0 0.0
  %2837 = vmatprep.subr.mxu0 0.0
  %2838 = vmatpush1.msra.mxu0 0.0
  %2839 = vmatprep.subr.mxu0 0.0
  %2840 = vmatpush1.msra.mxu0 0.0
  %2841 = vmatprep.subr.mxu0 0.0
  %2842 = vmatpush1.msra.mxu0 0.0
  %2843 = vmatprep.subr.mxu0 0.0
  %2844 = vmatpush1.msra.mxu0 0.0
  %2845 = vmatprep.subr.mxu0 0.0
  %2846 = vmatpush1.msra.mxu0 0.0
  %2847 = vmatprep.subr.mxu0 0.0
  %2848 = vmatpush1.msra.mxu0 0.0
  %2849 = vmatprep.subr.mxu0 0.0
  %2850 = vmatpush1.msra.mxu0 0.0
  %2851 = vmatprep.subr.mxu0 0.0
  %2852 = vmatpush1.msra.mxu0 0.0
  %2853 = vmatprep.subr.mxu0 0.0
  %2854 = vmatpush1.msra.mxu0 0.0
  %2855 = vmatprep.subr.mxu0 0.0
  %2856 = vmatpush1.msra.mxu0 0.0
  %2857 = vmatprep.subr.mxu0 0.0
  %2858 = vmatpush1.msra.mxu0 0.0
  %2859 = vmatprep.subr.mxu0 0.0
  %2860 = vmatpush1.msra.mxu0 0.0
  %2861 = vmatprep.subr.mxu0 0.0
  %2862 = vmatpush1.msra.mxu0 0.0
  %2863 = vmatprep.subr.mxu0 0.0
  %2864 = vmatpush1.msra.mxu0 0.0
  %2865 = vmatprep.subr.mxu0 0.0
  %2866 = vmatpush1.msra.mxu0 0.0
  %2867 = vmatprep.subr.mxu0 0.0
  %2868 = vmatpush1.msra.mxu0 0.0
  %2869 = vmatprep.subr.mxu0 0.0
  %2870 = vmatpush1.msra.mxu0 0.0
  %2871 = vmatprep.subr.mxu0 0.0
  %2872 = vmatpush1.msra.mxu0 0.0
  %2873 = vmatprep.subr.mxu0 0.0
  %2874 = vmatpush1.msra.mxu0 0.0
  %2875 = vmatprep.subr.mxu0 0.0
  %2876 = vmatpush1.msra.mxu0 0.0
  %2877 = vmatprep.subr.mxu0 0.0
  %2878 = vmatpush1.msra.mxu0 0.0
  %2879 = vmatprep.subr.mxu0 0.0
  %2880 = vmatpush1.msra.mxu0 0.0
  %2881 = vmatprep.subr.mxu0 0.0
  %2882 = vmatpush1.msra.mxu0 0.0
  %2883 = vmatprep.subr.mxu0 0.0
  %2884 = vmatpush1.msra.mxu0 0.0
  %2885 = vmatprep.subr.mxu0 0.0
  %2886 = vmatpush1.msra.mxu0 0.0
  %2887 = vmatprep.mubr.f32.mxu0 0.0
  %v2888 = vand.u32 %v2376, 4294901760
  %2889 = vmatmul.mubr.f32.gmra.mrb[0].mxu0 %v2888
  %v2890 = vpop.f32.mrb[0].mxu0
  %v2891 = vadd.f32 %v2813, %v2890
  %v2892 = vpop.f32.mrb[0].mxu0
  %v2893 = vadd.f32 %v2815, %v2892
  %2894 = vdwg.mxu0
  %v2895 = vand.u32 %v2364, 4294901760
  %2896 = vmatprep.subr.mxu0 %v2895
  %v2897 = vand.u32 %v2363, 4294901760
  %2898 = vmatpush1.msra.mxu0 %v2897
  %v2899 = vand.u32 %v2368, 4294901760
  %2900 = vmatprep.subr.mxu0 %v2899
  %v2901 = vand.u32 %v2367, 4294901760
  %2902 = vmatpush1.msra.mxu0 %v2901
  %v2903 = vand.u32 %v2372, 4294901760
  %2904 = vmatprep.subr.mxu0 %v2903
  %v2905 = vand.u32 %v2371, 4294901760
  %2906 = vmatpush1.msra.mxu0 %v2905
  %2907 = vmatprep.subr.mxu0 0.0
  %2908 = vmatpush1.msra.mxu0 0.0
  %2909 = vmatprep.subr.mxu0 0.0
  %2910 = vmatpush1.msra.mxu0 0.0
  %2911 = vmatprep.subr.mxu0 0.0
  %2912 = vmatpush1.msra.mxu0 0.0
  %2913 = vmatprep.subr.mxu0 0.0
  %2914 = vmatpush1.msra.mxu0 0.0
  %2915 = vmatprep.subr.mxu0 0.0
  %2916 = vmatpush1.msra.mxu0 0.0
  %2917 = vmatprep.subr.mxu0 0.0
  %2918 = vmatpush1.msra.mxu0 0.0
  %2919 = vmatprep.subr.mxu0 0.0
  %2920 = vmatpush1.msra.mxu0 0.0
  %2921 = vmatprep.subr.mxu0 0.0
  %2922 = vmatpush1.msra.mxu0 0.0
  %2923 = vmatprep.subr.mxu0 0.0
  %2924 = vmatpush1.msra.mxu0 0.0
  %2925 = vmatprep.subr.mxu0 0.0
  %2926 = vmatpush1.msra.mxu0 0.0
  %2927 = vmatprep.subr.mxu0 0.0
  %2928 = vmatpush1.msra.mxu0 0.0
  %2929 = vmatprep.subr.mxu0 0.0
  %2930 = vmatpush1.msra.mxu0 0.0
  %2931 = vmatprep.subr.mxu0 0.0
  %2932 = vmatpush1.msra.mxu0 0.0
  %2933 = vmatprep.subr.mxu0 0.0
  %2934 = vmatpush1.msra.mxu0 0.0
  %2935 = vmatprep.subr.mxu0 0.0
  %2936 = vmatpush1.msra.mxu0 0.0
  %2937 = vmatprep.subr.mxu0 0.0
  %2938 = vmatpush1.msra.mxu0 0.0
  %2939 = vmatprep.subr.mxu0 0.0
  %2940 = vmatpush1.msra.mxu0 0.0
  %2941 = vmatprep.subr.mxu0 0.0
  %2942 = vmatpush1.msra.mxu0 0.0
  %2943 = vmatprep.subr.mxu0 0.0
  %2944 = vmatpush1.msra.mxu0 0.0
  %2945 = vmatprep.subr.mxu0 0.0
  %2946 = vmatpush1.msra.mxu0 0.0
  %2947 = vmatprep.subr.mxu0 0.0
  %2948 = vmatpush1.msra.mxu0 0.0
  %2949 = vmatprep.subr.mxu0 0.0
  %2950 = vmatpush1.msra.mxu0 0.0
  %2951 = vmatprep.subr.mxu0 0.0
  %2952 = vmatpush1.msra.mxu0 0.0
  %2953 = vmatprep.subr.mxu0 0.0
  %2954 = vmatpush1.msra.mxu0 0.0
  %2955 = vmatprep.subr.mxu0 0.0
  %2956 = vmatpush1.msra.mxu0 0.0
  %2957 = vmatprep.subr.mxu0 0.0
  %2958 = vmatpush1.msra.mxu0 0.0
  %2959 = vmatprep.subr.mxu0 0.0
  %2960 = vmatpush1.msra.mxu0 0.0
  %2961 = vmatprep.subr.mxu0 0.0
  %2962 = vmatpush1.msra.mxu0 0.0
  %2963 = vmatprep.subr.mxu0 0.0
  %2964 = vmatpush1.msra.mxu0 0.0
  %2965 = vmatprep.mubr.f32.mxu0 0.0
  %v2966 = vand.u32 %v2376, 4294901760
  %v2967 = vsub.f32 %v2376, %v2966
  %v2968 = vand.u32 %v2967, 4294901760
  %v2969 = vsub.f32 %v2967, %v2968
  %v2970 = vand.u32 %v2969, 4294901760
  %2971 = vmatmul.mubr.f32.gmra.mrb[0].mxu0 %v2970
  %v2972 = vpop.f32.mrb[0].mxu0
  %v2973 = vadd.f32 0.0, %v2972
  %v2974 = vpop.f32.mrb[0].mxu0
  %v2975 = vadd.f32 0.0, %v2974
  %2976 = vdwg.mxu0
  %v2977 = vand.u32 %v2364, 4294901760
  %v2978 = vsub.f32 %v2364, %v2977
  %v2979 = vand.u32 %v2978, 4294901760
  %v2980 = vsub.f32 %v2978, %v2979
  %v2981 = vand.u32 %v2980, 4294901760
  %2982 = vmatprep.subr.mxu0 %v2981
  %v2983 = vand.u32 %v2363, 4294901760
  %v2984 = vsub.f32 %v2363, %v2983
  %v2985 = vand.u32 %v2984, 4294901760
  %v2986 = vsub.f32 %v2984, %v2985
  %v2987 = vand.u32 %v2986, 4294901760
  %2988 = vmatpush1.msra.mxu0 %v2987
  %v2989 = vand.u32 %v2368, 4294901760
  %v2990 = vsub.f32 %v2368, %v2989
  %v2991 = vand.u32 %v2990, 4294901760
  %v2992 = vsub.f32 %v2990, %v2991
  %v2993 = vand.u32 %v2992, 4294901760
  %2994 = vmatprep.subr.mxu0 %v2993
  %v2995 = vand.u32 %v2367, 4294901760
  %v2996 = vsub.f32 %v2367, %v2995
  %v2997 = vand.u32 %v2996, 4294901760
  %v2998 = vsub.f32 %v2996, %v2997
  %v2999 = vand.u32 %v2998, 4294901760
  %3000 = vmatpush1.msra.mxu0 %v2999
  %v3001 = vand.u32 %v2372, 4294901760
  %v3002 = vsub.f32 %v2372, %v3001
  %v3003 = vand.u32 %v3002, 4294901760
  %v3004 = vsub.f32 %v3002, %v3003
  %v3005 = vand.u32 %v3004, 4294901760
  %3006 = vmatprep.subr.mxu0 %v3005
  %v3007 = vand.u32 %v2371, 4294901760
  %v3008 = vsub.f32 %v2371, %v3007
  %v3009 = vand.u32 %v3008, 4294901760
  %v3010 = vsub.f32 %v3008, %v3009
  %v3011 = vand.u32 %v3010, 4294901760
  %3012 = vmatpush1.msra.mxu0 %v3011
  %3013 = vmatprep.subr.mxu0 0.0
  %3014 = vmatpush1.msra.mxu0 0.0
  %3015 = vmatprep.subr.mxu0 0.0
  %3016 = vmatpush1.msra.mxu0 0.0
  %3017 = vmatprep.subr.mxu0 0.0
  %3018 = vmatpush1.msra.mxu0 0.0
  %3019 = vmatprep.subr.mxu0 0.0
  %3020 = vmatpush1.msra.mxu0 0.0
  %3021 = vmatprep.subr.mxu0 0.0
  %3022 = vmatpush1.msra.mxu0 0.0
  %3023 = vmatprep.subr.mxu0 0.0
  %3024 = vmatpush1.msra.mxu0 0.0
  %3025 = vmatprep.subr.mxu0 0.0
  %3026 = vmatpush1.msra.mxu0 0.0
  %3027 = vmatprep.subr.mxu0 0.0
  %3028 = vmatpush1.msra.mxu0 0.0
  %3029 = vmatprep.subr.mxu0 0.0
  %3030 = vmatpush1.msra.mxu0 0.0
  %3031 = vmatprep.subr.mxu0 0.0
  %3032 = vmatpush1.msra.mxu0 0.0
  %3033 = vmatprep.subr.mxu0 0.0
  %3034 = vmatpush1.msra.mxu0 0.0
  %3035 = vmatprep.subr.mxu0 0.0
  %3036 = vmatpush1.msra.mxu0 0.0
  %3037 = vmatprep.subr.mxu0 0.0
  %3038 = vmatpush1.msra.mxu0 0.0
  %3039 = vmatprep.subr.mxu0 0.0
  %3040 = vmatpush1.msra.mxu0 0.0
  %3041 = vmatprep.subr.mxu0 0.0
  %3042 = vmatpush1.msra.mxu0 0.0
  %3043 = vmatprep.subr.mxu0 0.0
  %3044 = vmatpush1.msra.mxu0 0.0
  %3045 = vmatprep.subr.mxu0 0.0
  %3046 = vmatpush1.msra.mxu0 0.0
  %3047 = vmatprep.subr.mxu0 0.0
  %3048 = vmatpush1.msra.mxu0 0.0
  %3049 = vmatprep.subr.mxu0 0.0
  %3050 = vmatpush1.msra.mxu0 0.0
  %3051 = vmatprep.subr.mxu0 0.0
  %3052 = vmatpush1.msra.mxu0 0.0
  %3053 = vmatprep.subr.mxu0 0.0
  %3054 = vmatpush1.msra.mxu0 0.0
  %3055 = vmatprep.subr.mxu0 0.0
  %3056 = vmatpush1.msra.mxu0 0.0
  %3057 = vmatprep.subr.mxu0 0.0
  %3058 = vmatpush1.msra.mxu0 0.0
  %3059 = vmatprep.subr.mxu0 0.0
  %3060 = vmatpush1.msra.mxu0 0.0
  %3061 = vmatprep.subr.mxu0 0.0
  %3062 = vmatpush1.msra.mxu0 0.0
  %3063 = vmatprep.subr.mxu0 0.0
  %3064 = vmatpush1.msra.mxu0 0.0
  %3065 = vmatprep.subr.mxu0 0.0
  %3066 = vmatpush1.msra.mxu0 0.0
  %3067 = vmatprep.subr.mxu0 0.0
  %3068 = vmatpush1.msra.mxu0 0.0
  %3069 = vmatprep.subr.mxu0 0.0
  %3070 = vmatpush1.msra.mxu0 0.0
  %3071 = vmatprep.mubr.f32.mxu0 0.0
  %v3072 = vand.u32 %v2376, 4294901760
  %3073 = vmatmul.mubr.f32.gmra.mrb[0].mxu0 %v3072
  %v3074 = vpop.f32.mrb[0].mxu0
  %v3075 = vadd.f32 %v2973, %v3074
  %v3076 = vpop.f32.mrb[0].mxu0
  %v3077 = vadd.f32 %v2975, %v3076
  %3078 = vdwg.mxu0
  %v3079 = vand.u32 %v2364, 4294901760
  %v3080 = vsub.f32 %v2364, %v3079
  %3081 = vmatprep.subr.mxu0 %v3080
  %v3082 = vand.u32 %v2363, 4294901760
  %v3083 = vsub.f32 %v2363, %v3082
  %3084 = vmatpush1.msra.mxu0 %v3083
  %v3085 = vand.u32 %v2368, 4294901760
  %v3086 = vsub.f32 %v2368, %v3085
  %3087 = vmatprep.subr.mxu0 %v3086
  %v3088 = vand.u32 %v2367, 4294901760
  %v3089 = vsub.f32 %v2367, %v3088
  %3090 = vmatpush1.msra.mxu0 %v3089
  %v3091 = vand.u32 %v2372, 4294901760
  %v3092 = vsub.f32 %v2372, %v3091
  %3093 = vmatprep.subr.mxu0 %v3092
  %v3094 = vand.u32 %v2371, 4294901760
  %v3095 = vsub.f32 %v2371, %v3094
  %3096 = vmatpush1.msra.mxu0 %v3095
  %3097 = vmatprep.subr.mxu0 0.0
  %3098 = vmatpush1.msra.mxu0 0.0
  %3099 = vmatprep.subr.mxu0 0.0
  %3100 = vmatpush1.msra.mxu0 0.0
  %3101 = vmatprep.subr.mxu0 0.0
  %3102 = vmatpush1.msra.mxu0 0.0
  %3103 = vmatprep.subr.mxu0 0.0
  %3104 = vmatpush1.msra.mxu0 0.0
  %3105 = vmatprep.subr.mxu0 0.0
  %3106 = vmatpush1.msra.mxu0 0.0
  %3107 = vmatprep.subr.mxu0 0.0
  %3108 = vmatpush1.msra.mxu0 0.0
  %3109 = vmatprep.subr.mxu0 0.0
  %3110 = vmatpush1.msra.mxu0 0.0
  %3111 = vmatprep.subr.mxu0 0.0
  %3112 = vmatpush1.msra.mxu0 0.0
  %3113 = vmatprep.subr.mxu0 0.0
  %3114 = vmatpush1.msra.mxu0 0.0
  %3115 = vmatprep.subr.mxu0 0.0
  %3116 = vmatpush1.msra.mxu0 0.0
  %3117 = vmatprep.subr.mxu0 0.0
  %3118 = vmatpush1.msra.mxu0 0.0
  %3119 = vmatprep.subr.mxu0 0.0
  %3120 = vmatpush1.msra.mxu0 0.0
  %3121 = vmatprep.subr.mxu0 0.0
  %3122 = vmatpush1.msra.mxu0 0.0
  %3123 = vmatprep.subr.mxu0 0.0
  %3124 = vmatpush1.msra.mxu0 0.0
  %3125 = vmatprep.subr.mxu0 0.0
  %3126 = vmatpush1.msra.mxu0 0.0
  %3127 = vmatprep.subr.mxu0 0.0
  %3128 = vmatpush1.msra.mxu0 0.0
  %3129 = vmatprep.subr.mxu0 0.0
  %3130 = vmatpush1.msra.mxu0 0.0
  %3131 = vmatprep.subr.mxu0 0.0
  %3132 = vmatpush1.msra.mxu0 0.0
  %3133 = vmatprep.subr.mxu0 0.0
  %3134 = vmatpush1.msra.mxu0 0.0
  %3135 = vmatprep.subr.mxu0 0.0
  %3136 = vmatpush1.msra.mxu0 0.0
  %3137 = vmatprep.subr.mxu0 0.0
  %3138 = vmatpush1.msra.mxu0 0.0
  %3139 = vmatprep.subr.mxu0 0.0
  %3140 = vmatpush1.msra.mxu0 0.0
  %3141 = vmatprep.subr.mxu0 0.0
  %3142 = vmatpush1.msra.mxu0 0.0
  %3143 = vmatprep.subr.mxu0 0.0
  %3144 = vmatpush1.msra.mxu0 0.0
  %3145 = vmatprep.subr.mxu0 0.0
  %3146 = vmatpush1.msra.mxu0 0.0
  %3147 = vmatprep.subr.mxu0 0.0
  %3148 = vmatpush1.msra.mxu0 0.0
  %3149 = vmatprep.subr.mxu0 0.0
  %3150 = vmatpush1.msra.mxu0 0.0
  %3151 = vmatprep.subr.mxu0 0.0
  %3152 = vmatpush1.msra.mxu0 0.0
  %3153 = vmatprep.subr.mxu0 0.0
  %3154 = vmatpush1.msra.mxu0 0.0
  %3155 = vmatprep.mubr.f32.mxu0 0.0
  %v3156 = vand.u32 %v2376, 4294901760
  %v3157 = vsub.f32 %v2376, %v3156
  %3158 = vmatmul.mubr.f32.gmra.mrb[0].mxu0 %v3157
  %v3159 = vpop.f32.mrb[0].mxu0
  %v3160 = vadd.f32 %v3075, %v3159
  %v3161 = vpop.f32.mrb[0].mxu0
  %v3162 = vadd.f32 %v3077, %v3161
  %3163 = vdwg.mxu0
  %v3164 = vand.u32 %v2364, 4294901760
  %3165 = vmatprep.subr.mxu0 %v3164
  %v3166 = vand.u32 %v2363, 4294901760
  %3167 = vmatpush1.msra.mxu0 %v3166
  %v3168 = vand.u32 %v2368, 4294901760
  %3169 = vmatprep.subr.mxu0 %v3168
  %v3170 = vand.u32 %v2367, 4294901760
  %3171 = vmatpush1.msra.mxu0 %v3170
  %v3172 = vand.u32 %v2372, 4294901760
  %3173 = vmatprep.subr.mxu0 %v3172
  %v3174 = vand.u32 %v2371, 4294901760
  %3175 = vmatpush1.msra.mxu0 %v3174
  %3176 = vmatprep.subr.mxu0 0.0
  %3177 = vmatpush1.msra.mxu0 0.0
  %3178 = vmatprep.subr.mxu0 0.0
  %3179 = vmatpush1.msra.mxu0 0.0
  %3180 = vmatprep.subr.mxu0 0.0
  %3181 = vmatpush1.msra.mxu0 0.0
  %3182 = vmatprep.subr.mxu0 0.0
  %3183 = vmatpush1.msra.mxu0 0.0
  %3184 = vmatprep.subr.mxu0 0.0
  %3185 = vmatpush1.msra.mxu0 0.0
  %3186 = vmatprep.subr.mxu0 0.0
  %3187 = vmatpush1.msra.mxu0 0.0
  %3188 = vmatprep.subr.mxu0 0.0
  %3189 = vmatpush1.msra.mxu0 0.0
  %3190 = vmatprep.subr.mxu0 0.0
  %3191 = vmatpush1.msra.mxu0 0.0
  %3192 = vmatprep.subr.mxu0 0.0
  %3193 = vmatpush1.msra.mxu0 0.0
  %3194 = vmatprep.subr.mxu0 0.0
  %3195 = vmatpush1.msra.mxu0 0.0
  %3196 = vmatprep.subr.mxu0 0.0
  %3197 = vmatpush1.msra.mxu0 0.0
  %3198 = vmatprep.subr.mxu0 0.0
  %3199 = vmatpush1.msra.mxu0 0.0
  %3200 = vmatprep.subr.mxu0 0.0
  %3201 = vmatpush1.msra.mxu0 0.0
  %3202 = vmatprep.subr.mxu0 0.0
  %3203 = vmatpush1.msra.mxu0 0.0
  %3204 = vmatprep.subr.mxu0 0.0
  %3205 = vmatpush1.msra.mxu0 0.0
  %3206 = vmatprep.subr.mxu0 0.0
  %3207 = vmatpush1.msra.mxu0 0.0
  %3208 = vmatprep.subr.mxu0 0.0
  %3209 = vmatpush1.msra.mxu0 0.0
  %3210 = vmatprep.subr.mxu0 0.0
  %3211 = vmatpush1.msra.mxu0 0.0
  %3212 = vmatprep.subr.mxu0 0.0
  %3213 = vmatpush1.msra.mxu0 0.0
  %3214 = vmatprep.subr.mxu0 0.0
  %3215 = vmatpush1.msra.mxu0 0.0
  %3216 = vmatprep.subr.mxu0 0.0
  %3217 = vmatpush1.msra.mxu0 0.0
  %3218 = vmatprep.subr.mxu0 0.0
  %3219 = vmatpush1.msra.mxu0 0.0
  %3220 = vmatprep.subr.mxu0 0.0
  %3221 = vmatpush1.msra.mxu0 0.0
  %3222 = vmatprep.subr.mxu0 0.0
  %3223 = vmatpush1.msra.mxu0 0.0
  %3224 = vmatprep.subr.mxu0 0.0
  %3225 = vmatpush1.msra.mxu0 0.0
  %3226 = vmatprep.subr.mxu0 0.0
  %3227 = vmatpush1.msra.mxu0 0.0
  %3228 = vmatprep.subr.mxu0 0.0
  %3229 = vmatpush1.msra.mxu0 0.0
  %3230 = vmatprep.subr.mxu0 0.0
  %3231 = vmatpush1.msra.mxu0 0.0
  %3232 = vmatprep.subr.mxu0 0.0
  %3233 = vmatpush1.msra.mxu0 0.0
  %3234 = vmatprep.mubr.f32.mxu0 0.0
  %v3235 = vand.u32 %v2376, 4294901760
  %v3236 = vsub.f32 %v2376, %v3235
  %v3237 = vand.u32 %v3236, 4294901760
  %3238 = vmatmul.mubr.f32.gmra.mrb[0].mxu0 %v3237
  %v3239 = vpop.f32.mrb[0].mxu0
  %v3240 = vadd.f32 %v3160, %v3239
  %v3241 = vpop.f32.mrb[0].mxu0
  %v3242 = vadd.f32 %v3162, %v3241
  %3243 = vdwg.mxu0
  %v3244 = vand.u32 %v2364, 4294901760
  %v3245 = vsub.f32 %v2364, %v3244
  %v3246 = vand.u32 %v3245, 4294901760
  %3247 = vmatprep.subr.mxu0 %v3246
  %v3248 = vand.u32 %v2363, 4294901760
  %v3249 = vsub.f32 %v2363, %v3248
  %v3250 = vand.u32 %v3249, 4294901760
  %3251 = vmatpush1.msra.mxu0 %v3250
  %v3252 = vand.u32 %v2368, 4294901760
  %v3253 = vsub.f32 %v2368, %v3252
  %v3254 = vand.u32 %v3253, 4294901760
  %3255 = vmatprep.subr.mxu0 %v3254
  %v3256 = vand.u32 %v2367, 4294901760
  %v3257 = vsub.f32 %v2367, %v3256
  %v3258 = vand.u32 %v3257, 4294901760
  %3259 = vmatpush1.msra.mxu0 %v3258
  %v3260 = vand.u32 %v2372, 4294901760
  %v3261 = vsub.f32 %v2372, %v3260
  %v3262 = vand.u32 %v3261, 4294901760
  %3263 = vmatprep.subr.mxu0 %v3262
  %v3264 = vand.u32 %v2371, 4294901760
  %v3265 = vsub.f32 %v2371, %v3264
  %v3266 = vand.u32 %v3265, 4294901760
  %3267 = vmatpush1.msra.mxu0 %v3266
  %3268 = vmatprep.subr.mxu0 0.0
  %3269 = vmatpush1.msra.mxu0 0.0
  %3270 = vmatprep.subr.mxu0 0.0
  %3271 = vmatpush1.msra.mxu0 0.0
  %3272 = vmatprep.subr.mxu0 0.0
  %3273 = vmatpush1.msra.mxu0 0.0
  %3274 = vmatprep.subr.mxu0 0.0
  %3275 = vmatpush1.msra.mxu0 0.0
  %3276 = vmatprep.subr.mxu0 0.0
  %3277 = vmatpush1.msra.mxu0 0.0
  %3278 = vmatprep.subr.mxu0 0.0
  %3279 = vmatpush1.msra.mxu0 0.0
  %3280 = vmatprep.subr.mxu0 0.0
  %3281 = vmatpush1.msra.mxu0 0.0
  %3282 = vmatprep.subr.mxu0 0.0
  %3283 = vmatpush1.msra.mxu0 0.0
  %3284 = vmatprep.subr.mxu0 0.0
  %3285 = vmatpush1.msra.mxu0 0.0
  %3286 = vmatprep.subr.mxu0 0.0
  %3287 = vmatpush1.msra.mxu0 0.0
  %3288 = vmatprep.subr.mxu0 0.0
  %3289 = vmatpush1.msra.mxu0 0.0
  %3290 = vmatprep.subr.mxu0 0.0
  %3291 = vmatpush1.msra.mxu0 0.0
  %3292 = vmatprep.subr.mxu0 0.0
  %3293 = vmatpush1.msra.mxu0 0.0
  %3294 = vmatprep.subr.mxu0 0.0
  %3295 = vmatpush1.msra.mxu0 0.0
  %3296 = vmatprep.subr.mxu0 0.0
  %3297 = vmatpush1.msra.mxu0 0.0
  %3298 = vmatprep.subr.mxu0 0.0
  %3299 = vmatpush1.msra.mxu0 0.0
  %3300 = vmatprep.subr.mxu0 0.0
  %3301 = vmatpush1.msra.mxu0 0.0
  %3302 = vmatprep.subr.mxu0 0.0
  %3303 = vmatpush1.msra.mxu0 0.0
  %3304 = vmatprep.subr.mxu0 0.0
  %3305 = vmatpush1.msra.mxu0 0.0
  %3306 = vmatprep.subr.mxu0 0.0
  %3307 = vmatpush1.msra.mxu0 0.0
  %3308 = vmatprep.subr.mxu0 0.0
  %3309 = vmatpush1.msra.mxu0 0.0
  %3310 = vmatprep.subr.mxu0 0.0
  %3311 = vmatpush1.msra.mxu0 0.0
  %3312 = vmatprep.subr.mxu0 0.0
  %3313 = vmatpush1.msra.mxu0 0.0
  %3314 = vmatprep.subr.mxu0 0.0
  %3315 = vmatpush1.msra.mxu0 0.0
  %3316 = vmatprep.subr.mxu0 0.0
  %3317 = vmatpush1.msra.mxu0 0.0
  %3318 = vmatprep.subr.mxu0 0.0
  %3319 = vmatpush1.msra.mxu0 0.0
  %3320 = vmatprep.subr.mxu0 0.0
  %3321 = vmatpush1.msra.mxu0 0.0
  %3322 = vmatprep.subr.mxu0 0.0
  %3323 = vmatpush1.msra.mxu0 0.0
  %3324 = vmatprep.subr.mxu0 0.0
  %3325 = vmatpush1.msra.mxu0 0.0
  %3326 = vmatprep.mubr.f32.mxu0 0.0
  %v3327 = vand.u32 %v2376, 4294901760
  %3328 = vmatmul.mubr.f32.gmra.mrb[0].mxu0 %v3327
  %v3329 = vpop.f32.mrb[0].mxu0
  %v3330 = vadd.f32 %v3240, %v3329
  %v3331 = vpop.f32.mrb[0].mxu0
  %v3332 = vadd.f32 %v3242, %v3331
  %3333 = vdwg.mxu0
  %v3334 = vand.u32 %v2364, 4294901760
  %3335 = vmatprep.subr.mxu0 %v3334
  %v3336 = vand.u32 %v2363, 4294901760
  %3337 = vmatpush1.msra.mxu0 %v3336
  %v3338 = vand.u32 %v2368, 4294901760
  %3339 = vmatprep.subr.mxu0 %v3338
  %v3340 = vand.u32 %v2367, 4294901760
  %3341 = vmatpush1.msra.mxu0 %v3340
  %v3342 = vand.u32 %v2372, 4294901760
  %3343 = vmatprep.subr.mxu0 %v3342
  %v3344 = vand.u32 %v2371, 4294901760
  %3345 = vmatpush1.msra.mxu0 %v3344
  %3346 = vmatprep.subr.mxu0 0.0
  %3347 = vmatpush1.msra.mxu0 0.0
  %3348 = vmatprep.subr.mxu0 0.0
  %3349 = vmatpush1.msra.mxu0 0.0
  %3350 = vmatprep.subr.mxu0 0.0
  %3351 = vmatpush1.msra.mxu0 0.0
  %3352 = vmatprep.subr.mxu0 0.0
  %3353 = vmatpush1.msra.mxu0 0.0
  %3354 = vmatprep.subr.mxu0 0.0
  %3355 = vmatpush1.msra.mxu0 0.0
  %3356 = vmatprep.subr.mxu0 0.0
  %3357 = vmatpush1.msra.mxu0 0.0
  %3358 = vmatprep.subr.mxu0 0.0
  %3359 = vmatpush1.msra.mxu0 0.0
  %3360 = vmatprep.subr.mxu0 0.0
  %3361 = vmatpush1.msra.mxu0 0.0
  %3362 = vmatprep.subr.mxu0 0.0
  %3363 = vmatpush1.msra.mxu0 0.0
  %3364 = vmatprep.subr.mxu0 0.0
  %3365 = vmatpush1.msra.mxu0 0.0
  %3366 = vmatprep.subr.mxu0 0.0
  %3367 = vmatpush1.msra.mxu0 0.0
  %3368 = vmatprep.subr.mxu0 0.0
  %3369 = vmatpush1.msra.mxu0 0.0
  %3370 = vmatprep.subr.mxu0 0.0
  %3371 = vmatpush1.msra.mxu0 0.0
  %3372 = vmatprep.subr.mxu0 0.0
  %3373 = vmatpush1.msra.mxu0 0.0
  %3374 = vmatprep.subr.mxu0 0.0
  %3375 = vmatpush1.msra.mxu0 0.0
  %3376 = vmatprep.subr.mxu0 0.0
  %3377 = vmatpush1.msra.mxu0 0.0
  %3378 = vmatprep.subr.mxu0 0.0
  %3379 = vmatpush1.msra.mxu0 0.0
  %3380 = vmatprep.subr.mxu0 0.0
  %3381 = vmatpush1.msra.mxu0 0.0
  %3382 = vmatprep.subr.mxu0 0.0
  %3383 = vmatpush1.msra.mxu0 0.0
  %3384 = vmatprep.subr.mxu0 0.0
  %3385 = vmatpush1.msra.mxu0 0.0
  %3386 = vmatprep.subr.mxu0 0.0
  %3387 = vmatpush1.msra.mxu0 0.0
  %3388 = vmatprep.subr.mxu0 0.0
  %3389 = vmatpush1.msra.mxu0 0.0
  %3390 = vmatprep.subr.mxu0 0.0
  %3391 = vmatpush1.msra.mxu0 0.0
  %3392 = vmatprep.subr.mxu0 0.0
  %3393 = vmatpush1.msra.mxu0 0.0
  %3394 = vmatprep.subr.mxu0 0.0
  %3395 = vmatpush1.msra.mxu0 0.0
  %3396 = vmatprep.subr.mxu0 0.0
  %3397 = vmatpush1.msra.mxu0 0.0
  %3398 = vmatprep.subr.mxu0 0.0
  %3399 = vmatpush1.msra.mxu0 0.0
  %3400 = vmatprep.subr.mxu0 0.0
  %3401 = vmatpush1.msra.mxu0 0.0
  %3402 = vmatprep.subr.mxu0 0.0
  %3403 = vmatpush1.msra.mxu0 0.0
  %3404 = vmatprep.mubr.f32.mxu0 0.0
  %v3405 = vand.u32 %v2376, 4294901760
  %3406 = vmatmul.mubr.f32.gmra.mrb[0].mxu0 %v3405
  %v3407 = vpop.f32.mrb[0].mxu0
  %v3408 = vadd.f32 %v3330, %v3407
  %v3409 = vpop.f32.mrb[0].mxu0
  %v3410 = vadd.f32 %v3332, %v3409
  %3411 = vdwg.mxu0
  %v3412 = vld [vmem:[%s4] sm:$0xf]
  %vm3413 = vcmask 1043456
  %v3414 = vsel %vm3413, %v2891, 0.0
  %v3415 = vsel %vm3413, %v2893, 0.0
  %v3416 = vadd.f32 %v3414, %v3415
  %v3417 = vsel %vm3413, %v3408, 0.0
  %v3418 = vadd.f32 %v3416, %v3417
  %v3419 = vsel %vm3413, %v3410, 0.0
  %v3420 = vadd.f32 %v3418, %v3419
  %3421 = vadd.xlane.f32.xlu0 %v3420
  %v3422 = vpop.xlane.xlu0 %3421
  %v3423 = vmul.f32 %v2891, %v2891
  %v3424 = vmul.f32 %v2893, %v2893
  %v3425 = vmul.f32 %v3408, %v3408
  %v3426 = vmul.f32 %v3410, %v3410
  %v3427 = vsel %vm3413, %v3423, 0.0
  %v3428 = vsel %vm3413, %v3424, 0.0
  %v3429 = vadd.f32 %v3427, %v3428
  %v3430 = vsel %vm3413, %v3425, 0.0
  %v3431 = vadd.f32 %v3429, %v3430
  %v3432 = vsel %vm3413, %v3426, 0.0
  %v3433 = vadd.f32 %v3431, %v3432
  %3434 = vadd.xlane.f32.xlu0 %v3433
  %v3435 = vpop.xlane.xlu0 %3434
  %v3436 = vmul.f32 %v3422, 0.001953125
  %v3437 = vmul.f32 %v3435, 0.001953125
  %v3438 = vmul.f32 %v3436, %v3436
  %v3439 = vsub.f32 %v3437, %v3438
  %v3440 = vadd.f32 %v3439, 1e-05
  %v3441 = vrsqrt.pop %v3440
  %v3442 = vmul.f32 %v3412, %v3441
  %v3443 = vmul.f32 %v3436, %v3442
  %3445 = vrot.lane.b32.xlu0 %v3443, 1
  %v3446 = vpop.permute.xlu0 %3445
  %v3448 = vsub.f32 %v3412, %v3446
  %v3449 = vmul.f32 %v3442, 2.0
  %v3450 = vmul.f32 %v3448, 2.0
  %3452 = vset.pattern.permute.xlu0 4
  %3453 = vperm.xlu0 %3452, %v3449
  %v3454 = vpop.permute.xlu0 %3453
  %v3456 = vmul.f32 %v2891, %v3454
  %v3457 = vmul.f32 %v2893, %v3454
  %v3458 = vmul.f32 %v3408, %v3454
  %v3459 = vmul.f32 %v3410, %v3454
  %3461 = vset.pattern.permute.xlu0 5
  %3462 = vperm.xlu0 %3461, %v3450
  %v3463 = vpop.permute.xlu0 %3462
  %v3465 = vadd.f32 %v3456, %v3463
  %v3466 = vadd.f32 %v3457, %v3463
  %v3467 = vadd.f32 %v3458, %v3463
  %v3468 = vadd.f32 %v3459, %v3463
  %v3473 = vcombine.low %v3465, %v3466
  %v3474 = vcombine.low %v3467, %v3468
  %3477 = vst [vmem:[%s5] sm:$0xff] %v3473
  %3478 = vst [vmem:[%s5 + $0x8] sm:$0xff] %v3474
  // Predicated region
  $region22: #{bottleneck_residual_block.1} parent=0 // pred_check
    _
  $region23: #{bottleneck_residual_block.1} parent=0 // pred_check_branch
    %3480 = sbr.rel (0) target = $region25
  $region24: #{bottleneck_residual_block.1} parent=0 // pred_region
    _
  $region25: #{bottleneck_residual_block.1} parent=0 // pred_fallthru
    _
  // Predicated region
  $region26: #{bottleneck_residual_block.1} parent=0 // pred_check
    _
  $region27: #{bottleneck_residual_block.1} parent=0 // pred_check_branch
    %3482 = sbr.rel (0) target = $region29
  $region28: #{bottleneck_residual_block.1} parent=0 // pred_region
    _
  $region29: #{bottleneck_residual_block.1} parent=0 // pred_fallthru
    _

</llo_original>
